<compile_context>
chip_gen: v6e
topology: v6e:2x2x1
jax: 0.10.0
libtpu: 0.0.40
codegen_flags: <defaults>
</compile_context>

<pallas_src>
import functools

import jax
import jax.numpy as jnp
from jax.experimental import pallas as pl
from jax.experimental.pallas import tpu as pltpu


# ----------------------------------------------------------------------------
# Fused, tiled matmul kernel (MXU) with optional ELU prologue / gate epilogue
# ----------------------------------------------------------------------------

def _round_up(x, m):
    return ((x + m - 1) // m) * m


def _make_mm_kernel(prologue, epilogue, n_w):
    """Kernel factory.

    prologue: 'none' | 'elu' | 'celu'   (applied to the A tile)
    epilogue: 'bias' -> out = acc + b
              'gate' -> out = res + (acc_a + b_a) * sigmoid(acc_b + b_b)
    n_w: number of weight operands ('celu' uses 2 per output, 'gate' doubles).
    """
    n_half = n_w // 2 if epilogue == 'gate' else n_w

    def kernel(*refs):
        a_ref = refs[0]
        w_refs = refs[1:1 + n_w]
        if epilogue == 'gate':
            ba_ref, bb_ref = refs[1 + n_w], refs[2 + n_w]
            res_ref = refs[3 + n_w]
            o_ref = refs[4 + n_w]
            acc_a, acc_b = refs[5 + n_w], refs[6 + n_w]
        else:
            b_ref = refs[1 + n_w]
            o_ref = refs[2 + n_w]
            acc = refs[3 + n_w]

        k = pl.program_id(2)

        @pl.when(k == 0)
        def _init():
            if epilogue == 'gate':
                acc_a[...] = jnp.zeros_like(acc_a)
                acc_b[...] = jnp.zeros_like(acc_b)
            else:
                acc[...] = jnp.zeros_like(acc)

        # Prologue: fused (concat-)ELU on the A tile. ELU math in f32,
        # downcast to bf16 only at the MXU input.
        if prologue == 'none':
            ops = [a_ref[...]]                       # already bf16
        else:
            a = a_ref[...].astype(jnp.float32)
            pos = jnp.where(a > 0, a, jnp.exp(a) - 1.0).astype(jnp.bfloat16)
            if prologue == 'elu':
                ops = [pos]
            else:  # 'celu'
                neg = jnp.where(a < 0, -a, jnp.exp(-a) - 1.0).astype(jnp.bfloat16)
                ops = [pos, neg]

        if epilogue == 'gate':
            for t in range(n_half):
                acc_a[...] += jnp.dot(ops[t], w_refs[t][...],
                                      preferred_element_type=jnp.float32)
                acc_b[...] += jnp.dot(ops[t], w_refs[n_half + t][...],
                                      preferred_element_type=jnp.float32)
        else:
            for t in range(n_half):
                acc[...] += jnp.dot(ops[t], w_refs[t][...],
                                    preferred_element_type=jnp.float32)

        @pl.when(k == pl.num_programs(2) - 1)
        def _finalize():
            if epilogue == 'gate':
                aa = acc_a[...] + ba_ref[...]
                bb = acc_b[...] + bb_ref[...]
                sig = pl.reciprocal(1.0 + jnp.exp(-bb), approx=True)
                o_ref[...] = res_ref[...] + aa * sig
            else:
                o_ref[...] = acc[...] + b_ref[...]

    return kernel


def _pad2(x, r, c):
    return jnp.pad(x, ((0, r - x.shape[0]), (0, c - x.shape[1])))


def fused_matmul(a, ws, bs, res=None, prologue='none', epilogue='bias'):
    """Tiled (M,N,K)-grid matmul with fused prologue/epilogue.

    a  : (M, K) f32 activation patch matrix.
    ws : list of (K, N) weight matrices (pre-split for prologue/epilogue).
    bs : list of (N,) biases  ('bias': 1 bias, 'gate': 2 biases).
    res: (M, N) residual input, required for epilogue='gate'.
    """
    M, K = a.shape
    N = ws[0].shape[1]

    tm = min(256, _round_up(M, 16))
    tk = min(512, _round_up(K, 128))
    tn = min(256, _round_up(N, 128))
    Mp, Kp, Np = _round_up(M, tm), _round_up(K, tk), _round_up(N, tn)
    gm, gn, gk = Mp // tm, Np // tn, Kp // tk

    a_p = _pad2(a.astype(jnp.float32), Mp, Kp).astype(jnp.bfloat16)
    ws_p = [_pad2(w.astype(jnp.float32), Kp, Np).astype(jnp.bfloat16) for w in ws]
    bs_p = [jnp.pad(b.astype(jnp.float32), (0, Np - N)).reshape(1, Np) for b in bs]

    inputs = [a_p] + ws_p + bs_p
    in_specs = ([pl.BlockSpec((tm, tk), lambda i, j, k: (i, k))]
                + [pl.BlockSpec((tk, tn), lambda i, j, k: (k, j)) for _ in ws_p]
                + [pl.BlockSpec((1, tn), lambda i, j, k: (0, j)) for _ in bs_p])

    n_acc = 1
    if epilogue == 'gate':
        inputs.append(_pad2(res.astype(jnp.float32), Mp, Np))
        in_specs.append(pl.BlockSpec((tm, tn), lambda i, j, k: (i, j)))
        n_acc = 2

    out = pl.pallas_call(
        _make_mm_kernel(prologue, epilogue, len(ws_p)),
        out_shape=jax.ShapeDtypeStruct((Mp, Np), jnp.float32),
        grid=(gm, gn, gk),
        in_specs=in_specs,
        out_specs=pl.BlockSpec((tm, tn), lambda i, j, k: (i, j)),
        scratch_shapes=[pltpu.VMEM((tm, tn), jnp.float32)] * n_acc,
        compiler_params=pltpu.CompilerParams(
            dimension_semantics=("parallel", "parallel", "arbitrary")),
    )(*inputs)
    return out[:M, :N]


# ----------------------------------------------------------------------------
# Convolutions (NHWC) lowered onto the fused matmul
# ----------------------------------------------------------------------------

def _wmat(w):
    """(Cout, Cin, Kh, Kw) torch conv weight -> (Kh*Kw*Cin, Cout) for NHWC im2col."""
    Cout, Cin, Kh, Kw = w.shape
    return jnp.transpose(w, (2, 3, 1, 0)).reshape(Kh * Kw * Cin, Cout)


def _im2col_nhwc(xp, Kh, Kw, sh, sw):
    N, Hp, Wp, C = xp.shape
    Ho = (Hp - Kh) // sh + 1
    Wo = (Wp - Kw) // sw + 1
    cols = []
    for kh in range(Kh):
        for kw in range(Kw):
            cols.append(xp[:, kh:kh + sh * (Ho - 1) + 1:sh,
                           kw:kw + sw * (Wo - 1) + 1:sw, :])
    patches = jnp.concatenate(cols, axis=-1)            # (N, Ho, Wo, Kh*Kw*C)
    return patches.reshape(N * Ho * Wo, Kh * Kw * C), Ho, Wo


def _shift_pad(shift, Kh, Kw):
    if shift == 'down':        # DownShiftedConv2d padding
        return ((Kh - 1, 0), ((Kw - 1) // 2, (Kw - 1) // 2))
    return ((Kh - 1, 0), (Kw - 1, 0))        # DownRightShiftedConv2d padding


def conv_nhwc(x, w, b, *, stride=(1, 1), pad=((0, 0), (0, 0)), prologue='none'):
    """PyTorch-semantics conv on NHWC input; optional fused ELU prologue."""
    N = x.shape[0]
    Cout, Cin, Kh, Kw = w.shape
    xp = jnp.pad(x, ((0, 0), pad[0], pad[1], (0, 0)))
    patches, Ho, Wo = _im2col_nhwc(xp, Kh, Kw, stride[0], stride[1])
    y = fused_matmul(patches, [_wmat(w)], [b], prologue=prologue)
    return y.reshape(N, Ho, Wo, Cout)


def shifted_conv(x, w, b, shift, stride=(1, 1)):
    Kh, Kw = w.shape[2], w.shape[3]
    return conv_nhwc(x, w, b, stride=stride, pad=_shift_pad(shift, Kh, Kw))


def conv_transpose_nhwc(x, w, b, stride):
    """PyTorch ConvTranspose2d (padding=0). w: (Cin, Cout, Kh, Kw)."""
    # TODO(synk): sub-pixel (phase) decomposition would avoid the zero rows
    #             introduced by dilation (75% of the MXU work at stride 2).
    N, H, W, C = x.shape
    Cin, Cout, Kh, Kw = w.shape
    sh, sw = stride
    Hd, Wd = (H - 1) * sh + 1, (W - 1) * sw + 1
    xd = jnp.zeros((N, Hd, Wd, C), x.dtype).at[:, ::sh, ::sw, :].set(x)
    w2 = jnp.transpose(jnp.flip(w, axis=(2, 3)), (1, 0, 2, 3))  # (Cout,Cin,Kh,Kw)
    return conv_nhwc(xd, w2, b, stride=(1, 1),
                     pad=((Kh - 1, Kh - 1), (Kw - 1, Kw - 1)))


def shifted_conv_transpose(x, w, b, shift, stride):
    Kh, Kw = w.shape[2], w.shape[3]
    y = conv_transpose_nhwc(x, w, b, stride)
    Hout, Wout = y.shape[1], y.shape[2]
    if shift == 'down':
        return y[:, :Hout - Kh + stride[0], Kw // 2:Wout, :]
    return y[:, :Hout - Kh + stride[0], :Wout - Kw + stride[1], :]


def down_shift(x):   # NHWC
    return jnp.pad(x, ((0, 0), (1, 0), (0, 0), (0, 0)))[:, :-1, :, :]


def right_shift(x):  # NHWC
    return jnp.pad(x, ((0, 0), (0, 0), (1, 0), (0, 0)))[:, :, :-1, :]


# ----------------------------------------------------------------------------
# Gated residual layer: two fused pallas_calls (c1+shortcut, c2+gate)
# ----------------------------------------------------------------------------

def apply_grl(params, x, shift, a=None):
    N, H, W, nc = x.shape
    w1 = params['c1']['w']                      # (nc, 2*nc, Kh, Kw)
    Kh, Kw = w1.shape[2], w1.shape[3]
    pad = _shift_pad(shift, Kh, Kw)

    # c1 = conv(concat_elu(x)) [+ conv1x1(concat_elu(a))]  -- all in one matmul
    xp = jnp.pad(x, ((0, 0), pad[0], pad[1], (0, 0)))
    patches, _, _ = _im2col_nhwc(xp, Kh, Kw, 1, 1)       # (M, Kh*Kw*nc)
    w_pos, w_neg = _wmat(w1[:, :nc]), _wmat(w1[:, nc:])
    bias = params['c1']['b']
    if a is not None:
        sc = a.shape[-1]
        w1c = params['c1c']['w']                # (nc, 2*sc, 1, 1)
        patches = jnp.concatenate([patches, a.reshape(N * H * W, sc)], axis=1)
        w_pos = jnp.concatenate([w_pos, _wmat(w1c[:, :sc])], axis=0)
        w_neg = jnp.concatenate([w_neg, _wmat(w1c[:, sc:])], axis=0)
        bias = bias + params['c1c']['b']
    c1 = fused_matmul(patches, [w_pos, w_neg], [bias], prologue='celu')
    c1 = c1.reshape(N, H, W, nc)

    # out = x + aa * sigmoid(bb)  with  (aa|bb) = conv(concat_elu(c1)) -- fused
    w2 = params['c2']['w']                      # (2*nc, 2*nc, Kh, Kw)
    c1p = jnp.pad(c1, ((0, 0), pad[0], pad[1], (0, 0)))
    patches2, _, _ = _im2col_nhwc(c1p, Kh, Kw, 1, 1)
    wa, wb = w2[:nc], w2[nc:]
    ws = [_wmat(wa[:, :nc]), _wmat(wa[:, nc:]),
          _wmat(wb[:, :nc]), _wmat(wb[:, nc:])]
    bs = [params['c2']['b'][:nc], params['c2']['b'][nc:]]
    out = fused_matmul(patches2, ws, bs, res=x.reshape(N * H * W, nc),
                       prologue='celu', epilogue='gate')
    return out.reshape(N, H, W, nc)


# ----------------------------------------------------------------------------
# Parameter init (deterministic, weight-norm reparametrization applied)
# ----------------------------------------------------------------------------

class KeyGen:
    def __init__(self, key):
        self.key = key

    def __call__(self):
        self.key, sub = jax.random.split(self.key)
        return sub


def init_conv(kg, cout, cin, kh, kw):
    v = jax.random.normal(kg(), (cout, cin, kh, kw), jnp.float32) * 0.1
    g = 0.5 + jax.random.uniform(kg(), (cout,), jnp.float32)
    norm = jnp.sqrt(jnp.sum(v * v, axis=(1, 2, 3), keepdims=True)) + 1e-8
    w = g[:, None, None, None] * v / norm
    b = jax.random.normal(kg(), (cout,), jnp.float32) * 0.05
    return {'w': w, 'b': b}


def init_conv_transpose(kg, cin, cout, kh, kw):
    v = jax.random.normal(kg(), (cin, cout, kh, kw), jnp.float32) * 0.1
    g = 0.5 + jax.random.uniform(kg(), (cin,), jnp.float32)
    norm = jnp.sqrt(jnp.sum(v * v, axis=(1, 2, 3), keepdims=True)) + 1e-8
    w = g[:, None, None, None] * v / norm
    b = jax.random.normal(kg(), (cout,), jnp.float32) * 0.05
    return {'w': w, 'b': b}


def init_grl(kg, n_channels, ksize, shortcut_channels):
    kh, kw = ksize
    p = {'c1': init_conv(kg, n_channels, 2 * n_channels, kh, kw),
         'c2': init_conv(kg, 2 * n_channels, 2 * n_channels, kh, kw)}
    if shortcut_channels:
        p['c1c'] = init_conv(kg, n_channels, 2 * shortcut_channels, 1, 1)
    return p


def init_pixelcnnpp(key, image_dims=(3, 4, 4), n_channels=32, n_res_layers=2,
                    n_classes=10):
    kg = KeyGen(key)
    c0 = image_dims[0] + 1
    nc = n_channels
    nrl = n_res_layers
    P = {
        'u_input': init_conv(kg, nc, c0, 2, 3),
        'ul_input_d': init_conv(kg, nc, c0, 1, 3),
        'ul_input_dr': init_conv(kg, nc, c0, 2, 1),
        'up_u': ([init_grl(kg, nc, (2, 3), None) for _ in range(nrl)]
                 + [init_conv(kg, nc, nc, 2, 3)]
                 + [init_grl(kg, nc, (2, 3), None) for _ in range(nrl)]),
        'up_ul': ([init_grl(kg, nc, (2, 2), nc) for _ in range(nrl)]
                  + [init_conv(kg, nc, nc, 2, 2)]
                  + [init_grl(kg, nc, (2, 2), nc) for _ in range(nrl)]),
        'down_u': ([init_grl(kg, nc, (2, 3), nc) for _ in range(nrl)]
                   + [init_conv_transpose(kg, nc, nc, 2, 3)]
                   + [init_grl(kg, nc, (2, 3), nc) for _ in range(nrl + 1)]),
        'down_ul': ([init_grl(kg, nc, (2, 2), 2 * nc) for _ in range(nrl)]
                    + [init_conv_transpose(kg, nc, nc, 2, 2)]
                    + [init_grl(kg, nc, (2, 2), 2 * nc) for _ in range(nrl + 1)]),
        'output_conv': init_conv(kg, n_classes, nc, 1, 1),
    }
    return P


# ----------------------------------------------------------------------------
# Model forward (host I/O is NCHW to match PyTorch; internals are NHWC)
# ----------------------------------------------------------------------------

def pixelcnnpp_forward(P, x_nchw, n_res_layers=2):
    x = jnp.transpose(x_nchw, (0, 2, 3, 1))              # NHWC
    N, H, W, _ = x.shape
    # F.pad(x, (0,0,0,0,0,1), value=1): append a channel of ones
    x = jnp.concatenate([x, jnp.ones((N, H, W, 1), x.dtype)], axis=-1)

    u_list = [down_shift(
        shifted_conv(x, P['u_input']['w'], P['u_input']['b'], 'down'))]
    ul_list = [down_shift(shifted_conv(
                   x, P['ul_input_d']['w'], P['ul_input_d']['b'], 'down'))
               + right_shift(shifted_conv(
                   x, P['ul_input_dr']['w'], P['ul_input_dr']['b'], 'downright'))]

    nrl = n_res_layers
    # ---- up pass ----
    for i in range(2 * nrl + 1):
        pu, pul = P['up_u'][i], P['up_ul'][i]
        if i == nrl:   # strided convolutions
            u_list.append(shifted_conv(u_list[-1], pu['w'], pu['b'], 'down',
                                       stride=(2, 2)))
            ul_list.append(shifted_conv(ul_list[-1], pul['w'], pul['b'],
                                        'downright', stride=(2, 2)))
        else:
            u_list.append(apply_grl(pu, u_list[-1], 'down'))
            ul_list.append(apply_grl(pul, ul_list[-1], 'downright',
                                     a=u_list[-1]))

    u = u_list.pop()
    ul = ul_list.pop()

    # ---- down pass ----
    for i in range(2 * nrl + 2):
        pu, pul = P['down_u'][i], P['down_ul'][i]
        if i == nrl:   # transposed convolutions
            u = shifted_conv_transpose(u, pu['w'], pu['b'], 'down', (2, 2))
            ul = shifted_conv_transpose(ul, pul['w'], pul['b'], 'downright',
                                        (2, 2))
        else:
            u = apply_grl(pu, u, 'down', a=u_list.pop())
            # NOTE: reference code passes `u` (not `ul`) as the residual input
            ul = apply_grl(pul, u, 'downright',
                           a=jnp.concatenate([u, ul_list.pop()], axis=-1))

    out = conv_nhwc(ul, P['output_conv']['w'], P['output_conv']['b'],
                    prologue='elu')                      # fused elu + 1x1 conv
    return jnp.transpose(out, (0, 3, 1, 2))              # back to NCHW


# ----------------------------------------------------------------------------
# Main
# ----------------------------------------------------------------------------

if __name__ == "__main__":
    key = jax.random.PRNGKey(0)
    k_params, k_x = jax.random.split(key)

    image_dims = (3, 4, 4)
    n_channels = 32
    n_res_layers = 2
    n_classes = 10
    batch = 2

    params = init_pixelcnnpp(k_params, image_dims=image_dims,
                             n_channels=n_channels, n_res_layers=n_res_layers,
                             n_classes=n_classes)
    x = jax.random.normal(
        k_x, (batch, image_dims[0], image_dims[1], image_dims[2]), jnp.float32)

    fwd = jax.jit(functools.partial(pixelcnnpp_forward,
                                    n_res_layers=n_res_layers))
    out = jax.block_until_ready(fwd(params, x))

    assert out.shape == (batch, n_classes, image_dims[1], image_dims[2]), out.shape
    assert bool(jnp.all(jnp.isfinite(out)))
    print("KERNEL_OK")
</pallas_src>

<mosaic_0001>
module attributes {stable_mosaic.version = 11 : i64} {
  func.func @kernel(%arg0: i32, %arg1: i32, %arg2: i32, %arg3: memref<32x128xbf16, #tpu.memory_space<vmem>>, %arg4: memref<128x128xbf16, #tpu.memory_space<vmem>>, %arg5: memref<1x128xf32, #tpu.memory_space<vmem>>, %arg6: memref<32x128xf32, #tpu.memory_space<vmem>>, %arg7: memref<32x128xf32, #tpu.memory_space<vmem>>) attributes {dimension_semantics = [#tpu.dimension_semantics<parallel>, #tpu.dimension_semantics<parallel>, #tpu.dimension_semantics<arbitrary>], iteration_bounds = array<i64: 1, 1, 1>, scalar_prefetch = 0 : i64, scratch_operands = 1 : i64, tpu.core_type = #tpu.core_type<tc>, window_params = [{transform_indices = @transform_0, window_bounds = array<i64: 32, 128>}, {transform_indices = @transform_1, window_bounds = array<i64: 128, 128>}, {transform_indices = @transform_2, window_bounds = array<i64: 1, 128>}, {transform_indices = @transform_3, window_bounds = array<i64: 32, 128>}]} {
    %c0_i32 = arith.constant 0 : i32
    %0 = arith.cmpi eq, %arg2, %c0_i32 : i32
    %1 = arith.extui %0 : i1 to i32
    %c0_i32_0 = arith.constant 0 : i32
    %2 = arith.cmpi ne, %1, %c0_i32_0 : i32
    scf.if %2 {
      %cst_10 = arith.constant 0.000000e+00 : f32
      %12 = vector.broadcast %cst_10 : f32 to vector<32x128xf32>
      %c0_11 = arith.constant 0 : index
      %c0_12 = arith.constant 0 : index
      %13 = vector.load %arg7[%c0_11, %c0_12] : memref<32x128xf32, #tpu.memory_space<vmem>>, vector<32x128xf32>
      tpu.vector_store %arg7[%c0_11, %c0_12], %12 {strides = array<i32>} : memref<32x128xf32, #tpu.memory_space<vmem>>, vector<32x128xf32>,
    } else {
    }
    %c0 = arith.constant 0 : index
    %c0_1 = arith.constant 0 : index
    %3 = vector.load %arg3[%c0, %c0_1] : memref<32x128xbf16, #tpu.memory_space<vmem>>, vector<32x128xbf16>
    %c0_2 = arith.constant 0 : index
    %c0_3 = arith.constant 0 : index
    %4 = vector.load %arg7[%c0_2, %c0_3] : memref<32x128xf32, #tpu.memory_space<vmem>>, vector<32x128xf32>
    %c0_4 = arith.constant 0 : index
    %c0_5 = arith.constant 0 : index
    %5 = vector.load %arg4[%c0_4, %c0_5] : memref<128x128xbf16, #tpu.memory_space<vmem>>, vector<128x128xbf16>
    %cst = arith.constant dense<0.000000e+00> : vector<32x128xf32>
    %6 = tpu.matmul %3, %5, %cst {dimension_numbers = #tpu.dot_dimension_numbers<[1], [0], [0], [1], [0, 0, 1, 1], [], []>} : vector<32x128xbf16>, vector<128x128xbf16>, vector<32x128xf32> -> vector<32x128xf32>
    %7 = arith.addf %4, %6 : vector<32x128xf32>
    %c0_6 = arith.constant 0 : index
    %c0_7 = arith.constant 0 : index
    %8 = vector.load %arg7[%c0_6, %c0_7] : memref<32x128xf32, #tpu.memory_space<vmem>>, vector<32x128xf32>
    tpu.vector_store %arg7[%c0_6, %c0_7], %7 {strides = array<i32>} : memref<32x128xf32, #tpu.memory_space<vmem>>, vector<32x128xf32>,
    %c0_i32_8 = arith.constant 0 : i32
    %9 = arith.cmpi eq, %arg2, %c0_i32_8 : i32
    %10 = arith.extui %9 : i1 to i32
    %c0_i32_9 = arith.constant 0 : i32
    %11 = arith.cmpi ne, %10, %c0_i32_9 : i32
    scf.if %11 {
      %c0_10 = arith.constant 0 : index
      %c0_11 = arith.constant 0 : index
      %12 = vector.load %arg7[%c0_10, %c0_11] : memref<32x128xf32, #tpu.memory_space<vmem>>, vector<32x128xf32>
      %c0_12 = arith.constant 0 : index
      %c0_13 = arith.constant 0 : index
      %13 = vector.load %arg5[%c0_12, %c0_13] : memref<1x128xf32, #tpu.memory_space<vmem>>, vector<1x128xf32>
      %14 = vector.broadcast %13 : vector<1x128xf32> to vector<32x128xf32>
      %15 = arith.addf %12, %14 : vector<32x128xf32>
      %c0_14 = arith.constant 0 : index
      %c0_15 = arith.constant 0 : index
      %16 = vector.load %arg6[%c0_14, %c0_15] : memref<32x128xf32, #tpu.memory_space<vmem>>, vector<32x128xf32>
      tpu.vector_store %arg6[%c0_14, %c0_15], %15 {strides = array<i32>} : memref<32x128xf32, #tpu.memory_space<vmem>>, vector<32x128xf32>,
    } else {
    }
    return
  }
  func.func @transform_0(%arg0: i32, %arg1: i32, %arg2: i32) -> (i32, i32) {
    %c0_i32 = arith.constant 0 : i32
    return %arg0, %arg2 : i32, i32
  }
  func.func @transform_1(%arg0: i32, %arg1: i32, %arg2: i32) -> (i32, i32) {
    %c0_i32 = arith.constant 0 : i32
    return %arg2, %arg1 : i32, i32
  }
  func.func @transform_2(%arg0: i32, %arg1: i32, %arg2: i32) -> (i32, i32) {
    %c0_i32 = arith.constant 0 : i32
    %c0_i32_0 = arith.constant 0 : i32
    return %c0_i32, %arg1 : i32, i32
  }
  func.func @transform_3(%arg0: i32, %arg1: i32, %arg2: i32) -> (i32, i32) {
    %c0_i32 = arith.constant 0 : i32
    return %arg0, %arg1 : i32, i32
  }
}

module attributes {stable_mosaic.version = 11 : i64} {
  func.func @kernel(%arg0: i32, %arg1: i32, %arg2: i32, %arg3: memref<32x256xbf16, #tpu.memory_space<vmem>>, %arg4: memref<256x128xbf16, #tpu.memory_space<vmem>>, %arg5: memref<256x128xbf16, #tpu.memory_space<vmem>>, %arg6: memref<1x128xf32, #tpu.memory_space<vmem>>, %arg7: memref<32x128xf32, #tpu.memory_space<vmem>>, %arg8: memref<32x128xf32, #tpu.memory_space<vmem>>) attributes {dimension_semantics = [#tpu.dimension_semantics<parallel>, #tpu.dimension_semantics<parallel>, #tpu.dimension_semantics<arbitrary>], iteration_bounds = array<i64: 1, 1, 1>, scalar_prefetch = 0 : i64, scratch_operands = 1 : i64, tpu.core_type = #tpu.core_type<tc>, window_params = [{transform_indices = @transform_0, window_bounds = array<i64: 32, 256>}, {transform_indices = @transform_1, window_bounds = array<i64: 256, 128>}, {transform_indices = @transform_2, window_bounds = array<i64: 256, 128>}, {transform_indices = @transform_3, window_bounds = array<i64: 1, 128>}, {transform_indices = @transform_4, window_bounds = array<i64: 32, 128>}]} {
    %c0_i32 = arith.constant 0 : i32
    %0 = arith.cmpi eq, %arg2, %c0_i32 : i32
    %1 = arith.extui %0 : i1 to i32
    %c0_i32_0 = arith.constant 0 : i32
    %2 = arith.cmpi ne, %1, %c0_i32_0 : i32
    scf.if %2 {
      %cst_23 = arith.constant 0.000000e+00 : f32
      %36 = vector.broadcast %cst_23 : f32 to vector<32x128xf32>
      %c0_24 = arith.constant 0 : index
      %c0_25 = arith.constant 0 : index
      %37 = vector.load %arg8[%c0_24, %c0_25] : memref<32x128xf32, #tpu.memory_space<vmem>>, vector<32x128xf32>
      tpu.vector_store %arg8[%c0_24, %c0_25], %36 {strides = array<i32>} : memref<32x128xf32, #tpu.memory_space<vmem>>, vector<32x128xf32>,
    } else {
    }
    %c0 = arith.constant 0 : index
    %c0_1 = arith.constant 0 : index
    %3 = vector.load %arg3[%c0, %c0_1] : memref<32x256xbf16, #tpu.memory_space<vmem>>, vector<32x256xbf16>
    %4 = arith.extf %3 : vector<32x256xbf16> to vector<32x256xf32>
    %cst = arith.constant 0.000000e+00 : f32
    %5 = vector.broadcast %cst : f32 to vector<32x256xf32>
    %6 = arith.cmpf ogt, %4, %5 : vector<32x256xf32>
    %7 = math.exp %4 : vector<32x256xf32>
    %cst_2 = arith.constant 1.000000e+00 : f32
    %8 = vector.broadcast %cst_2 : f32 to vector<32x256xf32>
    %9 = arith.subf %7, %8 : vector<32x256xf32>
    %10 = arith.select %6, %4, %9 : vector<32x256xi1>, vector<32x256xf32>
    %11 = arith.truncf %10 : vector<32x256xf32> to vector<32x256xbf16>
    %cst_3 = arith.constant 0.000000e+00 : f32
    %12 = vector.broadcast %cst_3 : f32 to vector<32x256xf32>
    %13 = arith.cmpf olt, %4, %12 : vector<32x256xf32>
    %cst_4 = arith.constant 0.000000e+00 : f32
    %14 = vector.broadcast %cst_4 : f32 to vector<32x256xf32>
    %15 = arith.subf %14, %4 : vector<32x256xf32>
    %cst_5 = arith.constant 0.000000e+00 : f32
    %16 = vector.broadcast %cst_5 : f32 to vector<32x256xf32>
    %17 = arith.subf %16, %4 : vector<32x256xf32>
    %18 = math.exp %17 : vector<32x256xf32>
    %cst_6 = arith.constant 1.000000e+00 : f32
    %19 = vector.broadcast %cst_6 : f32 to vector<32x256xf32>
    %20 = arith.subf %18, %19 : vector<32x256xf32>
    %21 = arith.select %13, %15, %20 : vector<32x256xi1>, vector<32x256xf32>
    %22 = arith.truncf %21 : vector<32x256xf32> to vector<32x256xbf16>
    %c0_7 = arith.constant 0 : index
    %c0_8 = arith.constant 0 : index
    %23 = vector.load %arg8[%c0_7, %c0_8] : memref<32x128xf32, #tpu.memory_space<vmem>>, vector<32x128xf32>
    %c0_9 = arith.constant 0 : index
    %c0_10 = arith.constant 0 : index
    %24 = vector.load %arg4[%c0_9, %c0_10] : memref<256x128xbf16, #tpu.memory_space<vmem>>, vector<256x128xbf16>
    %cst_11 = arith.constant dense<0.000000e+00> : vector<32x128xf32>
    %25 = tpu.matmul %11, %24, %cst_11 {dimension_numbers = #tpu.dot_dimension_numbers<[1], [0], [0], [1], [0, 0, 1, 1], [], []>} : vector<32x256xbf16>, vector<256x128xbf16>, vector<32x128xf32> -> vector<32x128xf32>
    %26 = arith.addf %23, %25 : vector<32x128xf32>
    %c0_12 = arith.constant 0 : index
    %c0_13 = arith.constant 0 : index
    %27 = vector.load %arg8[%c0_12, %c0_13] : memref<32x128xf32, #tpu.memory_space<vmem>>, vector<32x128xf32>
    tpu.vector_store %arg8[%c0_12, %c0_13], %26 {strides = array<i32>} : memref<32x128xf32, #tpu.memory_space<vmem>>, vector<32x128xf32>,
    %c0_14 = arith.constant 0 : index
    %c0_15 = arith.constant 0 : index
    %28 = vector.load %arg8[%c0_14, %c0_15] : memref<32x128xf32, #tpu.memory_space<vmem>>, vector<32x128xf32>
    %c0_16 = arith.constant 0 : index
    %c0_17 = arith.constant 0 : index
    %29 = vector.load %arg5[%c0_16, %c0_17] : memref<256x128xbf16, #tpu.memory_space<vmem>>, vector<256x128xbf16>
    %cst_18 = arith.constant dense<0.000000e+00> : vector<32x128xf32>
    %30 = tpu.matmul %22, %29, %cst_18 {dimension_numbers = #tpu.dot_dimension_numbers<[1], [0], [0], [1], [0, 0, 1, 1], [], []>} : vector<32x256xbf16>, vector<256x128xbf16>, vector<32x128xf32> -> vector<32x128xf32>
    %31 = arith.addf %28, %30 : vector<32x128xf32>
    %c0_19 = arith.constant 0 : index
    %c0_20 = arith.constant 0 : index
    %32 = vector.load %arg8[%c0_19, %c0_20] : memref<32x128xf32, #tpu.memory_space<vmem>>, vector<32x128xf32>
    tpu.vector_store %arg8[%c0_19, %c0_20], %31 {strides = array<i32>} : memref<32x128xf32, #tpu.memory_space<vmem>>, vector<32x128xf32>,
    %c0_i32_21 = arith.constant 0 : i32
    %33 = arith.cmpi eq, %arg2, %c0_i32_21 : i32
    %34 = arith.extui %33 : i1 to i32
    %c0_i32_22 = arith.constant 0 : i32
    %35 = arith.cmpi ne, %34, %c0_i32_22 : i32
    scf.if %35 {
      %c0_23 = arith.constant 0 : index
      %c0_24 = arith.constant 0 : index
      %36 = vector.load %arg8[%c0_23, %c0_24] : memref<32x128xf32, #tpu.memory_space<vmem>>, vector<32x128xf32>
      %c0_25 = arith.constant 0 : index
      %c0_26 = arith.constant 0 : index
      %37 = vector.load %arg6[%c0_25, %c0_26] : memref<1x128xf32, #tpu.memory_space<vmem>>, vector<1x128xf32>
      %38 = vector.broadcast %37 : vector<1x128xf32> to vector<32x128xf32>
      %39 = arith.addf %36, %38 : vector<32x128xf32>
      %c0_27 = arith.constant 0 : index
      %c0_28 = arith.constant 0 : index
      %40 = vector.load %arg7[%c0_27, %c0_28] : memref<32x128xf32, #tpu.memory_space<vmem>>, vector<32x128xf32>
      tpu.vector_store %arg7[%c0_27, %c0_28], %39 {strides = array<i32>} : memref<32x128xf32, #tpu.memory_space<vmem>>, vector<32x128xf32>,
    } else {
    }
    return
  }
  func.func @transform_0(%arg0: i32, %arg1: i32, %arg2: i32) -> (i32, i32) {
    %c0_i32 = arith.constant 0 : i32
    return %arg0, %arg2 : i32, i32
  }
  func.func @transform_1(%arg0: i32, %arg1: i32, %arg2: i32) -> (i32, i32) {
    %c0_i32 = arith.constant 0 : i32
    return %arg2, %arg1 : i32, i32
  }
  func.func @transform_2(%arg0: i32, %arg1: i32, %arg2: i32) -> (i32, i32) {
    %c0_i32 = arith.constant 0 : i32
    return %arg2, %arg1 : i32, i32
  }
  func.func @transform_3(%arg0: i32, %arg1: i32, %arg2: i32) -> (i32, i32) {
    %c0_i32 = arith.constant 0 : i32
    %c0_i32_0 = arith.constant 0 : i32
    return %c0_i32, %arg1 : i32, i32
  }
  func.func @transform_4(%arg0: i32, %arg1: i32, %arg2: i32) -> (i32, i32) {
    %c0_i32 = arith.constant 0 : i32
    return %arg0, %arg1 : i32, i32
  }
}

module attributes {stable_mosaic.version = 11 : i64} {
  func.func @kernel(%arg0: i32, %arg1: i32, %arg2: i32, %arg3: memref<32x256xbf16, #tpu.memory_space<vmem>>, %arg4: memref<256x128xbf16, #tpu.memory_space<vmem>>, %arg5: memref<256x128xbf16, #tpu.memory_space<vmem>>, %arg6: memref<256x128xbf16, #tpu.memory_space<vmem>>, %arg7: memref<256x128xbf16, #tpu.memory_space<vmem>>, %arg8: memref<1x128xf32, #tpu.memory_space<vmem>>, %arg9: memref<1x128xf32, #tpu.memory_space<vmem>>, %arg10: memref<32x128xf32, #tpu.memory_space<vmem>>, %arg11: memref<32x128xf32, #tpu.memory_space<vmem>>, %arg12: memref<32x128xf32, #tpu.memory_space<vmem>>, %arg13: memref<32x128xf32, #tpu.memory_space<vmem>>) attributes {dimension_semantics = [#tpu.dimension_semantics<parallel>, #tpu.dimension_semantics<parallel>, #tpu.dimension_semantics<arbitrary>], iteration_bounds = array<i64: 1, 1, 1>, scalar_prefetch = 0 : i64, scratch_operands = 2 : i64, tpu.core_type = #tpu.core_type<tc>, window_params = [{transform_indices = @transform_0, window_bounds = array<i64: 32, 256>}, {transform_indices = @transform_1, window_bounds = array<i64: 256, 128>}, {transform_indices = @transform_2, window_bounds = array<i64: 256, 128>}, {transform_indices = @transform_3, window_bounds = array<i64: 256, 128>}, {transform_indices = @transform_4, window_bounds = array<i64: 256, 128>}, {transform_indices = @transform_5, window_bounds = array<i64: 1, 128>}, {transform_indices = @transform_6, window_bounds = array<i64: 1, 128>}, {transform_indices = @transform_7, window_bounds = array<i64: 32, 128>}, {transform_indices = @transform_8, window_bounds = array<i64: 32, 128>}]} {
    %c0_i32 = arith.constant 0 : i32
    %0 = arith.cmpi eq, %arg2, %c0_i32 : i32
    %1 = arith.extui %0 : i1 to i32
    %c0_i32_0 = arith.constant 0 : i32
    %2 = arith.cmpi ne, %1, %c0_i32_0 : i32
    scf.if %2 {
      %cst_37 = arith.constant 0.000000e+00 : f32
      %46 = vector.broadcast %cst_37 : f32 to vector<32x128xf32>
      %c0_38 = arith.constant 0 : index
      %c0_39 = arith.constant 0 : index
      %47 = vector.load %arg12[%c0_38, %c0_39] : memref<32x128xf32, #tpu.memory_space<vmem>>, vector<32x128xf32>
      tpu.vector_store %arg12[%c0_38, %c0_39], %46 {strides = array<i32>} : memref<32x128xf32, #tpu.memory_space<vmem>>, vector<32x128xf32>,
      %cst_40 = arith.constant 0.000000e+00 : f32
      %48 = vector.broadcast %cst_40 : f32 to vector<32x128xf32>
      %c0_41 = arith.constant 0 : index
      %c0_42 = arith.constant 0 : index
      %49 = vector.load %arg13[%c0_41, %c0_42] : memref<32x128xf32, #tpu.memory_space<vmem>>, vector<32x128xf32>
      tpu.vector_store %arg13[%c0_41, %c0_42], %48 {strides = array<i32>} : memref<32x128xf32, #tpu.memory_space<vmem>>, vector<32x128xf32>,
    } else {
    }
    %c0 = arith.constant 0 : index
    %c0_1 = arith.constant 0 : index
    %3 = vector.load %arg3[%c0, %c0_1] : memref<32x256xbf16, #tpu.memory_space<vmem>>, vector<32x256xbf16>
    %4 = arith.extf %3 : vector<32x256xbf16> to vector<32x256xf32>
    %cst = arith.constant 0.000000e+00 : f32
    %5 = vector.broadcast %cst : f32 to vector<32x256xf32>
    %6 = arith.cmpf ogt, %4, %5 : vector<32x256xf32>
    %7 = math.exp %4 : vector<32x256xf32>
    %cst_2 = arith.constant 1.000000e+00 : f32
    %8 = vector.broadcast %cst_2 : f32 to vector<32x256xf32>
    %9 = arith.subf %7, %8 : vector<32x256xf32>
    %10 = arith.select %6, %4, %9 : vector<32x256xi1>, vector<32x256xf32>
    %11 = arith.truncf %10 : vector<32x256xf32> to vector<32x256xbf16>
    %cst_3 = arith.constant 0.000000e+00 : f32
    %12 = vector.broadcast %cst_3 : f32 to vector<32x256xf32>
    %13 = arith.cmpf olt, %4, %12 : vector<32x256xf32>
    %cst_4 = arith.constant 0.000000e+00 : f32
    %14 = vector.broadcast %cst_4 : f32 to vector<32x256xf32>
    %15 = arith.subf %14, %4 : vector<32x256xf32>
    %cst_5 = arith.constant 0.000000e+00 : f32
    %16 = vector.broadcast %cst_5 : f32 to vector<32x256xf32>
    %17 = arith.subf %16, %4 : vector<32x256xf32>
    %18 = math.exp %17 : vector<32x256xf32>
    %cst_6 = arith.constant 1.000000e+00 : f32
    %19 = vector.broadcast %cst_6 : f32 to vector<32x256xf32>
    %20 = arith.subf %18, %19 : vector<32x256xf32>
    %21 = arith.select %13, %15, %20 : vector<32x256xi1>, vector<32x256xf32>
    %22 = arith.truncf %21 : vector<32x256xf32> to vector<32x256xbf16>
    %c0_7 = arith.constant 0 : index
    %c0_8 = arith.constant 0 : index
    %23 = vector.load %arg12[%c0_7, %c0_8] : memref<32x128xf32, #tpu.memory_space<vmem>>, vector<32x128xf32>
    %c0_9 = arith.constant 0 : index
    %c0_10 = arith.constant 0 : index
    %24 = vector.load %arg4[%c0_9, %c0_10] : memref<256x128xbf16, #tpu.memory_space<vmem>>, vector<256x128xbf16>
    %cst_11 = arith.constant dense<0.000000e+00> : vector<32x128xf32>
    %25 = tpu.matmul %11, %24, %cst_11 {dimension_numbers = #tpu.dot_dimension_numbers<[1], [0], [0], [1], [0, 0, 1, 1], [], []>} : vector<32x256xbf16>, vector<256x128xbf16>, vector<32x128xf32> -> vector<32x128xf32>
    %26 = arith.addf %23, %25 : vector<32x128xf32>
    %c0_12 = arith.constant 0 : index
    %c0_13 = arith.constant 0 : index
    %27 = vector.load %arg12[%c0_12, %c0_13] : memref<32x128xf32, #tpu.memory_space<vmem>>, vector<32x128xf32>
    tpu.vector_store %arg12[%c0_12, %c0_13], %26 {strides = array<i32>} : memref<32x128xf32, #tpu.memory_space<vmem>>, vector<32x128xf32>,
    %c0_14 = arith.constant 0 : index
    %c0_15 = arith.constant 0 : index
    %28 = vector.load %arg13[%c0_14, %c0_15] : memref<32x128xf32, #tpu.memory_space<vmem>>, vector<32x128xf32>
    %c0_16 = arith.constant 0 : index
    %c0_17 = arith.constant 0 : index
    %29 = vector.load %arg6[%c0_16, %c0_17] : memref<256x128xbf16, #tpu.memory_space<vmem>>, vector<256x128xbf16>
    %cst_18 = arith.constant dense<0.000000e+00> : vector<32x128xf32>
    %30 = tpu.matmul %11, %29, %cst_18 {dimension_numbers = #tpu.dot_dimension_numbers<[1], [0], [0], [1], [0, 0, 1, 1], [], []>} : vector<32x256xbf16>, vector<256x128xbf16>, vector<32x128xf32> -> vector<32x128xf32>
    %31 = arith.addf %28, %30 : vector<32x128xf32>
    %c0_19 = arith.constant 0 : index
    %c0_20 = arith.constant 0 : index
    %32 = vector.load %arg13[%c0_19, %c0_20] : memref<32x128xf32, #tpu.memory_space<vmem>>, vector<32x128xf32>
    tpu.vector_store %arg13[%c0_19, %c0_20], %31 {strides = array<i32>} : memref<32x128xf32, #tpu.memory_space<vmem>>, vector<32x128xf32>,
    %c0_21 = arith.constant 0 : index
    %c0_22 = arith.constant 0 : index
    %33 = vector.load %arg12[%c0_21, %c0_22] : memref<32x128xf32, #tpu.memory_space<vmem>>, vector<32x128xf32>
    %c0_23 = arith.constant 0 : index
    %c0_24 = arith.constant 0 : index
    %34 = vector.load %arg5[%c0_23, %c0_24] : memref<256x128xbf16, #tpu.memory_space<vmem>>, vector<256x128xbf16>
    %cst_25 = arith.constant dense<0.000000e+00> : vector<32x128xf32>
    %35 = tpu.matmul %22, %34, %cst_25 {dimension_numbers = #tpu.dot_dimension_numbers<[1], [0], [0], [1], [0, 0, 1, 1], [], []>} : vector<32x256xbf16>, vector<256x128xbf16>, vector<32x128xf32> -> vector<32x128xf32>
    %36 = arith.addf %33, %35 : vector<32x128xf32>
    %c0_26 = arith.constant 0 : index
    %c0_27 = arith.constant 0 : index
    %37 = vector.load %arg12[%c0_26, %c0_27] : memref<32x128xf32, #tpu.memory_space<vmem>>, vector<32x128xf32>
    tpu.vector_store %arg12[%c0_26, %c0_27], %36 {strides = array<i32>} : memref<32x128xf32, #tpu.memory_space<vmem>>, vector<32x128xf32>,
    %c0_28 = arith.constant 0 : index
    %c0_29 = arith.constant 0 : index
    %38 = vector.load %arg13[%c0_28, %c0_29] : memref<32x128xf32, #tpu.memory_space<vmem>>, vector<32x128xf32>
    %c0_30 = arith.constant 0 : index
    %c0_31 = arith.constant 0 : index
    %39 = vector.load %arg7[%c0_30, %c0_31] : memref<256x128xbf16, #tpu.memory_space<vmem>>, vector<256x128xbf16>
    %cst_32 = arith.constant dense<0.000000e+00> : vector<32x128xf32>
    %40 = tpu.matmul %22, %39, %cst_32 {dimension_numbers = #tpu.dot_dimension_numbers<[1], [0], [0], [1], [0, 0, 1, 1], [], []>} : vector<32x256xbf16>, vector<256x128xbf16>, vector<32x128xf32> -> vector<32x128xf32>
    %41 = arith.addf %38, %40 : vector<32x128xf32>
    %c0_33 = arith.constant 0 : index
    %c0_34 = arith.constant 0 : index
    %42 = vector.load %arg13[%c0_33, %c0_34] : memref<32x128xf32, #tpu.memory_space<vmem>>, vector<32x128xf32>
    tpu.vector_store %arg13[%c0_33, %c0_34], %41 {strides = array<i32>} : memref<32x128xf32, #tpu.memory_space<vmem>>, vector<32x128xf32>,
    %c0_i32_35 = arith.constant 0 : i32
    %43 = arith.cmpi eq, %arg2, %c0_i32_35 : i32
    %44 = arith.extui %43 : i1 to i32
    %c0_i32_36 = arith.constant 0 : i32
    %45 = arith.cmpi ne, %44, %c0_i32_36 : i32
    scf.if %45 {
      %c0_37 = arith.constant 0 : index
      %c0_38 = arith.constant 0 : index
      %46 = vector.load %arg12[%c0_37, %c0_38] : memref<32x128xf32, #tpu.memory_space<vmem>>, vector<32x128xf32>
      %c0_39 = arith.constant 0 : index
      %c0_40 = arith.constant 0 : index
      %47 = vector.load %arg8[%c0_39, %c0_40] : memref<1x128xf32, #tpu.memory_space<vmem>>, vector<1x128xf32>
      %48 = vector.broadcast %47 : vector<1x128xf32> to vector<32x128xf32>
      %49 = arith.addf %46, %48 : vector<32x128xf32>
      %c0_41 = arith.constant 0 : index
      %c0_42 = arith.constant 0 : index
      %50 = vector.load %arg13[%c0_41, %c0_42] : memref<32x128xf32, #tpu.memory_space<vmem>>, vector<32x128xf32>
      %c0_43 = arith.constant 0 : index
      %c0_44 = arith.constant 0 : index
      %51 = vector.load %arg9[%c0_43, %c0_44] : memref<1x128xf32, #tpu.memory_space<vmem>>, vector<1x128xf32>
      %52 = vector.broadcast %51 : vector<1x128xf32> to vector<32x128xf32>
      %53 = arith.addf %50, %52 : vector<32x128xf32>
      %cst_45 = arith.constant 0.000000e+00 : f32
      %54 = vector.broadcast %cst_45 : f32 to vector<32x128xf32>
      %55 = arith.subf %54, %53 : vector<32x128xf32>
      %56 = math.exp %55 : vector<32x128xf32>
      %cst_46 = arith.constant 1.000000e+00 : f32
      %57 = vector.broadcast %cst_46 : f32 to vector<32x128xf32>
      %58 = arith.addf %57, %56 : vector<32x128xf32>
      %59 = tpu.reciprocal %58 {approx = true} : vector<32x128xf32> -> vector<32x128xf32>
      %c0_47 = arith.constant 0 : index
      %c0_48 = arith.constant 0 : index
      %60 = vector.load %arg10[%c0_47, %c0_48] : memref<32x128xf32, #tpu.memory_space<vmem>>, vector<32x128xf32>
      %61 = arith.mulf %49, %59 : vector<32x128xf32>
      %62 = arith.addf %60, %61 : vector<32x128xf32>
      %c0_49 = arith.constant 0 : index
      %c0_50 = arith.constant 0 : index
      %63 = vector.load %arg11[%c0_49, %c0_50] : memref<32x128xf32, #tpu.memory_space<vmem>>, vector<32x128xf32>
      tpu.vector_store %arg11[%c0_49, %c0_50], %62 {strides = array<i32>} : memref<32x128xf32, #tpu.memory_space<vmem>>, vector<32x128xf32>,
    } else {
    }
    return
  }
  func.func @transform_0(%arg0: i32, %arg1: i32, %arg2: i32) -> (i32, i32) {
    %c0_i32 = arith.constant 0 : i32
    return %arg0, %arg2 : i32, i32
  }
  func.func @transform_1(%arg0: i32, %arg1: i32, %arg2: i32) -> (i32, i32) {
    %c0_i32 = arith.constant 0 : i32
    return %arg2, %arg1 : i32, i32
  }
  func.func @transform_2(%arg0: i32, %arg1: i32, %arg2: i32) -> (i32, i32) {
    %c0_i32 = arith.constant 0 : i32
    return %arg2, %arg1 : i32, i32
  }
  func.func @transform_3(%arg0: i32, %arg1: i32, %arg2: i32) -> (i32, i32) {
    %c0_i32 = arith.constant 0 : i32
    return %arg2, %arg1 : i32, i32
  }
  func.func @transform_4(%arg0: i32, %arg1: i32, %arg2: i32) -> (i32, i32) {
    %c0_i32 = arith.constant 0 : i32
    return %arg2, %arg1 : i32, i32
  }
  func.func @transform_5(%arg0: i32, %arg1: i32, %arg2: i32) -> (i32, i32) {
    %c0_i32 = arith.constant 0 : i32
    %c0_i32_0 = arith.constant 0 : i32
    return %c0_i32, %arg1 : i32, i32
  }
  func.func @transform_6(%arg0: i32, %arg1: i32, %arg2: i32) -> (i32, i32) {
    %c0_i32 = arith.constant 0 : i32
    %c0_i32_0 = arith.constant 0 : i32
    return %c0_i32, %arg1 : i32, i32
  }
  func.func @transform_7(%arg0: i32, %arg1: i32, %arg2: i32) -> (i32, i32) {
    %c0_i32 = arith.constant 0 : i32
    return %arg0, %arg1 : i32, i32
  }
  func.func @transform_8(%arg0: i32, %arg1: i32, %arg2: i32) -> (i32, i32) {
    %c0_i32 = arith.constant 0 : i32
    return %arg0, %arg1 : i32, i32
  }
}

module attributes {stable_mosaic.version = 11 : i64} {
  func.func @kernel(%arg0: i32, %arg1: i32, %arg2: i32, %arg3: memref<16x256xbf16, #tpu.memory_space<vmem>>, %arg4: memref<256x128xbf16, #tpu.memory_space<vmem>>, %arg5: memref<1x128xf32, #tpu.memory_space<vmem>>, %arg6: memref<16x128xf32, #tpu.memory_space<vmem>>, %arg7: memref<16x128xf32, #tpu.memory_space<vmem>>) attributes {dimension_semantics = [#tpu.dimension_semantics<parallel>, #tpu.dimension_semantics<parallel>, #tpu.dimension_semantics<arbitrary>], iteration_bounds = array<i64: 1, 1, 1>, scalar_prefetch = 0 : i64, scratch_operands = 1 : i64, tpu.core_type = #tpu.core_type<tc>, window_params = [{transform_indices = @transform_0, window_bounds = array<i64: 16, 256>}, {transform_indices = @transform_1, window_bounds = array<i64: 256, 128>}, {transform_indices = @transform_2, window_bounds = array<i64: 1, 128>}, {transform_indices = @transform_3, window_bounds = array<i64: 16, 128>}]} {
    %c0_i32 = arith.constant 0 : i32
    %0 = arith.cmpi eq, %arg2, %c0_i32 : i32
    %1 = arith.extui %0 : i1 to i32
    %c0_i32_0 = arith.constant 0 : i32
    %2 = arith.cmpi ne, %1, %c0_i32_0 : i32
    scf.if %2 {
      %cst_10 = arith.constant 0.000000e+00 : f32
      %12 = vector.broadcast %cst_10 : f32 to vector<16x128xf32>
      %c0_11 = arith.constant 0 : index
      %c0_12 = arith.constant 0 : index
      %13 = vector.load %arg7[%c0_11, %c0_12] : memref<16x128xf32, #tpu.memory_space<vmem>>, vector<16x128xf32>
      tpu.vector_store %arg7[%c0_11, %c0_12], %12 {strides = array<i32>} : memref<16x128xf32, #tpu.memory_space<vmem>>, vector<16x128xf32>,
    } else {
    }
    %c0 = arith.constant 0 : index
    %c0_1 = arith.constant 0 : index
    %3 = vector.load %arg3[%c0, %c0_1] : memref<16x256xbf16, #tpu.memory_space<vmem>>, vector<16x256xbf16>
    %c0_2 = arith.constant 0 : index
    %c0_3 = arith.constant 0 : index
    %4 = vector.load %arg7[%c0_2, %c0_3] : memref<16x128xf32, #tpu.memory_space<vmem>>, vector<16x128xf32>
    %c0_4 = arith.constant 0 : index
    %c0_5 = arith.constant 0 : index
    %5 = vector.load %arg4[%c0_4, %c0_5] : memref<256x128xbf16, #tpu.memory_space<vmem>>, vector<256x128xbf16>
    %cst = arith.constant dense<0.000000e+00> : vector<16x128xf32>
    %6 = tpu.matmul %3, %5, %cst {dimension_numbers = #tpu.dot_dimension_numbers<[1], [0], [0], [1], [0, 0, 1, 1], [], []>} : vector<16x256xbf16>, vector<256x128xbf16>, vector<16x128xf32> -> vector<16x128xf32>
    %7 = arith.addf %4, %6 : vector<16x128xf32>
    %c0_6 = arith.constant 0 : index
    %c0_7 = arith.constant 0 : index
    %8 = vector.load %arg7[%c0_6, %c0_7] : memref<16x128xf32, #tpu.memory_space<vmem>>, vector<16x128xf32>
    tpu.vector_store %arg7[%c0_6, %c0_7], %7 {strides = array<i32>} : memref<16x128xf32, #tpu.memory_space<vmem>>, vector<16x128xf32>,
    %c0_i32_8 = arith.constant 0 : i32
    %9 = arith.cmpi eq, %arg2, %c0_i32_8 : i32
    %10 = arith.extui %9 : i1 to i32
    %c0_i32_9 = arith.constant 0 : i32
    %11 = arith.cmpi ne, %10, %c0_i32_9 : i32
    scf.if %11 {
      %c0_10 = arith.constant 0 : index
      %c0_11 = arith.constant 0 : index
      %12 = vector.load %arg7[%c0_10, %c0_11] : memref<16x128xf32, #tpu.memory_space<vmem>>, vector<16x128xf32>
      %c0_12 = arith.constant 0 : index
      %c0_13 = arith.constant 0 : index
      %13 = vector.load %arg5[%c0_12, %c0_13] : memref<1x128xf32, #tpu.memory_space<vmem>>, vector<1x128xf32>
      %14 = vector.broadcast %13 : vector<1x128xf32> to vector<16x128xf32>
      %15 = arith.addf %12, %14 : vector<16x128xf32>
      %c0_14 = arith.constant 0 : index
      %c0_15 = arith.constant 0 : index
      %16 = vector.load %arg6[%c0_14, %c0_15] : memref<16x128xf32, #tpu.memory_space<vmem>>, vector<16x128xf32>
      tpu.vector_store %arg6[%c0_14, %c0_15], %15 {strides = array<i32>} : memref<16x128xf32, #tpu.memory_space<vmem>>, vector<16x128xf32>,
    } else {
    }
    return
  }
  func.func @transform_0(%arg0: i32, %arg1: i32, %arg2: i32) -> (i32, i32) {
    %c0_i32 = arith.constant 0 : i32
    return %arg0, %arg2 : i32, i32
  }
  func.func @transform_1(%arg0: i32, %arg1: i32, %arg2: i32) -> (i32, i32) {
    %c0_i32 = arith.constant 0 : i32
    return %arg2, %arg1 : i32, i32
  }
  func.func @transform_2(%arg0: i32, %arg1: i32, %arg2: i32) -> (i32, i32) {
    %c0_i32 = arith.constant 0 : i32
    %c0_i32_0 = arith.constant 0 : i32
    return %c0_i32, %arg1 : i32, i32
  }
  func.func @transform_3(%arg0: i32, %arg1: i32, %arg2: i32) -> (i32, i32) {
    %c0_i32 = arith.constant 0 : i32
    return %arg0, %arg1 : i32, i32
  }
}

module attributes {stable_mosaic.version = 11 : i64} {
  func.func @kernel(%arg0: i32, %arg1: i32, %arg2: i32, %arg3: memref<16x256xbf16, #tpu.memory_space<vmem>>, %arg4: memref<256x128xbf16, #tpu.memory_space<vmem>>, %arg5: memref<256x128xbf16, #tpu.memory_space<vmem>>, %arg6: memref<1x128xf32, #tpu.memory_space<vmem>>, %arg7: memref<16x128xf32, #tpu.memory_space<vmem>>, %arg8: memref<16x128xf32, #tpu.memory_space<vmem>>) attributes {dimension_semantics = [#tpu.dimension_semantics<parallel>, #tpu.dimension_semantics<parallel>, #tpu.dimension_semantics<arbitrary>], iteration_bounds = array<i64: 1, 1, 1>, scalar_prefetch = 0 : i64, scratch_operands = 1 : i64, tpu.core_type = #tpu.core_type<tc>, window_params = [{transform_indices = @transform_0, window_bounds = array<i64: 16, 256>}, {transform_indices = @transform_1, window_bounds = array<i64: 256, 128>}, {transform_indices = @transform_2, window_bounds = array<i64: 256, 128>}, {transform_indices = @transform_3, window_bounds = array<i64: 1, 128>}, {transform_indices = @transform_4, window_bounds = array<i64: 16, 128>}]} {
    %c0_i32 = arith.constant 0 : i32
    %0 = arith.cmpi eq, %arg2, %c0_i32 : i32
    %1 = arith.extui %0 : i1 to i32
    %c0_i32_0 = arith.constant 0 : i32
    %2 = arith.cmpi ne, %1, %c0_i32_0 : i32
    scf.if %2 {
      %cst_23 = arith.constant 0.000000e+00 : f32
      %36 = vector.broadcast %cst_23 : f32 to vector<16x128xf32>
      %c0_24 = arith.constant 0 : index
      %c0_25 = arith.constant 0 : index
      %37 = vector.load %arg8[%c0_24, %c0_25] : memref<16x128xf32, #tpu.memory_space<vmem>>, vector<16x128xf32>
      tpu.vector_store %arg8[%c0_24, %c0_25], %36 {strides = array<i32>} : memref<16x128xf32, #tpu.memory_space<vmem>>, vector<16x128xf32>,
    } else {
    }
    %c0 = arith.constant 0 : index
    %c0_1 = arith.constant 0 : index
    %3 = vector.load %arg3[%c0, %c0_1] : memref<16x256xbf16, #tpu.memory_space<vmem>>, vector<16x256xbf16>
    %4 = arith.extf %3 : vector<16x256xbf16> to vector<16x256xf32>
    %cst = arith.constant 0.000000e+00 : f32
    %5 = vector.broadcast %cst : f32 to vector<16x256xf32>
    %6 = arith.cmpf ogt, %4, %5 : vector<16x256xf32>
    %7 = math.exp %4 : vector<16x256xf32>
    %cst_2 = arith.constant 1.000000e+00 : f32
    %8 = vector.broadcast %cst_2 : f32 to vector<16x256xf32>
    %9 = arith.subf %7, %8 : vector<16x256xf32>
    %10 = arith.select %6, %4, %9 : vector<16x256xi1>, vector<16x256xf32>
    %11 = arith.truncf %10 : vector<16x256xf32> to vector<16x256xbf16>
    %cst_3 = arith.constant 0.000000e+00 : f32
    %12 = vector.broadcast %cst_3 : f32 to vector<16x256xf32>
    %13 = arith.cmpf olt, %4, %12 : vector<16x256xf32>
    %cst_4 = arith.constant 0.000000e+00 : f32
    %14 = vector.broadcast %cst_4 : f32 to vector<16x256xf32>
    %15 = arith.subf %14, %4 : vector<16x256xf32>
    %cst_5 = arith.constant 0.000000e+00 : f32
    %16 = vector.broadcast %cst_5 : f32 to vector<16x256xf32>
    %17 = arith.subf %16, %4 : vector<16x256xf32>
    %18 = math.exp %17 : vector<16x256xf32>
    %cst_6 = arith.constant 1.000000e+00 : f32
    %19 = vector.broadcast %cst_6 : f32 to vector<16x256xf32>
    %20 = arith.subf %18, %19 : vector<16x256xf32>
    %21 = arith.select %13, %15, %20 : vector<16x256xi1>, vector<16x256xf32>
    %22 = arith.truncf %21 : vector<16x256xf32> to vector<16x256xbf16>
    %c0_7 = arith.constant 0 : index
    %c0_8 = arith.constant 0 : index
    %23 = vector.load %arg8[%c0_7, %c0_8] : memref<16x128xf32, #tpu.memory_space<vmem>>, vector<16x128xf32>
    %c0_9 = arith.constant 0 : index
    %c0_10 = arith.constant 0 : index
    %24 = vector.load %arg4[%c0_9, %c0_10] : memref<256x128xbf16, #tpu.memory_space<vmem>>, vector<256x128xbf16>
    %cst_11 = arith.constant dense<0.000000e+00> : vector<16x128xf32>
    %25 = tpu.matmul %11, %24, %cst_11 {dimension_numbers = #tpu.dot_dimension_numbers<[1], [0], [0], [1], [0, 0, 1, 1], [], []>} : vector<16x256xbf16>, vector<256x128xbf16>, vector<16x128xf32> -> vector<16x128xf32>
    %26 = arith.addf %23, %25 : vector<16x128xf32>
    %c0_12 = arith.constant 0 : index
    %c0_13 = arith.constant 0 : index
    %27 = vector.load %arg8[%c0_12, %c0_13] : memref<16x128xf32, #tpu.memory_space<vmem>>, vector<16x128xf32>
    tpu.vector_store %arg8[%c0_12, %c0_13], %26 {strides = array<i32>} : memref<16x128xf32, #tpu.memory_space<vmem>>, vector<16x128xf32>,
    %c0_14 = arith.constant 0 : index
    %c0_15 = arith.constant 0 : index
    %28 = vector.load %arg8[%c0_14, %c0_15] : memref<16x128xf32, #tpu.memory_space<vmem>>, vector<16x128xf32>
    %c0_16 = arith.constant 0 : index
    %c0_17 = arith.constant 0 : index
    %29 = vector.load %arg5[%c0_16, %c0_17] : memref<256x128xbf16, #tpu.memory_space<vmem>>, vector<256x128xbf16>
    %cst_18 = arith.constant dense<0.000000e+00> : vector<16x128xf32>
    %30 = tpu.matmul %22, %29, %cst_18 {dimension_numbers = #tpu.dot_dimension_numbers<[1], [0], [0], [1], [0, 0, 1, 1], [], []>} : vector<16x256xbf16>, vector<256x128xbf16>, vector<16x128xf32> -> vector<16x128xf32>
    %31 = arith.addf %28, %30 : vector<16x128xf32>
    %c0_19 = arith.constant 0 : index
    %c0_20 = arith.constant 0 : index
    %32 = vector.load %arg8[%c0_19, %c0_20] : memref<16x128xf32, #tpu.memory_space<vmem>>, vector<16x128xf32>
    tpu.vector_store %arg8[%c0_19, %c0_20], %31 {strides = array<i32>} : memref<16x128xf32, #tpu.memory_space<vmem>>, vector<16x128xf32>,
    %c0_i32_21 = arith.constant 0 : i32
    %33 = arith.cmpi eq, %arg2, %c0_i32_21 : i32
    %34 = arith.extui %33 : i1 to i32
    %c0_i32_22 = arith.constant 0 : i32
    %35 = arith.cmpi ne, %34, %c0_i32_22 : i32
    scf.if %35 {
      %c0_23 = arith.constant 0 : index
      %c0_24 = arith.constant 0 : index
      %36 = vector.load %arg8[%c0_23, %c0_24] : memref<16x128xf32, #tpu.memory_space<vmem>>, vector<16x128xf32>
      %c0_25 = arith.constant 0 : index
      %c0_26 = arith.constant 0 : index
      %37 = vector.load %arg6[%c0_25, %c0_26] : memref<1x128xf32, #tpu.memory_space<vmem>>, vector<1x128xf32>
      %38 = vector.broadcast %37 : vector<1x128xf32> to vector<16x128xf32>
      %39 = arith.addf %36, %38 : vector<16x128xf32>
      %c0_27 = arith.constant 0 : index
      %c0_28 = arith.constant 0 : index
      %40 = vector.load %arg7[%c0_27, %c0_28] : memref<16x128xf32, #tpu.memory_space<vmem>>, vector<16x128xf32>
      tpu.vector_store %arg7[%c0_27, %c0_28], %39 {strides = array<i32>} : memref<16x128xf32, #tpu.memory_space<vmem>>, vector<16x128xf32>,
    } else {
    }
    return
  }
  func.func @transform_0(%arg0: i32, %arg1: i32, %arg2: i32) -> (i32, i32) {
    %c0_i32 = arith.constant 0 : i32
    return %arg0, %arg2 : i32, i32
  }
  func.func @transform_1(%arg0: i32, %arg1: i32, %arg2: i32) -> (i32, i32) {
    %c0_i32 = arith.constant 0 : i32
    return %arg2, %arg1 : i32, i32
  }
  func.func @transform_2(%arg0: i32, %arg1: i32, %arg2: i32) -> (i32, i32) {
    %c0_i32 = arith.constant 0 : i32
    return %arg2, %arg1 : i32, i32
  }
  func.func @transform_3(%arg0: i32, %arg1: i32, %arg2: i32) -> (i32, i32) {
    %c0_i32 = arith.constant 0 : i32
    %c0_i32_0 = arith.constant 0 : i32
    return %c0_i32, %arg1 : i32, i32
  }
  func.func @transform_4(%arg0: i32, %arg1: i32, %arg2: i32) -> (i32, i32) {
    %c0_i32 = arith.constant 0 : i32
    return %arg0, %arg1 : i32, i32
  }
}

module attributes {stable_mosaic.version = 11 : i64} {
  func.func @kernel(%arg0: i32, %arg1: i32, %arg2: i32, %arg3: memref<16x256xbf16, #tpu.memory_space<vmem>>, %arg4: memref<256x128xbf16, #tpu.memory_space<vmem>>, %arg5: memref<256x128xbf16, #tpu.memory_space<vmem>>, %arg6: memref<256x128xbf16, #tpu.memory_space<vmem>>, %arg7: memref<256x128xbf16, #tpu.memory_space<vmem>>, %arg8: memref<1x128xf32, #tpu.memory_space<vmem>>, %arg9: memref<1x128xf32, #tpu.memory_space<vmem>>, %arg10: memref<16x128xf32, #tpu.memory_space<vmem>>, %arg11: memref<16x128xf32, #tpu.memory_space<vmem>>, %arg12: memref<16x128xf32, #tpu.memory_space<vmem>>, %arg13: memref<16x128xf32, #tpu.memory_space<vmem>>) attributes {dimension_semantics = [#tpu.dimension_semantics<parallel>, #tpu.dimension_semantics<parallel>, #tpu.dimension_semantics<arbitrary>], iteration_bounds = array<i64: 1, 1, 1>, scalar_prefetch = 0 : i64, scratch_operands = 2 : i64, tpu.core_type = #tpu.core_type<tc>, window_params = [{transform_indices = @transform_0, window_bounds = array<i64: 16, 256>}, {transform_indices = @transform_1, window_bounds = array<i64: 256, 128>}, {transform_indices = @transform_2, window_bounds = array<i64: 256, 128>}, {transform_indices = @transform_3, window_bounds = array<i64: 256, 128>}, {transform_indices = @transform_4, window_bounds = array<i64: 256, 128>}, {transform_indices = @transform_5, window_bounds = array<i64: 1, 128>}, {transform_indices = @transform_6, window_bounds = array<i64: 1, 128>}, {transform_indices = @transform_7, window_bounds = array<i64: 16, 128>}, {transform_indices = @transform_8, window_bounds = array<i64: 16, 128>}]} {
    %c0_i32 = arith.constant 0 : i32
    %0 = arith.cmpi eq, %arg2, %c0_i32 : i32
    %1 = arith.extui %0 : i1 to i32
    %c0_i32_0 = arith.constant 0 : i32
    %2 = arith.cmpi ne, %1, %c0_i32_0 : i32
    scf.if %2 {
      %cst_37 = arith.constant 0.000000e+00 : f32
      %46 = vector.broadcast %cst_37 : f32 to vector<16x128xf32>
      %c0_38 = arith.constant 0 : index
      %c0_39 = arith.constant 0 : index
      %47 = vector.load %arg12[%c0_38, %c0_39] : memref<16x128xf32, #tpu.memory_space<vmem>>, vector<16x128xf32>
      tpu.vector_store %arg12[%c0_38, %c0_39], %46 {strides = array<i32>} : memref<16x128xf32, #tpu.memory_space<vmem>>, vector<16x128xf32>,
      %cst_40 = arith.constant 0.000000e+00 : f32
      %48 = vector.broadcast %cst_40 : f32 to vector<16x128xf32>
      %c0_41 = arith.constant 0 : index
      %c0_42 = arith.constant 0 : index
      %49 = vector.load %arg13[%c0_41, %c0_42] : memref<16x128xf32, #tpu.memory_space<vmem>>, vector<16x128xf32>
      tpu.vector_store %arg13[%c0_41, %c0_42], %48 {strides = array<i32>} : memref<16x128xf32, #tpu.memory_space<vmem>>, vector<16x128xf32>,
    } else {
    }
    %c0 = arith.constant 0 : index
    %c0_1 = arith.constant 0 : index
    %3 = vector.load %arg3[%c0, %c0_1] : memref<16x256xbf16, #tpu.memory_space<vmem>>, vector<16x256xbf16>
    %4 = arith.extf %3 : vector<16x256xbf16> to vector<16x256xf32>
    %cst = arith.constant 0.000000e+00 : f32
    %5 = vector.broadcast %cst : f32 to vector<16x256xf32>
    %6 = arith.cmpf ogt, %4, %5 : vector<16x256xf32>
    %7 = math.exp %4 : vector<16x256xf32>
    %cst_2 = arith.constant 1.000000e+00 : f32
    %8 = vector.broadcast %cst_2 : f32 to vector<16x256xf32>
    %9 = arith.subf %7, %8 : vector<16x256xf32>
    %10 = arith.select %6, %4, %9 : vector<16x256xi1>, vector<16x256xf32>
    %11 = arith.truncf %10 : vector<16x256xf32> to vector<16x256xbf16>
    %cst_3 = arith.constant 0.000000e+00 : f32
    %12 = vector.broadcast %cst_3 : f32 to vector<16x256xf32>
    %13 = arith.cmpf olt, %4, %12 : vector<16x256xf32>
    %cst_4 = arith.constant 0.000000e+00 : f32
    %14 = vector.broadcast %cst_4 : f32 to vector<16x256xf32>
    %15 = arith.subf %14, %4 : vector<16x256xf32>
    %cst_5 = arith.constant 0.000000e+00 : f32
    %16 = vector.broadcast %cst_5 : f32 to vector<16x256xf32>
    %17 = arith.subf %16, %4 : vector<16x256xf32>
    %18 = math.exp %17 : vector<16x256xf32>
    %cst_6 = arith.constant 1.000000e+00 : f32
    %19 = vector.broadcast %cst_6 : f32 to vector<16x256xf32>
    %20 = arith.subf %18, %19 : vector<16x256xf32>
    %21 = arith.select %13, %15, %20 : vector<16x256xi1>, vector<16x256xf32>
    %22 = arith.truncf %21 : vector<16x256xf32> to vector<16x256xbf16>
    %c0_7 = arith.constant 0 : index
    %c0_8 = arith.constant 0 : index
    %23 = vector.load %arg12[%c0_7, %c0_8] : memref<16x128xf32, #tpu.memory_space<vmem>>, vector<16x128xf32>
    %c0_9 = arith.constant 0 : index
    %c0_10 = arith.constant 0 : index
    %24 = vector.load %arg4[%c0_9, %c0_10] : memref<256x128xbf16, #tpu.memory_space<vmem>>, vector<256x128xbf16>
    %cst_11 = arith.constant dense<0.000000e+00> : vector<16x128xf32>
    %25 = tpu.matmul %11, %24, %cst_11 {dimension_numbers = #tpu.dot_dimension_numbers<[1], [0], [0], [1], [0, 0, 1, 1], [], []>} : vector<16x256xbf16>, vector<256x128xbf16>, vector<16x128xf32> -> vector<16x128xf32>
    %26 = arith.addf %23, %25 : vector<16x128xf32>
    %c0_12 = arith.constant 0 : index
    %c0_13 = arith.constant 0 : index
    %27 = vector.load %arg12[%c0_12, %c0_13] : memref<16x128xf32, #tpu.memory_space<vmem>>, vector<16x128xf32>
    tpu.vector_store %arg12[%c0_12, %c0_13], %26 {strides = array<i32>} : memref<16x128xf32, #tpu.memory_space<vmem>>, vector<16x128xf32>,
    %c0_14 = arith.constant 0 : index
    %c0_15 = arith.constant 0 : index
    %28 = vector.load %arg13[%c0_14, %c0_15] : memref<16x128xf32, #tpu.memory_space<vmem>>, vector<16x128xf32>
    %c0_16 = arith.constant 0 : index
    %c0_17 = arith.constant 0 : index
    %29 = vector.load %arg6[%c0_16, %c0_17] : memref<256x128xbf16, #tpu.memory_space<vmem>>, vector<256x128xbf16>
    %cst_18 = arith.constant dense<0.000000e+00> : vector<16x128xf32>
    %30 = tpu.matmul %11, %29, %cst_18 {dimension_numbers = #tpu.dot_dimension_numbers<[1], [0], [0], [1], [0, 0, 1, 1], [], []>} : vector<16x256xbf16>, vector<256x128xbf16>, vector<16x128xf32> -> vector<16x128xf32>
    %31 = arith.addf %28, %30 : vector<16x128xf32>
    %c0_19 = arith.constant 0 : index
    %c0_20 = arith.constant 0 : index
    %32 = vector.load %arg13[%c0_19, %c0_20] : memref<16x128xf32, #tpu.memory_space<vmem>>, vector<16x128xf32>
    tpu.vector_store %arg13[%c0_19, %c0_20], %31 {strides = array<i32>} : memref<16x128xf32, #tpu.memory_space<vmem>>, vector<16x128xf32>,
    %c0_21 = arith.constant 0 : index
    %c0_22 = arith.constant 0 : index
    %33 = vector.load %arg12[%c0_21, %c0_22] : memref<16x128xf32, #tpu.memory_space<vmem>>, vector<16x128xf32>
    %c0_23 = arith.constant 0 : index
    %c0_24 = arith.constant 0 : index
    %34 = vector.load %arg5[%c0_23, %c0_24] : memref<256x128xbf16, #tpu.memory_space<vmem>>, vector<256x128xbf16>
    %cst_25 = arith.constant dense<0.000000e+00> : vector<16x128xf32>
    %35 = tpu.matmul %22, %34, %cst_25 {dimension_numbers = #tpu.dot_dimension_numbers<[1], [0], [0], [1], [0, 0, 1, 1], [], []>} : vector<16x256xbf16>, vector<256x128xbf16>, vector<16x128xf32> -> vector<16x128xf32>
    %36 = arith.addf %33, %35 : vector<16x128xf32>
    %c0_26 = arith.constant 0 : index
    %c0_27 = arith.constant 0 : index
    %37 = vector.load %arg12[%c0_26, %c0_27] : memref<16x128xf32, #tpu.memory_space<vmem>>, vector<16x128xf32>
    tpu.vector_store %arg12[%c0_26, %c0_27], %36 {strides = array<i32>} : memref<16x128xf32, #tpu.memory_space<vmem>>, vector<16x128xf32>,
    %c0_28 = arith.constant 0 : index
    %c0_29 = arith.constant 0 : index
    %38 = vector.load %arg13[%c0_28, %c0_29] : memref<16x128xf32, #tpu.memory_space<vmem>>, vector<16x128xf32>
    %c0_30 = arith.constant 0 : index
    %c0_31 = arith.constant 0 : index
    %39 = vector.load %arg7[%c0_30, %c0_31] : memref<256x128xbf16, #tpu.memory_space<vmem>>, vector<256x128xbf16>
    %cst_32 = arith.constant dense<0.000000e+00> : vector<16x128xf32>
    %40 = tpu.matmul %22, %39, %cst_32 {dimension_numbers = #tpu.dot_dimension_numbers<[1], [0], [0], [1], [0, 0, 1, 1], [], []>} : vector<16x256xbf16>, vector<256x128xbf16>, vector<16x128xf32> -> vector<16x128xf32>
    %41 = arith.addf %38, %40 : vector<16x128xf32>
    %c0_33 = arith.constant 0 : index
    %c0_34 = arith.constant 0 : index
    %42 = vector.load %arg13[%c0_33, %c0_34] : memref<16x128xf32, #tpu.memory_space<vmem>>, vector<16x128xf32>
    tpu.vector_store %arg13[%c0_33, %c0_34], %41 {strides = array<i32>} : memref<16x128xf32, #tpu.memory_space<vmem>>, vector<16x128xf32>,
    %c0_i32_35 = arith.constant 0 : i32
    %43 = arith.cmpi eq, %arg2, %c0_i32_35 : i32
    %44 = arith.extui %43 : i1 to i32
    %c0_i32_36 = arith.constant 0 : i32
    %45 = arith.cmpi ne, %44, %c0_i32_36 : i32
    scf.if %45 {
      %c0_37 = arith.constant 0 : index
      %c0_38 = arith.constant 0 : index
      %46 = vector.load %arg12[%c0_37, %c0_38] : memref<16x128xf32, #tpu.memory_space<vmem>>, vector<16x128xf32>
      %c0_39 = arith.constant 0 : index
      %c0_40 = arith.constant 0 : index
      %47 = vector.load %arg8[%c0_39, %c0_40] : memref<1x128xf32, #tpu.memory_space<vmem>>, vector<1x128xf32>
      %48 = vector.broadcast %47 : vector<1x128xf32> to vector<16x128xf32>
      %49 = arith.addf %46, %48 : vector<16x128xf32>
      %c0_41 = arith.constant 0 : index
      %c0_42 = arith.constant 0 : index
      %50 = vector.load %arg13[%c0_41, %c0_42] : memref<16x128xf32, #tpu.memory_space<vmem>>, vector<16x128xf32>
      %c0_43 = arith.constant 0 : index
      %c0_44 = arith.constant 0 : index
      %51 = vector.load %arg9[%c0_43, %c0_44] : memref<1x128xf32, #tpu.memory_space<vmem>>, vector<1x128xf32>
      %52 = vector.broadcast %51 : vector<1x128xf32> to vector<16x128xf32>
      %53 = arith.addf %50, %52 : vector<16x128xf32>
      %cst_45 = arith.constant 0.000000e+00 : f32
      %54 = vector.broadcast %cst_45 : f32 to vector<16x128xf32>
      %55 = arith.subf %54, %53 : vector<16x128xf32>
      %56 = math.exp %55 : vector<16x128xf32>
      %cst_46 = arith.constant 1.000000e+00 : f32
      %57 = vector.broadcast %cst_46 : f32 to vector<16x128xf32>
      %58 = arith.addf %57, %56 : vector<16x128xf32>
      %59 = tpu.reciprocal %58 {approx = true} : vector<16x128xf32> -> vector<16x128xf32>
      %c0_47 = arith.constant 0 : index
      %c0_48 = arith.constant 0 : index
      %60 = vector.load %arg10[%c0_47, %c0_48] : memref<16x128xf32, #tpu.memory_space<vmem>>, vector<16x128xf32>
      %61 = arith.mulf %49, %59 : vector<16x128xf32>
      %62 = arith.addf %60, %61 : vector<16x128xf32>
      %c0_49 = arith.constant 0 : index
      %c0_50 = arith.constant 0 : index
      %63 = vector.load %arg11[%c0_49, %c0_50] : memref<16x128xf32, #tpu.memory_space<vmem>>, vector<16x128xf32>
      tpu.vector_store %arg11[%c0_49, %c0_50], %62 {strides = array<i32>} : memref<16x128xf32, #tpu.memory_space<vmem>>, vector<16x128xf32>,
    } else {
    }
    return
  }
  func.func @transform_0(%arg0: i32, %arg1: i32, %arg2: i32) -> (i32, i32) {
    %c0_i32 = arith.constant 0 : i32
    return %arg0, %arg2 : i32, i32
  }
  func.func @transform_1(%arg0: i32, %arg1: i32, %arg2: i32) -> (i32, i32) {
    %c0_i32 = arith.constant 0 : i32
    return %arg2, %arg1 : i32, i32
  }
  func.func @transform_2(%arg0: i32, %arg1: i32, %arg2: i32) -> (i32, i32) {
    %c0_i32 = arith.constant 0 : i32
    return %arg2, %arg1 : i32, i32
  }
  func.func @transform_3(%arg0: i32, %arg1: i32, %arg2: i32) -> (i32, i32) {
    %c0_i32 = arith.constant 0 : i32
    return %arg2, %arg1 : i32, i32
  }
  func.func @transform_4(%arg0: i32, %arg1: i32, %arg2: i32) -> (i32, i32) {
    %c0_i32 = arith.constant 0 : i32
    return %arg2, %arg1 : i32, i32
  }
  func.func @transform_5(%arg0: i32, %arg1: i32, %arg2: i32) -> (i32, i32) {
    %c0_i32 = arith.constant 0 : i32
    %c0_i32_0 = arith.constant 0 : i32
    return %c0_i32, %arg1 : i32, i32
  }
  func.func @transform_6(%arg0: i32, %arg1: i32, %arg2: i32) -> (i32, i32) {
    %c0_i32 = arith.constant 0 : i32
    %c0_i32_0 = arith.constant 0 : i32
    return %c0_i32, %arg1 : i32, i32
  }
  func.func @transform_7(%arg0: i32, %arg1: i32, %arg2: i32) -> (i32, i32) {
    %c0_i32 = arith.constant 0 : i32
    return %arg0, %arg1 : i32, i32
  }
  func.func @transform_8(%arg0: i32, %arg1: i32, %arg2: i32) -> (i32, i32) {
    %c0_i32 = arith.constant 0 : i32
    return %arg0, %arg1 : i32, i32
  }
}

module attributes {stable_mosaic.version = 11 : i64} {
  func.func @kernel(%arg0: i32, %arg1: i32, %arg2: i32, %arg3: memref<48x256xbf16, #tpu.memory_space<vmem>>, %arg4: memref<256x128xbf16, #tpu.memory_space<vmem>>, %arg5: memref<1x128xf32, #tpu.memory_space<vmem>>, %arg6: memref<48x128xf32, #tpu.memory_space<vmem>>, %arg7: memref<48x128xf32, #tpu.memory_space<vmem>>) attributes {dimension_semantics = [#tpu.dimension_semantics<parallel>, #tpu.dimension_semantics<parallel>, #tpu.dimension_semantics<arbitrary>], iteration_bounds = array<i64: 1, 1, 1>, scalar_prefetch = 0 : i64, scratch_operands = 1 : i64, tpu.core_type = #tpu.core_type<tc>, window_params = [{transform_indices = @transform_0, window_bounds = array<i64: 48, 256>}, {transform_indices = @transform_1, window_bounds = array<i64: 256, 128>}, {transform_indices = @transform_2, window_bounds = array<i64: 1, 128>}, {transform_indices = @transform_3, window_bounds = array<i64: 48, 128>}]} {
    %c0_i32 = arith.constant 0 : i32
    %0 = arith.cmpi eq, %arg2, %c0_i32 : i32
    %1 = arith.extui %0 : i1 to i32
    %c0_i32_0 = arith.constant 0 : i32
    %2 = arith.cmpi ne, %1, %c0_i32_0 : i32
    scf.if %2 {
      %cst_10 = arith.constant 0.000000e+00 : f32
      %12 = vector.broadcast %cst_10 : f32 to vector<48x128xf32>
      %c0_11 = arith.constant 0 : index
      %c0_12 = arith.constant 0 : index
      %13 = vector.load %arg7[%c0_11, %c0_12] : memref<48x128xf32, #tpu.memory_space<vmem>>, vector<48x128xf32>
      tpu.vector_store %arg7[%c0_11, %c0_12], %12 {strides = array<i32>} : memref<48x128xf32, #tpu.memory_space<vmem>>, vector<48x128xf32>,
    } else {
    }
    %c0 = arith.constant 0 : index
    %c0_1 = arith.constant 0 : index
    %3 = vector.load %arg3[%c0, %c0_1] : memref<48x256xbf16, #tpu.memory_space<vmem>>, vector<48x256xbf16>
    %c0_2 = arith.constant 0 : index
    %c0_3 = arith.constant 0 : index
    %4 = vector.load %arg7[%c0_2, %c0_3] : memref<48x128xf32, #tpu.memory_space<vmem>>, vector<48x128xf32>
    %c0_4 = arith.constant 0 : index
    %c0_5 = arith.constant 0 : index
    %5 = vector.load %arg4[%c0_4, %c0_5] : memref<256x128xbf16, #tpu.memory_space<vmem>>, vector<256x128xbf16>
    %cst = arith.constant dense<0.000000e+00> : vector<48x128xf32>
    %6 = tpu.matmul %3, %5, %cst {dimension_numbers = #tpu.dot_dimension_numbers<[1], [0], [0], [1], [0, 0, 1, 1], [], []>} : vector<48x256xbf16>, vector<256x128xbf16>, vector<48x128xf32> -> vector<48x128xf32>
    %7 = arith.addf %4, %6 : vector<48x128xf32>
    %c0_6 = arith.constant 0 : index
    %c0_7 = arith.constant 0 : index
    %8 = vector.load %arg7[%c0_6, %c0_7] : memref<48x128xf32, #tpu.memory_space<vmem>>, vector<48x128xf32>
    tpu.vector_store %arg7[%c0_6, %c0_7], %7 {strides = array<i32>} : memref<48x128xf32, #tpu.memory_space<vmem>>, vector<48x128xf32>,
    %c0_i32_8 = arith.constant 0 : i32
    %9 = arith.cmpi eq, %arg2, %c0_i32_8 : i32
    %10 = arith.extui %9 : i1 to i32
    %c0_i32_9 = arith.constant 0 : i32
    %11 = arith.cmpi ne, %10, %c0_i32_9 : i32
    scf.if %11 {
      %c0_10 = arith.constant 0 : index
      %c0_11 = arith.constant 0 : index
      %12 = vector.load %arg7[%c0_10, %c0_11] : memref<48x128xf32, #tpu.memory_space<vmem>>, vector<48x128xf32>
      %c0_12 = arith.constant 0 : index
      %c0_13 = arith.constant 0 : index
      %13 = vector.load %arg5[%c0_12, %c0_13] : memref<1x128xf32, #tpu.memory_space<vmem>>, vector<1x128xf32>
      %14 = vector.broadcast %13 : vector<1x128xf32> to vector<48x128xf32>
      %15 = arith.addf %12, %14 : vector<48x128xf32>
      %c0_14 = arith.constant 0 : index
      %c0_15 = arith.constant 0 : index
      %16 = vector.load %arg6[%c0_14, %c0_15] : memref<48x128xf32, #tpu.memory_space<vmem>>, vector<48x128xf32>
      tpu.vector_store %arg6[%c0_14, %c0_15], %15 {strides = array<i32>} : memref<48x128xf32, #tpu.memory_space<vmem>>, vector<48x128xf32>,
    } else {
    }
    return
  }
  func.func @transform_0(%arg0: i32, %arg1: i32, %arg2: i32) -> (i32, i32) {
    %c0_i32 = arith.constant 0 : i32
    return %arg0, %arg2 : i32, i32
  }
  func.func @transform_1(%arg0: i32, %arg1: i32, %arg2: i32) -> (i32, i32) {
    %c0_i32 = arith.constant 0 : i32
    return %arg2, %arg1 : i32, i32
  }
  func.func @transform_2(%arg0: i32, %arg1: i32, %arg2: i32) -> (i32, i32) {
    %c0_i32 = arith.constant 0 : i32
    %c0_i32_0 = arith.constant 0 : i32
    return %c0_i32, %arg1 : i32, i32
  }
  func.func @transform_3(%arg0: i32, %arg1: i32, %arg2: i32) -> (i32, i32) {
    %c0_i32 = arith.constant 0 : i32
    return %arg0, %arg1 : i32, i32
  }
}

module attributes {stable_mosaic.version = 11 : i64} {
  func.func @kernel(%arg0: i32, %arg1: i32, %arg2: i32, %arg3: memref<32x128xbf16, #tpu.memory_space<vmem>>, %arg4: memref<128x128xbf16, #tpu.memory_space<vmem>>, %arg5: memref<128x128xbf16, #tpu.memory_space<vmem>>, %arg6: memref<128x128xbf16, #tpu.memory_space<vmem>>, %arg7: memref<128x128xbf16, #tpu.memory_space<vmem>>, %arg8: memref<1x128xf32, #tpu.memory_space<vmem>>, %arg9: memref<1x128xf32, #tpu.memory_space<vmem>>, %arg10: memref<32x128xf32, #tpu.memory_space<vmem>>, %arg11: memref<32x128xf32, #tpu.memory_space<vmem>>, %arg12: memref<32x128xf32, #tpu.memory_space<vmem>>, %arg13: memref<32x128xf32, #tpu.memory_space<vmem>>) attributes {dimension_semantics = [#tpu.dimension_semantics<parallel>, #tpu.dimension_semantics<parallel>, #tpu.dimension_semantics<arbitrary>], iteration_bounds = array<i64: 1, 1, 1>, scalar_prefetch = 0 : i64, scratch_operands = 2 : i64, tpu.core_type = #tpu.core_type<tc>, window_params = [{transform_indices = @transform_0, window_bounds = array<i64: 32, 128>}, {transform_indices = @transform_1, window_bounds = array<i64: 128, 128>}, {transform_indices = @transform_2, window_bounds = array<i64: 128, 128>}, {transform_indices = @transform_3, window_bounds = array<i64: 128, 128>}, {transform_indices = @transform_4, window_bounds = array<i64: 128, 128>}, {transform_indices = @transform_5, window_bounds = array<i64: 1, 128>}, {transform_indices = @transform_6, window_bounds = array<i64: 1, 128>}, {transform_indices = @transform_7, window_bounds = array<i64: 32, 128>}, {transform_indices = @transform_8, window_bounds = array<i64: 32, 128>}]} {
    %c0_i32 = arith.constant 0 : i32
    %0 = arith.cmpi eq, %arg2, %c0_i32 : i32
    %1 = arith.extui %0 : i1 to i32
    %c0_i32_0 = arith.constant 0 : i32
    %2 = arith.cmpi ne, %1, %c0_i32_0 : i32
    scf.if %2 {
      %cst_37 = arith.constant 0.000000e+00 : f32
      %46 = vector.broadcast %cst_37 : f32 to vector<32x128xf32>
      %c0_38 = arith.constant 0 : index
      %c0_39 = arith.constant 0 : index
      %47 = vector.load %arg12[%c0_38, %c0_39] : memref<32x128xf32, #tpu.memory_space<vmem>>, vector<32x128xf32>
      tpu.vector_store %arg12[%c0_38, %c0_39], %46 {strides = array<i32>} : memref<32x128xf32, #tpu.memory_space<vmem>>, vector<32x128xf32>,
      %cst_40 = arith.constant 0.000000e+00 : f32
      %48 = vector.broadcast %cst_40 : f32 to vector<32x128xf32>
      %c0_41 = arith.constant 0 : index
      %c0_42 = arith.constant 0 : index
      %49 = vector.load %arg13[%c0_41, %c0_42] : memref<32x128xf32, #tpu.memory_space<vmem>>, vector<32x128xf32>
      tpu.vector_store %arg13[%c0_41, %c0_42], %48 {strides = array<i32>} : memref<32x128xf32, #tpu.memory_space<vmem>>, vector<32x128xf32>,
    } else {
    }
    %c0 = arith.constant 0 : index
    %c0_1 = arith.constant 0 : index
    %3 = vector.load %arg3[%c0, %c0_1] : memref<32x128xbf16, #tpu.memory_space<vmem>>, vector<32x128xbf16>
    %4 = arith.extf %3 : vector<32x128xbf16> to vector<32x128xf32>
    %cst = arith.constant 0.000000e+00 : f32
    %5 = vector.broadcast %cst : f32 to vector<32x128xf32>
    %6 = arith.cmpf ogt, %4, %5 : vector<32x128xf32>
    %7 = math.exp %4 : vector<32x128xf32>
    %cst_2 = arith.constant 1.000000e+00 : f32
    %8 = vector.broadcast %cst_2 : f32 to vector<32x128xf32>
    %9 = arith.subf %7, %8 : vector<32x128xf32>
    %10 = arith.select %6, %4, %9 : vector<32x128xi1>, vector<32x128xf32>
    %11 = arith.truncf %10 : vector<32x128xf32> to vector<32x128xbf16>
    %cst_3 = arith.constant 0.000000e+00 : f32
    %12 = vector.broadcast %cst_3 : f32 to vector<32x128xf32>
    %13 = arith.cmpf olt, %4, %12 : vector<32x128xf32>
    %cst_4 = arith.constant 0.000000e+00 : f32
    %14 = vector.broadcast %cst_4 : f32 to vector<32x128xf32>
    %15 = arith.subf %14, %4 : vector<32x128xf32>
    %cst_5 = arith.constant 0.000000e+00 : f32
    %16 = vector.broadcast %cst_5 : f32 to vector<32x128xf32>
    %17 = arith.subf %16, %4 : vector<32x128xf32>
    %18 = math.exp %17 : vector<32x128xf32>
    %cst_6 = arith.constant 1.000000e+00 : f32
    %19 = vector.broadcast %cst_6 : f32 to vector<32x128xf32>
    %20 = arith.subf %18, %19 : vector<32x128xf32>
    %21 = arith.select %13, %15, %20 : vector<32x128xi1>, vector<32x128xf32>
    %22 = arith.truncf %21 : vector<32x128xf32> to vector<32x128xbf16>
    %c0_7 = arith.constant 0 : index
    %c0_8 = arith.constant 0 : index
    %23 = vector.load %arg12[%c0_7, %c0_8] : memref<32x128xf32, #tpu.memory_space<vmem>>, vector<32x128xf32>
    %c0_9 = arith.constant 0 : index
    %c0_10 = arith.constant 0 : index
    %24 = vector.load %arg4[%c0_9, %c0_10] : memref<128x128xbf16, #tpu.memory_space<vmem>>, vector<128x128xbf16>
    %cst_11 = arith.constant dense<0.000000e+00> : vector<32x128xf32>
    %25 = tpu.matmul %11, %24, %cst_11 {dimension_numbers = #tpu.dot_dimension_numbers<[1], [0], [0], [1], [0, 0, 1, 1], [], []>} : vector<32x128xbf16>, vector<128x128xbf16>, vector<32x128xf32> -> vector<32x128xf32>
    %26 = arith.addf %23, %25 : vector<32x128xf32>
    %c0_12 = arith.constant 0 : index
    %c0_13 = arith.constant 0 : index
    %27 = vector.load %arg12[%c0_12, %c0_13] : memref<32x128xf32, #tpu.memory_space<vmem>>, vector<32x128xf32>
    tpu.vector_store %arg12[%c0_12, %c0_13], %26 {strides = array<i32>} : memref<32x128xf32, #tpu.memory_space<vmem>>, vector<32x128xf32>,
    %c0_14 = arith.constant 0 : index
    %c0_15 = arith.constant 0 : index
    %28 = vector.load %arg13[%c0_14, %c0_15] : memref<32x128xf32, #tpu.memory_space<vmem>>, vector<32x128xf32>
    %c0_16 = arith.constant 0 : index
    %c0_17 = arith.constant 0 : index
    %29 = vector.load %arg6[%c0_16, %c0_17] : memref<128x128xbf16, #tpu.memory_space<vmem>>, vector<128x128xbf16>
    %cst_18 = arith.constant dense<0.000000e+00> : vector<32x128xf32>
    %30 = tpu.matmul %11, %29, %cst_18 {dimension_numbers = #tpu.dot_dimension_numbers<[1], [0], [0], [1], [0, 0, 1, 1], [], []>} : vector<32x128xbf16>, vector<128x128xbf16>, vector<32x128xf32> -> vector<32x128xf32>
    %31 = arith.addf %28, %30 : vector<32x128xf32>
    %c0_19 = arith.constant 0 : index
    %c0_20 = arith.constant 0 : index
    %32 = vector.load %arg13[%c0_19, %c0_20] : memref<32x128xf32, #tpu.memory_space<vmem>>, vector<32x128xf32>
    tpu.vector_store %arg13[%c0_19, %c0_20], %31 {strides = array<i32>} : memref<32x128xf32, #tpu.memory_space<vmem>>, vector<32x128xf32>,
    %c0_21 = arith.constant 0 : index
    %c0_22 = arith.constant 0 : index
    %33 = vector.load %arg12[%c0_21, %c0_22] : memref<32x128xf32, #tpu.memory_space<vmem>>, vector<32x128xf32>
    %c0_23 = arith.constant 0 : index
    %c0_24 = arith.constant 0 : index
    %34 = vector.load %arg5[%c0_23, %c0_24] : memref<128x128xbf16, #tpu.memory_space<vmem>>, vector<128x128xbf16>
    %cst_25 = arith.constant dense<0.000000e+00> : vector<32x128xf32>
    %35 = tpu.matmul %22, %34, %cst_25 {dimension_numbers = #tpu.dot_dimension_numbers<[1], [0], [0], [1], [0, 0, 1, 1], [], []>} : vector<32x128xbf16>, vector<128x128xbf16>, vector<32x128xf32> -> vector<32x128xf32>
    %36 = arith.addf %33, %35 : vector<32x128xf32>
    %c0_26 = arith.constant 0 : index
    %c0_27 = arith.constant 0 : index
    %37 = vector.load %arg12[%c0_26, %c0_27] : memref<32x128xf32, #tpu.memory_space<vmem>>, vector<32x128xf32>
    tpu.vector_store %arg12[%c0_26, %c0_27], %36 {strides = array<i32>} : memref<32x128xf32, #tpu.memory_space<vmem>>, vector<32x128xf32>,
    %c0_28 = arith.constant 0 : index
    %c0_29 = arith.constant 0 : index
    %38 = vector.load %arg13[%c0_28, %c0_29] : memref<32x128xf32, #tpu.memory_space<vmem>>, vector<32x128xf32>
    %c0_30 = arith.constant 0 : index
    %c0_31 = arith.constant 0 : index
    %39 = vector.load %arg7[%c0_30, %c0_31] : memref<128x128xbf16, #tpu.memory_space<vmem>>, vector<128x128xbf16>
    %cst_32 = arith.constant dense<0.000000e+00> : vector<32x128xf32>
    %40 = tpu.matmul %22, %39, %cst_32 {dimension_numbers = #tpu.dot_dimension_numbers<[1], [0], [0], [1], [0, 0, 1, 1], [], []>} : vector<32x128xbf16>, vector<128x128xbf16>, vector<32x128xf32> -> vector<32x128xf32>
    %41 = arith.addf %38, %40 : vector<32x128xf32>
    %c0_33 = arith.constant 0 : index
    %c0_34 = arith.constant 0 : index
    %42 = vector.load %arg13[%c0_33, %c0_34] : memref<32x128xf32, #tpu.memory_space<vmem>>, vector<32x128xf32>
    tpu.vector_store %arg13[%c0_33, %c0_34], %41 {strides = array<i32>} : memref<32x128xf32, #tpu.memory_space<vmem>>, vector<32x128xf32>,
    %c0_i32_35 = arith.constant 0 : i32
    %43 = arith.cmpi eq, %arg2, %c0_i32_35 : i32
    %44 = arith.extui %43 : i1 to i32
    %c0_i32_36 = arith.constant 0 : i32
    %45 = arith.cmpi ne, %44, %c0_i32_36 : i32
    scf.if %45 {
      %c0_37 = arith.constant 0 : index
      %c0_38 = arith.constant 0 : index
      %46 = vector.load %arg12[%c0_37, %c0_38] : memref<32x128xf32, #tpu.memory_space<vmem>>, vector<32x128xf32>
      %c0_39 = arith.constant 0 : index
      %c0_40 = arith.constant 0 : index
      %47 = vector.load %arg8[%c0_39, %c0_40] : memref<1x128xf32, #tpu.memory_space<vmem>>, vector<1x128xf32>
      %48 = vector.broadcast %47 : vector<1x128xf32> to vector<32x128xf32>
      %49 = arith.addf %46, %48 : vector<32x128xf32>
      %c0_41 = arith.constant 0 : index
      %c0_42 = arith.constant 0 : index
      %50 = vector.load %arg13[%c0_41, %c0_42] : memref<32x128xf32, #tpu.memory_space<vmem>>, vector<32x128xf32>
      %c0_43 = arith.constant 0 : index
      %c0_44 = arith.constant 0 : index
      %51 = vector.load %arg9[%c0_43, %c0_44] : memref<1x128xf32, #tpu.memory_space<vmem>>, vector<1x128xf32>
      %52 = vector.broadcast %51 : vector<1x128xf32> to vector<32x128xf32>
      %53 = arith.addf %50, %52 : vector<32x128xf32>
      %cst_45 = arith.constant 0.000000e+00 : f32
      %54 = vector.broadcast %cst_45 : f32 to vector<32x128xf32>
      %55 = arith.subf %54, %53 : vector<32x128xf32>
      %56 = math.exp %55 : vector<32x128xf32>
      %cst_46 = arith.constant 1.000000e+00 : f32
      %57 = vector.broadcast %cst_46 : f32 to vector<32x128xf32>
      %58 = arith.addf %57, %56 : vector<32x128xf32>
      %59 = tpu.reciprocal %58 {approx = true} : vector<32x128xf32> -> vector<32x128xf32>
      %c0_47 = arith.constant 0 : index
      %c0_48 = arith.constant 0 : index
      %60 = vector.load %arg10[%c0_47, %c0_48] : memref<32x128xf32, #tpu.memory_space<vmem>>, vector<32x128xf32>
      %61 = arith.mulf %49, %59 : vector<32x128xf32>
      %62 = arith.addf %60, %61 : vector<32x128xf32>
      %c0_49 = arith.constant 0 : index
      %c0_50 = arith.constant 0 : index
      %63 = vector.load %arg11[%c0_49, %c0_50] : memref<32x128xf32, #tpu.memory_space<vmem>>, vector<32x128xf32>
      tpu.vector_store %arg11[%c0_49, %c0_50], %62 {strides = array<i32>} : memref<32x128xf32, #tpu.memory_space<vmem>>, vector<32x128xf32>,
    } else {
    }
    return
  }
  func.func @transform_0(%arg0: i32, %arg1: i32, %arg2: i32) -> (i32, i32) {
    %c0_i32 = arith.constant 0 : i32
    return %arg0, %arg2 : i32, i32
  }
  func.func @transform_1(%arg0: i32, %arg1: i32, %arg2: i32) -> (i32, i32) {
    %c0_i32 = arith.constant 0 : i32
    return %arg2, %arg1 : i32, i32
  }
  func.func @transform_2(%arg0: i32, %arg1: i32, %arg2: i32) -> (i32, i32) {
    %c0_i32 = arith.constant 0 : i32
    return %arg2, %arg1 : i32, i32
  }
  func.func @transform_3(%arg0: i32, %arg1: i32, %arg2: i32) -> (i32, i32) {
    %c0_i32 = arith.constant 0 : i32
    return %arg2, %arg1 : i32, i32
  }
  func.func @transform_4(%arg0: i32, %arg1: i32, %arg2: i32) -> (i32, i32) {
    %c0_i32 = arith.constant 0 : i32
    return %arg2, %arg1 : i32, i32
  }
  func.func @transform_5(%arg0: i32, %arg1: i32, %arg2: i32) -> (i32, i32) {
    %c0_i32 = arith.constant 0 : i32
    %c0_i32_0 = arith.constant 0 : i32
    return %c0_i32, %arg1 : i32, i32
  }
  func.func @transform_6(%arg0: i32, %arg1: i32, %arg2: i32) -> (i32, i32) {
    %c0_i32 = arith.constant 0 : i32
    %c0_i32_0 = arith.constant 0 : i32
    return %c0_i32, %arg1 : i32, i32
  }
  func.func @transform_7(%arg0: i32, %arg1: i32, %arg2: i32) -> (i32, i32) {
    %c0_i32 = arith.constant 0 : i32
    return %arg0, %arg1 : i32, i32
  }
  func.func @transform_8(%arg0: i32, %arg1: i32, %arg2: i32) -> (i32, i32) {
    %c0_i32 = arith.constant 0 : i32
    return %arg0, %arg1 : i32, i32
  }
}

module attributes {stable_mosaic.version = 11 : i64} {
  func.func @kernel(%arg0: i32, %arg1: i32, %arg2: i32, %arg3: memref<32x128xbf16, #tpu.memory_space<vmem>>, %arg4: memref<128x128xbf16, #tpu.memory_space<vmem>>, %arg5: memref<1x128xf32, #tpu.memory_space<vmem>>, %arg6: memref<32x128xf32, #tpu.memory_space<vmem>>, %arg7: memref<32x128xf32, #tpu.memory_space<vmem>>) attributes {dimension_semantics = [#tpu.dimension_semantics<parallel>, #tpu.dimension_semantics<parallel>, #tpu.dimension_semantics<arbitrary>], iteration_bounds = array<i64: 1, 1, 1>, scalar_prefetch = 0 : i64, scratch_operands = 1 : i64, tpu.core_type = #tpu.core_type<tc>, window_params = [{transform_indices = @transform_0, window_bounds = array<i64: 32, 128>}, {transform_indices = @transform_1, window_bounds = array<i64: 128, 128>}, {transform_indices = @transform_2, window_bounds = array<i64: 1, 128>}, {transform_indices = @transform_3, window_bounds = array<i64: 32, 128>}]} {
    %c0_i32 = arith.constant 0 : i32
    %0 = arith.cmpi eq, %arg2, %c0_i32 : i32
    %1 = arith.extui %0 : i1 to i32
    %c0_i32_0 = arith.constant 0 : i32
    %2 = arith.cmpi ne, %1, %c0_i32_0 : i32
    scf.if %2 {
      %cst_12 = arith.constant 0.000000e+00 : f32
      %20 = vector.broadcast %cst_12 : f32 to vector<32x128xf32>
      %c0_13 = arith.constant 0 : index
      %c0_14 = arith.constant 0 : index
      %21 = vector.load %arg7[%c0_13, %c0_14] : memref<32x128xf32, #tpu.memory_space<vmem>>, vector<32x128xf32>
      tpu.vector_store %arg7[%c0_13, %c0_14], %20 {strides = array<i32>} : memref<32x128xf32, #tpu.memory_space<vmem>>, vector<32x128xf32>,
    } else {
    }
    %c0 = arith.constant 0 : index
    %c0_1 = arith.constant 0 : index
    %3 = vector.load %arg3[%c0, %c0_1] : memref<32x128xbf16, #tpu.memory_space<vmem>>, vector<32x128xbf16>
    %4 = arith.extf %3 : vector<32x128xbf16> to vector<32x128xf32>
    %cst = arith.constant 0.000000e+00 : f32
    %5 = vector.broadcast %cst : f32 to vector<32x128xf32>
    %6 = arith.cmpf ogt, %4, %5 : vector<32x128xf32>
    %7 = math.exp %4 : vector<32x128xf32>
    %cst_2 = arith.constant 1.000000e+00 : f32
    %8 = vector.broadcast %cst_2 : f32 to vector<32x128xf32>
    %9 = arith.subf %7, %8 : vector<32x128xf32>
    %10 = arith.select %6, %4, %9 : vector<32x128xi1>, vector<32x128xf32>
    %11 = arith.truncf %10 : vector<32x128xf32> to vector<32x128xbf16>
    %c0_3 = arith.constant 0 : index
    %c0_4 = arith.constant 0 : index
    %12 = vector.load %arg7[%c0_3, %c0_4] : memref<32x128xf32, #tpu.memory_space<vmem>>, vector<32x128xf32>
    %c0_5 = arith.constant 0 : index
    %c0_6 = arith.constant 0 : index
    %13 = vector.load %arg4[%c0_5, %c0_6] : memref<128x128xbf16, #tpu.memory_space<vmem>>, vector<128x128xbf16>
    %cst_7 = arith.constant dense<0.000000e+00> : vector<32x128xf32>
    %14 = tpu.matmul %11, %13, %cst_7 {dimension_numbers = #tpu.dot_dimension_numbers<[1], [0], [0], [1], [0, 0, 1, 1], [], []>} : vector<32x128xbf16>, vector<128x128xbf16>, vector<32x128xf32> -> vector<32x128xf32>
    %15 = arith.addf %12, %14 : vector<32x128xf32>
    %c0_8 = arith.constant 0 : index
    %c0_9 = arith.constant 0 : index
    %16 = vector.load %arg7[%c0_8, %c0_9] : memref<32x128xf32, #tpu.memory_space<vmem>>, vector<32x128xf32>
    tpu.vector_store %arg7[%c0_8, %c0_9], %15 {strides = array<i32>} : memref<32x128xf32, #tpu.memory_space<vmem>>, vector<32x128xf32>,
    %c0_i32_10 = arith.constant 0 : i32
    %17 = arith.cmpi eq, %arg2, %c0_i32_10 : i32
    %18 = arith.extui %17 : i1 to i32
    %c0_i32_11 = arith.constant 0 : i32
    %19 = arith.cmpi ne, %18, %c0_i32_11 : i32
    scf.if %19 {
      %c0_12 = arith.constant 0 : index
      %c0_13 = arith.constant 0 : index
      %20 = vector.load %arg7[%c0_12, %c0_13] : memref<32x128xf32, #tpu.memory_space<vmem>>, vector<32x128xf32>
      %c0_14 = arith.constant 0 : index
      %c0_15 = arith.constant 0 : index
      %21 = vector.load %arg5[%c0_14, %c0_15] : memref<1x128xf32, #tpu.memory_space<vmem>>, vector<1x128xf32>
      %22 = vector.broadcast %21 : vector<1x128xf32> to vector<32x128xf32>
      %23 = arith.addf %20, %22 : vector<32x128xf32>
      %c0_16 = arith.constant 0 : index
      %c0_17 = arith.constant 0 : index
      %24 = vector.load %arg6[%c0_16, %c0_17] : memref<32x128xf32, #tpu.memory_space<vmem>>, vector<32x128xf32>
      tpu.vector_store %arg6[%c0_16, %c0_17], %23 {strides = array<i32>} : memref<32x128xf32, #tpu.memory_space<vmem>>, vector<32x128xf32>,
    } else {
    }
    return
  }
  func.func @transform_0(%arg0: i32, %arg1: i32, %arg2: i32) -> (i32, i32) {
    %c0_i32 = arith.constant 0 : i32
    return %arg0, %arg2 : i32, i32
  }
  func.func @transform_1(%arg0: i32, %arg1: i32, %arg2: i32) -> (i32, i32) {
    %c0_i32 = arith.constant 0 : i32
    return %arg2, %arg1 : i32, i32
  }
  func.func @transform_2(%arg0: i32, %arg1: i32, %arg2: i32) -> (i32, i32) {
    %c0_i32 = arith.constant 0 : i32
    %c0_i32_0 = arith.constant 0 : i32
    return %c0_i32, %arg1 : i32, i32
  }
  func.func @transform_3(%arg0: i32, %arg1: i32, %arg2: i32) -> (i32, i32) {
    %c0_i32 = arith.constant 0 : i32
    return %arg0, %arg1 : i32, i32
  }
}

</mosaic_0001>

<llo_original>
// kernel: pixelcnnpp_forward.26
$region0: #{pixelcnnpp_forward.26}
  #allocation0 [shape = 'u32[]', space=smem, size = 0x4, offset = 0x4, fixed_abs, tag = 'smem constant byte address 0x4 - core index']
  #allocation1 [shape = 'u32[144,128]{1,0:T(1,128)}', space=vmem, size = 0x12000, scoped, tag = 'internal scratch']
  #allocation2 [shape = 'f32[32,128]{1,0:T(8,128)}', space=vmem, size = 0x4000, scoped, tag = 'scratch operand']
  %s0 = inlined_call_operand.vmem [shape: bf16[32,128], index: 0, kind: input, shape index: {}]
  %s1 = inlined_call_operand.vmem [shape: bf16[128,128], index: 1, kind: input, shape index: {}]
  %s2 = inlined_call_operand.vmem [shape: f32[1,128], index: 2, kind: input, shape index: {}]
  %s3 = inlined_call_operand.vmem [shape: f32[32,128], index: 3, kind: output, shape index: {}]
  %s4 = sld [smem:[#allocation0]]
  $region30: #{pixelcnnpp_forward.26} parent=0
    _
  %s6 = ssub.s32 1, %s4
  %s7 = scalar_select 0, %s6, %s4
  // Predicated region
  $region2: #{pixelcnnpp_forward.26} parent=0 // pred_check
    _
  $region3: #{pixelcnnpp_forward.26} parent=0 // pred_check_branch
    %9 = sbr.rel (0) target = $region5
  $region4: #{pixelcnnpp_forward.26} parent=0 // pred_region
    _
  $region5: #{pixelcnnpp_forward.26} parent=0 // pred_fallthru
    _
  // Predicated region
  $region6: #{pixelcnnpp_forward.26} parent=0 // pred_check
    _
  $region7: #{pixelcnnpp_forward.26} parent=0 // pred_check_branch
    %11 = sbr.rel (0) target = $region9
  $region8: #{pixelcnnpp_forward.26} parent=0 // pred_region
    _
  $region9: #{pixelcnnpp_forward.26} parent=0 // pred_fallthru
    _
  // Predicated region
  $region10: #{pixelcnnpp_forward.26} parent=0 // pred_check
    _
  $region11: #{pixelcnnpp_forward.26} parent=0 // pred_check_branch
    %13 = sbr.rel (0) target = $region13
  $region12: #{pixelcnnpp_forward.26} parent=0 // pred_region
    _
  $region13: #{pixelcnnpp_forward.26} parent=0 // pred_fallthru
    _
  %p15 = scmp.eq.s32.totalorder 0, 0
  // Predicated region
  $region14: #{pixelcnnpp_forward.26} parent=0 // pred_check
    %p16 = pneg %p15
  $region15: #{pixelcnnpp_forward.26} parent=0 // pred_check_branch
    %18 = sbr.rel (%p16) target = $region17
  $region16: #{pixelcnnpp_forward.26} parent=0 // pred_region
    %19 = vst [vmem:[#allocation2] sm:$0xff] 0.0
    %20 = vst [vmem:[#allocation2 + $0x8] sm:$0xff] 0.0
    %21 = vst [vmem:[#allocation2 + $0x10] sm:$0xff] 0.0
    %22 = vst [vmem:[#allocation2 + $0x18] sm:$0xff] 0.0
  $region17: #{pixelcnnpp_forward.26} parent=0 // pred_fallthru
    _
  %v23 = vld [vmem:[%s0] sm:$0xf]
  %v24 = vld [vmem:[%s0 + $0x4] sm:$0xf]
  %v25 = vld [vmem:[%s0 + $0x8] sm:$0xf]
  %v26 = vld [vmem:[%s0 + $0xc] sm:$0xf]
  %v27 = vld [vmem:[#allocation2] sm:$0xff]
  %v28 = vld [vmem:[#allocation2 + $0x8] sm:$0xff]
  %v29 = vld [vmem:[#allocation2 + $0x10] sm:$0xff]
  %v30 = vld [vmem:[#allocation2 + $0x18] sm:$0xff]
  %v31 = vld [vmem:[%s1] sm:$0xf]
  %v32 = vld [vmem:[%s1 + $0x4] sm:$0xf]
  %v33 = vld [vmem:[%s1 + $0x8] sm:$0xf]
  %v34 = vld [vmem:[%s1 + $0xc] sm:$0xf]
  %v35 = vld [vmem:[%s1 + $0x10] sm:$0xf]
  %v36 = vld [vmem:[%s1 + $0x14] sm:$0xf]
  %v37 = vld [vmem:[%s1 + $0x18] sm:$0xf]
  %v38 = vld [vmem:[%s1 + $0x1c] sm:$0xf]
  %v39 = vld [vmem:[%s1 + $0x20] sm:$0xf]
  %v40 = vld [vmem:[%s1 + $0x24] sm:$0xf]
  %v41 = vld [vmem:[%s1 + $0x28] sm:$0xf]
  %v42 = vld [vmem:[%s1 + $0x2c] sm:$0xf]
  %v43 = vld [vmem:[%s1 + $0x30] sm:$0xf]
  %v44 = vld [vmem:[%s1 + $0x34] sm:$0xf]
  %v45 = vld [vmem:[%s1 + $0x38] sm:$0xf]
  %v46 = vld [vmem:[%s1 + $0x3c] sm:$0xf]
  %v51 = vunpack.c.l.b16 %v23
  %v52 = vunpack.c.l.b16 %v24
  %v53 = vunpack.c.l.b16 %v25
  %v54 = vunpack.c.l.b16 %v26
  %v55 = vpack.c.b16 %v52, %v51
  %v56 = vpack.c.b16 %v54, %v53
  %v75 = vunpack.c.l.b16 %v31
  %v76 = vunpack.c.l.b16 %v32
  %v77 = vunpack.c.l.b16 %v33
  %v78 = vunpack.c.l.b16 %v34
  %v79 = vunpack.c.l.b16 %v35
  %v80 = vunpack.c.l.b16 %v36
  %v81 = vunpack.c.l.b16 %v37
  %v82 = vunpack.c.l.b16 %v38
  %v83 = vunpack.c.l.b16 %v39
  %v84 = vunpack.c.l.b16 %v40
  %v85 = vunpack.c.l.b16 %v41
  %v86 = vunpack.c.l.b16 %v42
  %v87 = vunpack.c.l.b16 %v43
  %v88 = vunpack.c.l.b16 %v44
  %v89 = vunpack.c.l.b16 %v45
  %v90 = vunpack.c.l.b16 %v46
  %v91 = vpack.c.b16 %v76, %v75
  %v92 = vpack.c.b16 %v78, %v77
  %v93 = vpack.c.b16 %v80, %v79
  %v94 = vpack.c.b16 %v82, %v81
  %v95 = vpack.c.b16 %v84, %v83
  %v96 = vpack.c.b16 %v86, %v85
  %v97 = vpack.c.b16 %v88, %v87
  %v98 = vpack.c.b16 %v90, %v89
  %107 = vmatprep.subr.bf16.mxu0 0
  %108 = vmatpush1.bf16.msra.mxu0 %v98
  %109 = vmatprep.subr.bf16.mxu0 0
  %110 = vmatpush1.bf16.msra.mxu0 %v97
  %111 = vmatprep.subr.bf16.mxu0 0
  %112 = vmatpush1.bf16.msra.mxu0 %v96
  %113 = vmatprep.subr.bf16.mxu0 0
  %114 = vmatpush1.bf16.msra.mxu0 %v95
  %115 = vmatprep.subr.bf16.mxu0 0
  %116 = vmatpush1.bf16.msra.mxu0 %v94
  %117 = vmatprep.subr.bf16.mxu0 0
  %118 = vmatpush1.bf16.msra.mxu0 %v93
  %119 = vmatprep.subr.bf16.mxu0 0
  %120 = vmatpush1.bf16.msra.mxu0 %v92
  %121 = vmatprep.subr.bf16.mxu0 0
  %122 = vmatpush1.bf16.msra.mxu0 %v91
  %123 = vmatprep.subr.bf16.mxu0 0
  %124 = vmatpush2.bf16.msra.mxu0 0
  %125 = vmatprep.subr.bf16.mxu0 0
  %126 = vmatpush2.bf16.msra.mxu0 0
  %127 = vmatprep.subr.bf16.mxu0 0
  %128 = vmatpush2.bf16.msra.mxu0 0
  %129 = vmatprep.subr.bf16.mxu0 0
  %130 = vmatpush2.bf16.msra.mxu0 0
  %131 = vmatprep.subr.bf16.mxu0 0
  %132 = vmatpush2.bf16.msra.mxu0 0
  %133 = vmatprep.subr.bf16.mxu0 0
  %134 = vmatpush2.bf16.msra.mxu0 0
  %135 = vmatprep.subr.bf16.mxu0 0
  %136 = vmatpush2.bf16.msra.mxu0 0
  %137 = vmatprep.subr.bf16.mxu0 0
  %138 = vmatpush2.bf16.msra.mxu0 0
  %139 = vmatprep.mubr.bf16.mxu0 0
  %140 = vmatmul.mubr.bf16.gmra.mxu0 %v55
  %v141 = vpop.f32.mrf.mxu0
  %v142 = vadd.f32 0.0, %v141
  %v143 = vpop.f32.mrf.mxu0
  %v144 = vpop.f32.mrf.mxu0
  %v145 = vadd.f32 0.0, %v144
  %v146 = vpop.f32.mrf.mxu0
  %147 = vmatprep.mubr.bf16.mxu0 0
  %148 = vmatmul.mubr.bf16.gmra.mxu0 %v56
  %v149 = vpop.f32.mrf.mxu0
  %v150 = vadd.f32 0.0, %v149
  %v151 = vpop.f32.mrf.mxu0
  %v152 = vpop.f32.mrf.mxu0
  %v153 = vadd.f32 0.0, %v152
  %v154 = vpop.f32.mrf.mxu0
  %155 = vdwg.mxu0
  %v156 = vadd.f32 %v27, %v142
  %v157 = vadd.f32 %v28, %v145
  %v158 = vadd.f32 %v29, %v150
  %v159 = vadd.f32 %v30, %v153
  %160 = vst [vmem:[#allocation2] sm:$0xff] %v156
  %161 = vst [vmem:[#allocation2 + $0x8] sm:$0xff] %v157
  %162 = vst [vmem:[#allocation2 + $0x10] sm:$0xff] %v158
  %163 = vst [vmem:[#allocation2 + $0x18] sm:$0xff] %v159
  // Predicated region
  $region18: #{pixelcnnpp_forward.26} parent=0 // pred_check
    %p164 = pneg %p15
  $region19: #{pixelcnnpp_forward.26} parent=0 // pred_check_branch
    %166 = sbr.rel (%p164) target = $region21
  $region20: #{pixelcnnpp_forward.26} parent=0 // pred_region
    %v167 = vld [vmem:[#allocation2] sm:$0xff]
    %v168 = vld [vmem:[#allocation2 + $0x8] sm:$0xff]
    %v169 = vld [vmem:[#allocation2 + $0x10] sm:$0xff]
    %v170 = vld [vmem:[#allocation2 + $0x18] sm:$0xff]
    %v171 = vld [vmem:[%s2] sm:$0x1]
    %v173 = vlaneseq
    %v174 = vshrl.u32 %v173, 7
    %v175 = vsub.s32 0, %v174
    %v176 = vrot.slane %v171, %v175
    %v178 = vadd.f32 %v167, %v176
    %v179 = vadd.f32 %v168, %v176
    %v180 = vadd.f32 %v169, %v176
    %v181 = vadd.f32 %v170, %v176
    %182 = vst [vmem:[%s3] sm:$0xff] %v178
    %183 = vst [vmem:[%s3 + $0x8] sm:$0xff] %v179
    %184 = vst [vmem:[%s3 + $0x10] sm:$0xff] %v180
    %185 = vst [vmem:[%s3 + $0x18] sm:$0xff] %v181
  $region21: #{pixelcnnpp_forward.26} parent=0 // pred_fallthru
    _
  // Predicated region
  $region22: #{pixelcnnpp_forward.26} parent=0 // pred_check
    _
  $region23: #{pixelcnnpp_forward.26} parent=0 // pred_check_branch
    %187 = sbr.rel (0) target = $region25
  $region24: #{pixelcnnpp_forward.26} parent=0 // pred_region
    _
  $region25: #{pixelcnnpp_forward.26} parent=0 // pred_fallthru
    _
  // Predicated region
  $region26: #{pixelcnnpp_forward.26} parent=0 // pred_check
    _
  $region27: #{pixelcnnpp_forward.26} parent=0 // pred_check_branch
    %189 = sbr.rel (0) target = $region29
  $region28: #{pixelcnnpp_forward.26} parent=0 // pred_region
    _
  $region29: #{pixelcnnpp_forward.26} parent=0 // pred_fallthru
    _

// kernel: pixelcnnpp_forward.29
$region0: #{pixelcnnpp_forward.29}
  #allocation0 [shape = 'u32[]', space=smem, size = 0x4, offset = 0x4, fixed_abs, tag = 'smem constant byte address 0x4 - core index']
  #allocation1 [shape = 'u32[144,128]{1,0:T(1,128)}', space=vmem, size = 0x12000, scoped, tag = 'internal scratch']
  #allocation2 [shape = 'f32[32,128]{1,0:T(8,128)}', space=vmem, size = 0x4000, scoped, tag = 'scratch operand']
  %s0 = inlined_call_operand.vmem [shape: bf16[32,256], index: 0, kind: input, shape index: {}]
  %s1 = inlined_call_operand.vmem [shape: bf16[256,128], index: 1, kind: input, shape index: {}]
  %s2 = inlined_call_operand.vmem [shape: bf16[256,128], index: 2, kind: input, shape index: {}]
  %s3 = inlined_call_operand.vmem [shape: f32[1,128], index: 3, kind: input, shape index: {}]
  %s4 = inlined_call_operand.vmem [shape: f32[32,128], index: 4, kind: output, shape index: {}]
  %s5 = sld [smem:[#allocation0]]
  $region34: #{pixelcnnpp_forward.29} parent=0
    _
  %s7 = ssub.s32 1, %s5
  %s8 = scalar_select 0, %s7, %s5
  // Predicated region
  $region2: #{pixelcnnpp_forward.29} parent=0 // pred_check
    _
  $region3: #{pixelcnnpp_forward.29} parent=0 // pred_check_branch
    %10 = sbr.rel (0) target = $region5
  $region4: #{pixelcnnpp_forward.29} parent=0 // pred_region
    _
  $region5: #{pixelcnnpp_forward.29} parent=0 // pred_fallthru
    _
  // Predicated region
  $region6: #{pixelcnnpp_forward.29} parent=0 // pred_check
    _
  $region7: #{pixelcnnpp_forward.29} parent=0 // pred_check_branch
    %12 = sbr.rel (0) target = $region9
  $region8: #{pixelcnnpp_forward.29} parent=0 // pred_region
    _
  $region9: #{pixelcnnpp_forward.29} parent=0 // pred_fallthru
    _
  // Predicated region
  $region10: #{pixelcnnpp_forward.29} parent=0 // pred_check
    _
  $region11: #{pixelcnnpp_forward.29} parent=0 // pred_check_branch
    %14 = sbr.rel (0) target = $region13
  $region12: #{pixelcnnpp_forward.29} parent=0 // pred_region
    _
  $region13: #{pixelcnnpp_forward.29} parent=0 // pred_fallthru
    _
  // Predicated region
  $region14: #{pixelcnnpp_forward.29} parent=0 // pred_check
    _
  $region15: #{pixelcnnpp_forward.29} parent=0 // pred_check_branch
    %16 = sbr.rel (0) target = $region17
  $region16: #{pixelcnnpp_forward.29} parent=0 // pred_region
    _
  $region17: #{pixelcnnpp_forward.29} parent=0 // pred_fallthru
    _
  %p18 = scmp.eq.s32.totalorder 0, 0
  // Predicated region
  $region18: #{pixelcnnpp_forward.29} parent=0 // pred_check
    %p19 = pneg %p18
  $region19: #{pixelcnnpp_forward.29} parent=0 // pred_check_branch
    %21 = sbr.rel (%p19) target = $region21
  $region20: #{pixelcnnpp_forward.29} parent=0 // pred_region
    %22 = vst [vmem:[#allocation2] sm:$0xff] 0.0
    %23 = vst [vmem:[#allocation2 + $0x8] sm:$0xff] 0.0
    %24 = vst [vmem:[#allocation2 + $0x10] sm:$0xff] 0.0
    %25 = vst [vmem:[#allocation2 + $0x18] sm:$0xff] 0.0
  $region21: #{pixelcnnpp_forward.29} parent=0 // pred_fallthru
    _
  %v26 = vld [vmem:[%s0] sm:$0xff]
  %v27 = vld [vmem:[%s0 + $0x8] sm:$0xff]
  %v28 = vld [vmem:[%s0 + $0x10] sm:$0xff]
  %v29 = vld [vmem:[%s0 + $0x18] sm:$0xff]
  %v30 = vunpack.c.l.bf16 %v26
  %v31 = vunpack.c.h.bf16 %v26
  %v32 = vunpack.c.l.bf16 %v27
  %v33 = vunpack.c.h.bf16 %v27
  %v34 = vunpack.c.l.bf16 %v28
  %v35 = vunpack.c.h.bf16 %v28
  %v36 = vunpack.c.l.bf16 %v29
  %v37 = vunpack.c.h.bf16 %v29
  %vm38 = vcmp.gt.f32.partialorder %v30, 0.0
  %vm39 = vcmp.gt.f32.partialorder %v31, 0.0
  %vm40 = vcmp.gt.f32.partialorder %v32, 0.0
  %vm41 = vcmp.gt.f32.partialorder %v33, 0.0
  %vm42 = vcmp.gt.f32.partialorder %v34, 0.0
  %vm43 = vcmp.gt.f32.partialorder %v35, 0.0
  %vm44 = vcmp.gt.f32.partialorder %v36, 0.0
  %vm45 = vcmp.gt.f32.partialorder %v37, 0.0
  %v46 = vmul.f32 %v30, 1.442695
  %v47 = vpow.pop %v46
  %v48 = vmul.f32 %v31, 1.442695
  %v49 = vpow.pop %v48
  %v50 = vmul.f32 %v32, 1.442695
  %v51 = vpow.pop %v50
  %v52 = vmul.f32 %v33, 1.442695
  %v53 = vpow.pop %v52
  %v54 = vmul.f32 %v34, 1.442695
  %v55 = vpow.pop %v54
  %v56 = vmul.f32 %v35, 1.442695
  %v57 = vpow.pop %v56
  %v58 = vmul.f32 %v36, 1.442695
  %v59 = vpow.pop %v58
  %v60 = vmul.f32 %v37, 1.442695
  %v61 = vpow.pop %v60
  %v62 = vsub.f32 %v47, 1.0
  %v63 = vsub.f32 %v49, 1.0
  %v64 = vsub.f32 %v51, 1.0
  %v65 = vsub.f32 %v53, 1.0
  %v66 = vsub.f32 %v55, 1.0
  %v67 = vsub.f32 %v57, 1.0
  %v68 = vsub.f32 %v59, 1.0
  %v69 = vsub.f32 %v61, 1.0
  %v70 = vsel %vm38, %v30, %v62
  %v71 = vsel %vm39, %v31, %v63
  %v72 = vsel %vm40, %v32, %v64
  %v73 = vsel %vm41, %v33, %v65
  %v74 = vsel %vm42, %v34, %v66
  %v75 = vsel %vm43, %v35, %v67
  %v76 = vsel %vm44, %v36, %v68
  %v77 = vsel %vm45, %v37, %v69
  %v78 = vpack.c.bf16 %v72, %v70
  %v79 = vpack.c.bf16 %v73, %v71
  %v80 = vpack.c.bf16 %v76, %v74
  %v81 = vpack.c.bf16 %v77, %v75
  %vm82 = vcmp.lt.f32.partialorder %v30, 0.0
  %vm83 = vcmp.lt.f32.partialorder %v31, 0.0
  %vm84 = vcmp.lt.f32.partialorder %v32, 0.0
  %vm85 = vcmp.lt.f32.partialorder %v33, 0.0
  %vm86 = vcmp.lt.f32.partialorder %v34, 0.0
  %vm87 = vcmp.lt.f32.partialorder %v35, 0.0
  %vm88 = vcmp.lt.f32.partialorder %v36, 0.0
  %vm89 = vcmp.lt.f32.partialorder %v37, 0.0
  %v90 = vsub.f32 0.0, %v30
  %v91 = vsub.f32 0.0, %v31
  %v92 = vsub.f32 0.0, %v32
  %v93 = vsub.f32 0.0, %v33
  %v94 = vsub.f32 0.0, %v34
  %v95 = vsub.f32 0.0, %v35
  %v96 = vsub.f32 0.0, %v36
  %v97 = vsub.f32 0.0, %v37
  %v98 = vmul.f32 %v90, 1.442695
  %v99 = vpow.pop %v98
  %v100 = vmul.f32 %v91, 1.442695
  %v101 = vpow.pop %v100
  %v102 = vmul.f32 %v92, 1.442695
  %v103 = vpow.pop %v102
  %v104 = vmul.f32 %v93, 1.442695
  %v105 = vpow.pop %v104
  %v106 = vmul.f32 %v94, 1.442695
  %v107 = vpow.pop %v106
  %v108 = vmul.f32 %v95, 1.442695
  %v109 = vpow.pop %v108
  %v110 = vmul.f32 %v96, 1.442695
  %v111 = vpow.pop %v110
  %v112 = vmul.f32 %v97, 1.442695
  %v113 = vpow.pop %v112
  %v114 = vsub.f32 %v99, 1.0
  %v115 = vsub.f32 %v101, 1.0
  %v116 = vsub.f32 %v103, 1.0
  %v117 = vsub.f32 %v105, 1.0
  %v118 = vsub.f32 %v107, 1.0
  %v119 = vsub.f32 %v109, 1.0
  %v120 = vsub.f32 %v111, 1.0
  %v121 = vsub.f32 %v113, 1.0
  %v122 = vsel %vm82, %v90, %v114
  %v123 = vsel %vm83, %v91, %v115
  %v124 = vsel %vm84, %v92, %v116
  %v125 = vsel %vm85, %v93, %v117
  %v126 = vsel %vm86, %v94, %v118
  %v127 = vsel %vm87, %v95, %v119
  %v128 = vsel %vm88, %v96, %v120
  %v129 = vsel %vm89, %v97, %v121
  %v130 = vpack.c.bf16 %v124, %v122
  %v131 = vpack.c.bf16 %v125, %v123
  %v132 = vpack.c.bf16 %v128, %v126
  %v133 = vpack.c.bf16 %v129, %v127
  %v134 = vld [vmem:[#allocation2] sm:$0xff]
  %v135 = vld [vmem:[#allocation2 + $0x8] sm:$0xff]
  %v136 = vld [vmem:[#allocation2 + $0x10] sm:$0xff]
  %v137 = vld [vmem:[#allocation2 + $0x18] sm:$0xff]
  %v138 = vld [vmem:[%s1] sm:$0xf]
  %v139 = vld [vmem:[%s1 + $0x4] sm:$0xf]
  %v140 = vld [vmem:[%s1 + $0x8] sm:$0xf]
  %v141 = vld [vmem:[%s1 + $0xc] sm:$0xf]
  %v142 = vld [vmem:[%s1 + $0x10] sm:$0xf]
  %v143 = vld [vmem:[%s1 + $0x14] sm:$0xf]
  %v144 = vld [vmem:[%s1 + $0x18] sm:$0xf]
  %v145 = vld [vmem:[%s1 + $0x1c] sm:$0xf]
  %v146 = vld [vmem:[%s1 + $0x20] sm:$0xf]
  %v147 = vld [vmem:[%s1 + $0x24] sm:$0xf]
  %v148 = vld [vmem:[%s1 + $0x28] sm:$0xf]
  %v149 = vld [vmem:[%s1 + $0x2c] sm:$0xf]
  %v150 = vld [vmem:[%s1 + $0x30] sm:$0xf]
  %v151 = vld [vmem:[%s1 + $0x34] sm:$0xf]
  %v152 = vld [vmem:[%s1 + $0x38] sm:$0xf]
  %v153 = vld [vmem:[%s1 + $0x3c] sm:$0xf]
  %v154 = vld [vmem:[%s1 + $0x40] sm:$0xf]
  %v155 = vld [vmem:[%s1 + $0x44] sm:$0xf]
  %v156 = vld [vmem:[%s1 + $0x48] sm:$0xf]
  %v157 = vld [vmem:[%s1 + $0x4c] sm:$0xf]
  %v158 = vld [vmem:[%s1 + $0x50] sm:$0xf]
  %v159 = vld [vmem:[%s1 + $0x54] sm:$0xf]
  %v160 = vld [vmem:[%s1 + $0x58] sm:$0xf]
  %v161 = vld [vmem:[%s1 + $0x5c] sm:$0xf]
  %v162 = vld [vmem:[%s1 + $0x60] sm:$0xf]
  %v163 = vld [vmem:[%s1 + $0x64] sm:$0xf]
  %v164 = vld [vmem:[%s1 + $0x68] sm:$0xf]
  %v165 = vld [vmem:[%s1 + $0x6c] sm:$0xf]
  %v166 = vld [vmem:[%s1 + $0x70] sm:$0xf]
  %v167 = vld [vmem:[%s1 + $0x74] sm:$0xf]
  %v168 = vld [vmem:[%s1 + $0x78] sm:$0xf]
  %v169 = vld [vmem:[%s1 + $0x7c] sm:$0xf]
  %v202 = vunpack.c.l.b16 %v138
  %v203 = vunpack.c.l.b16 %v139
  %v204 = vunpack.c.l.b16 %v140
  %v205 = vunpack.c.l.b16 %v141
  %v206 = vunpack.c.l.b16 %v142
  %v207 = vunpack.c.l.b16 %v143
  %v208 = vunpack.c.l.b16 %v144
  %v209 = vunpack.c.l.b16 %v145
  %v210 = vunpack.c.l.b16 %v146
  %v211 = vunpack.c.l.b16 %v147
  %v212 = vunpack.c.l.b16 %v148
  %v213 = vunpack.c.l.b16 %v149
  %v214 = vunpack.c.l.b16 %v150
  %v215 = vunpack.c.l.b16 %v151
  %v216 = vunpack.c.l.b16 %v152
  %v217 = vunpack.c.l.b16 %v153
  %v218 = vunpack.c.l.b16 %v154
  %v219 = vunpack.c.l.b16 %v155
  %v220 = vunpack.c.l.b16 %v156
  %v221 = vunpack.c.l.b16 %v157
  %v222 = vunpack.c.l.b16 %v158
  %v223 = vunpack.c.l.b16 %v159
  %v224 = vunpack.c.l.b16 %v160
  %v225 = vunpack.c.l.b16 %v161
  %v226 = vunpack.c.l.b16 %v162
  %v227 = vunpack.c.l.b16 %v163
  %v228 = vunpack.c.l.b16 %v164
  %v229 = vunpack.c.l.b16 %v165
  %v230 = vunpack.c.l.b16 %v166
  %v231 = vunpack.c.l.b16 %v167
  %v232 = vunpack.c.l.b16 %v168
  %v233 = vunpack.c.l.b16 %v169
  %v234 = vpack.c.b16 %v203, %v202
  %v235 = vpack.c.b16 %v205, %v204
  %v236 = vpack.c.b16 %v207, %v206
  %v237 = vpack.c.b16 %v209, %v208
  %v238 = vpack.c.b16 %v211, %v210
  %v239 = vpack.c.b16 %v213, %v212
  %v240 = vpack.c.b16 %v215, %v214
  %v241 = vpack.c.b16 %v217, %v216
  %v242 = vpack.c.b16 %v219, %v218
  %v243 = vpack.c.b16 %v221, %v220
  %v244 = vpack.c.b16 %v223, %v222
  %v245 = vpack.c.b16 %v225, %v224
  %v246 = vpack.c.b16 %v227, %v226
  %v247 = vpack.c.b16 %v229, %v228
  %v248 = vpack.c.b16 %v231, %v230
  %v249 = vpack.c.b16 %v233, %v232
  %266 = vmatprep.subr.bf16.mxu0 0
  %267 = vmatpush1.bf16.msra.mxu0 %v241
  %268 = vmatprep.subr.bf16.mxu0 0
  %269 = vmatpush1.bf16.msra.mxu0 %v240
  %270 = vmatprep.subr.bf16.mxu0 0
  %271 = vmatpush1.bf16.msra.mxu0 %v239
  %272 = vmatprep.subr.bf16.mxu0 0
  %273 = vmatpush1.bf16.msra.mxu0 %v238
  %274 = vmatprep.subr.bf16.mxu0 0
  %275 = vmatpush1.bf16.msra.mxu0 %v237
  %276 = vmatprep.subr.bf16.mxu0 0
  %277 = vmatpush1.bf16.msra.mxu0 %v236
  %278 = vmatprep.subr.bf16.mxu0 0
  %279 = vmatpush1.bf16.msra.mxu0 %v235
  %280 = vmatprep.subr.bf16.mxu0 0
  %281 = vmatpush1.bf16.msra.mxu0 %v234
  %282 = vmatprep.subr.bf16.mxu0 0
  %283 = vmatpush2.bf16.msra.mxu0 %v249
  %284 = vmatprep.subr.bf16.mxu0 0
  %285 = vmatpush2.bf16.msra.mxu0 %v248
  %286 = vmatprep.subr.bf16.mxu0 0
  %287 = vmatpush2.bf16.msra.mxu0 %v247
  %288 = vmatprep.subr.bf16.mxu0 0
  %289 = vmatpush2.bf16.msra.mxu0 %v246
  %290 = vmatprep.subr.bf16.mxu0 0
  %291 = vmatpush2.bf16.msra.mxu0 %v245
  %292 = vmatprep.subr.bf16.mxu0 0
  %293 = vmatpush2.bf16.msra.mxu0 %v244
  %294 = vmatprep.subr.bf16.mxu0 0
  %295 = vmatpush2.bf16.msra.mxu0 %v243
  %296 = vmatprep.subr.bf16.mxu0 0
  %297 = vmatpush2.bf16.msra.mxu0 %v242
  %298 = vmatprep.mubr.bf16.mxu0 %v79
  %299 = vmatmul.mubr.bf16.gmra.mxu0 %v78
  %v300 = vpop.f32.mrf.mxu0
  %v301 = vadd.f32 0.0, %v300
  %v302 = vpop.f32.mrf.mxu0
  %v303 = vpop.f32.mrf.mxu0
  %v304 = vadd.f32 0.0, %v303
  %v305 = vpop.f32.mrf.mxu0
  %306 = vmatprep.mubr.bf16.mxu0 %v81
  %307 = vmatmul.mubr.bf16.gmra.mxu0 %v80
  %v308 = vpop.f32.mrf.mxu0
  %v309 = vadd.f32 0.0, %v308
  %v310 = vpop.f32.mrf.mxu0
  %v311 = vpop.f32.mrf.mxu0
  %v312 = vadd.f32 0.0, %v311
  %v313 = vpop.f32.mrf.mxu0
  %314 = vdwg.mxu0
  %v315 = vadd.f32 %v134, %v301
  %v316 = vadd.f32 %v135, %v304
  %v317 = vadd.f32 %v136, %v309
  %v318 = vadd.f32 %v137, %v312
  %319 = vst [vmem:[#allocation2] sm:$0xff] %v315
  %320 = vst [vmem:[#allocation2 + $0x8] sm:$0xff] %v316
  %321 = vst [vmem:[#allocation2 + $0x10] sm:$0xff] %v317
  %322 = vst [vmem:[#allocation2 + $0x18] sm:$0xff] %v318
  %v323 = vld [vmem:[#allocation2] sm:$0xff]
  %v324 = vld [vmem:[#allocation2 + $0x8] sm:$0xff]
  %v325 = vld [vmem:[#allocation2 + $0x10] sm:$0xff]
  %v326 = vld [vmem:[#allocation2 + $0x18] sm:$0xff]
  %v327 = vld [vmem:[%s2] sm:$0xf]
  %v328 = vld [vmem:[%s2 + $0x4] sm:$0xf]
  %v329 = vld [vmem:[%s2 + $0x8] sm:$0xf]
  %v330 = vld [vmem:[%s2 + $0xc] sm:$0xf]
  %v331 = vld [vmem:[%s2 + $0x10] sm:$0xf]
  %v332 = vld [vmem:[%s2 + $0x14] sm:$0xf]
  %v333 = vld [vmem:[%s2 + $0x18] sm:$0xf]
  %v334 = vld [vmem:[%s2 + $0x1c] sm:$0xf]
  %v335 = vld [vmem:[%s2 + $0x20] sm:$0xf]
  %v336 = vld [vmem:[%s2 + $0x24] sm:$0xf]
  %v337 = vld [vmem:[%s2 + $0x28] sm:$0xf]
  %v338 = vld [vmem:[%s2 + $0x2c] sm:$0xf]
  %v339 = vld [vmem:[%s2 + $0x30] sm:$0xf]
  %v340 = vld [vmem:[%s2 + $0x34] sm:$0xf]
  %v341 = vld [vmem:[%s2 + $0x38] sm:$0xf]
  %v342 = vld [vmem:[%s2 + $0x3c] sm:$0xf]
  %v343 = vld [vmem:[%s2 + $0x40] sm:$0xf]
  %v344 = vld [vmem:[%s2 + $0x44] sm:$0xf]
  %v345 = vld [vmem:[%s2 + $0x48] sm:$0xf]
  %v346 = vld [vmem:[%s2 + $0x4c] sm:$0xf]
  %v347 = vld [vmem:[%s2 + $0x50] sm:$0xf]
  %v348 = vld [vmem:[%s2 + $0x54] sm:$0xf]
  %v349 = vld [vmem:[%s2 + $0x58] sm:$0xf]
  %v350 = vld [vmem:[%s2 + $0x5c] sm:$0xf]
  %v351 = vld [vmem:[%s2 + $0x60] sm:$0xf]
  %v352 = vld [vmem:[%s2 + $0x64] sm:$0xf]
  %v353 = vld [vmem:[%s2 + $0x68] sm:$0xf]
  %v354 = vld [vmem:[%s2 + $0x6c] sm:$0xf]
  %v355 = vld [vmem:[%s2 + $0x70] sm:$0xf]
  %v356 = vld [vmem:[%s2 + $0x74] sm:$0xf]
  %v357 = vld [vmem:[%s2 + $0x78] sm:$0xf]
  %v358 = vld [vmem:[%s2 + $0x7c] sm:$0xf]
  %v391 = vunpack.c.l.b16 %v327
  %v392 = vunpack.c.l.b16 %v328
  %v393 = vunpack.c.l.b16 %v329
  %v394 = vunpack.c.l.b16 %v330
  %v395 = vunpack.c.l.b16 %v331
  %v396 = vunpack.c.l.b16 %v332
  %v397 = vunpack.c.l.b16 %v333
  %v398 = vunpack.c.l.b16 %v334
  %v399 = vunpack.c.l.b16 %v335
  %v400 = vunpack.c.l.b16 %v336
  %v401 = vunpack.c.l.b16 %v337
  %v402 = vunpack.c.l.b16 %v338
  %v403 = vunpack.c.l.b16 %v339
  %v404 = vunpack.c.l.b16 %v340
  %v405 = vunpack.c.l.b16 %v341
  %v406 = vunpack.c.l.b16 %v342
  %v407 = vunpack.c.l.b16 %v343
  %v408 = vunpack.c.l.b16 %v344
  %v409 = vunpack.c.l.b16 %v345
  %v410 = vunpack.c.l.b16 %v346
  %v411 = vunpack.c.l.b16 %v347
  %v412 = vunpack.c.l.b16 %v348
  %v413 = vunpack.c.l.b16 %v349
  %v414 = vunpack.c.l.b16 %v350
  %v415 = vunpack.c.l.b16 %v351
  %v416 = vunpack.c.l.b16 %v352
  %v417 = vunpack.c.l.b16 %v353
  %v418 = vunpack.c.l.b16 %v354
  %v419 = vunpack.c.l.b16 %v355
  %v420 = vunpack.c.l.b16 %v356
  %v421 = vunpack.c.l.b16 %v357
  %v422 = vunpack.c.l.b16 %v358
  %v423 = vpack.c.b16 %v392, %v391
  %v424 = vpack.c.b16 %v394, %v393
  %v425 = vpack.c.b16 %v396, %v395
  %v426 = vpack.c.b16 %v398, %v397
  %v427 = vpack.c.b16 %v400, %v399
  %v428 = vpack.c.b16 %v402, %v401
  %v429 = vpack.c.b16 %v404, %v403
  %v430 = vpack.c.b16 %v406, %v405
  %v431 = vpack.c.b16 %v408, %v407
  %v432 = vpack.c.b16 %v410, %v409
  %v433 = vpack.c.b16 %v412, %v411
  %v434 = vpack.c.b16 %v414, %v413
  %v435 = vpack.c.b16 %v416, %v415
  %v436 = vpack.c.b16 %v418, %v417
  %v437 = vpack.c.b16 %v420, %v419
  %v438 = vpack.c.b16 %v422, %v421
  %455 = vmatprep.subr.bf16.mxu0 0
  %456 = vmatpush1.bf16.msra.mxu0 %v430
  %457 = vmatprep.subr.bf16.mxu0 0
  %458 = vmatpush1.bf16.msra.mxu0 %v429
  %459 = vmatprep.subr.bf16.mxu0 0
  %460 = vmatpush1.bf16.msra.mxu0 %v428
  %461 = vmatprep.subr.bf16.mxu0 0
  %462 = vmatpush1.bf16.msra.mxu0 %v427
  %463 = vmatprep.subr.bf16.mxu0 0
  %464 = vmatpush1.bf16.msra.mxu0 %v426
  %465 = vmatprep.subr.bf16.mxu0 0
  %466 = vmatpush1.bf16.msra.mxu0 %v425
  %467 = vmatprep.subr.bf16.mxu0 0
  %468 = vmatpush1.bf16.msra.mxu0 %v424
  %469 = vmatprep.subr.bf16.mxu0 0
  %470 = vmatpush1.bf16.msra.mxu0 %v423
  %471 = vmatprep.subr.bf16.mxu0 0
  %472 = vmatpush2.bf16.msra.mxu0 %v438
  %473 = vmatprep.subr.bf16.mxu0 0
  %474 = vmatpush2.bf16.msra.mxu0 %v437
  %475 = vmatprep.subr.bf16.mxu0 0
  %476 = vmatpush2.bf16.msra.mxu0 %v436
  %477 = vmatprep.subr.bf16.mxu0 0
  %478 = vmatpush2.bf16.msra.mxu0 %v435
  %479 = vmatprep.subr.bf16.mxu0 0
  %480 = vmatpush2.bf16.msra.mxu0 %v434
  %481 = vmatprep.subr.bf16.mxu0 0
  %482 = vmatpush2.bf16.msra.mxu0 %v433
  %483 = vmatprep.subr.bf16.mxu0 0
  %484 = vmatpush2.bf16.msra.mxu0 %v432
  %485 = vmatprep.subr.bf16.mxu0 0
  %486 = vmatpush2.bf16.msra.mxu0 %v431
  %487 = vmatprep.mubr.bf16.mxu0 %v131
  %488 = vmatmul.mubr.bf16.gmra.mxu0 %v130
  %v489 = vpop.f32.mrf.mxu0
  %v490 = vadd.f32 0.0, %v489
  %v491 = vpop.f32.mrf.mxu0
  %v492 = vpop.f32.mrf.mxu0
  %v493 = vadd.f32 0.0, %v492
  %v494 = vpop.f32.mrf.mxu0
  %495 = vmatprep.mubr.bf16.mxu0 %v133
  %496 = vmatmul.mubr.bf16.gmra.mxu0 %v132
  %v497 = vpop.f32.mrf.mxu0
  %v498 = vadd.f32 0.0, %v497
  %v499 = vpop.f32.mrf.mxu0
  %v500 = vpop.f32.mrf.mxu0
  %v501 = vadd.f32 0.0, %v500
  %v502 = vpop.f32.mrf.mxu0
  %503 = vdwg.mxu0
  %v504 = vadd.f32 %v323, %v490
  %v505 = vadd.f32 %v324, %v493
  %v506 = vadd.f32 %v325, %v498
  %v507 = vadd.f32 %v326, %v501
  %508 = vst [vmem:[#allocation2] sm:$0xff] %v504
  %509 = vst [vmem:[#allocation2 + $0x8] sm:$0xff] %v505
  %510 = vst [vmem:[#allocation2 + $0x10] sm:$0xff] %v506
  %511 = vst [vmem:[#allocation2 + $0x18] sm:$0xff] %v507
  // Predicated region
  $region22: #{pixelcnnpp_forward.29} parent=0 // pred_check
    %p512 = pneg %p18
  $region23: #{pixelcnnpp_forward.29} parent=0 // pred_check_branch
    %514 = sbr.rel (%p512) target = $region25
  $region24: #{pixelcnnpp_forward.29} parent=0 // pred_region
    %v515 = vld [vmem:[#allocation2] sm:$0xff]
    %v516 = vld [vmem:[#allocation2 + $0x8] sm:$0xff]
    %v517 = vld [vmem:[#allocation2 + $0x10] sm:$0xff]
    %v518 = vld [vmem:[#allocation2 + $0x18] sm:$0xff]
    %v519 = vld [vmem:[%s3] sm:$0x1]
    %v521 = vlaneseq
    %v522 = vshrl.u32 %v521, 7
    %v523 = vsub.s32 0, %v522
    %v524 = vrot.slane %v519, %v523
    %v526 = vadd.f32 %v515, %v524
    %v527 = vadd.f32 %v516, %v524
    %v528 = vadd.f32 %v517, %v524
    %v529 = vadd.f32 %v518, %v524
    %530 = vst [vmem:[%s4] sm:$0xff] %v526
    %531 = vst [vmem:[%s4 + $0x8] sm:$0xff] %v527
    %532 = vst [vmem:[%s4 + $0x10] sm:$0xff] %v528
    %533 = vst [vmem:[%s4 + $0x18] sm:$0xff] %v529
  $region25: #{pixelcnnpp_forward.29} parent=0 // pred_fallthru
    _
  // Predicated region
  $region26: #{pixelcnnpp_forward.29} parent=0 // pred_check
    _
  $region27: #{pixelcnnpp_forward.29} parent=0 // pred_check_branch
    %535 = sbr.rel (0) target = $region29
  $region28: #{pixelcnnpp_forward.29} parent=0 // pred_region
    _
  $region29: #{pixelcnnpp_forward.29} parent=0 // pred_fallthru
    _
  // Predicated region
  $region30: #{pixelcnnpp_forward.29} parent=0 // pred_check
    _
  $region31: #{pixelcnnpp_forward.29} parent=0 // pred_check_branch
    %537 = sbr.rel (0) target = $region33
  $region32: #{pixelcnnpp_forward.29} parent=0 // pred_region
    _
  $region33: #{pixelcnnpp_forward.29} parent=0 // pred_fallthru
    _

// kernel: pixelcnnpp_forward.30
$region0: #{pixelcnnpp_forward.30}
  #allocation0 [shape = 'u32[]', space=smem, size = 0x4, offset = 0x4, fixed_abs, tag = 'smem constant byte address 0x4 - core index']
  #allocation1 [shape = 'u32[144,128]{1,0:T(1,128)}', space=vmem, size = 0x12000, scoped, tag = 'internal scratch']
  #allocation2 [shape = 'f32[32,128]{1,0:T(8,128)}', space=vmem, size = 0x4000, scoped, tag = 'scratch operand']
  #allocation3 [shape = 'f32[32,128]{1,0:T(8,128)}', space=vmem, size = 0x4000, scoped, tag = 'scratch operand']
  %s0 = inlined_call_operand.vmem [shape: bf16[32,256], index: 0, kind: input, shape index: {}]
  %s1 = inlined_call_operand.vmem [shape: bf16[256,128], index: 1, kind: input, shape index: {}]
  %s2 = inlined_call_operand.vmem [shape: bf16[256,128], index: 2, kind: input, shape index: {}]
  %s3 = inlined_call_operand.vmem [shape: bf16[256,128], index: 3, kind: input, shape index: {}]
  %s4 = inlined_call_operand.vmem [shape: bf16[256,128], index: 4, kind: input, shape index: {}]
  %s5 = inlined_call_operand.vmem [shape: f32[1,128], index: 5, kind: input, shape index: {}]
  %s6 = inlined_call_operand.vmem [shape: f32[1,128], index: 6, kind: input, shape index: {}]
  %s7 = inlined_call_operand.vmem [shape: f32[32,128], index: 7, kind: input, shape index: {}]
  %s8 = inlined_call_operand.vmem [shape: f32[32,128], index: 8, kind: output, shape index: {}]
  %s9 = sld [smem:[#allocation0]]
  $region50: #{pixelcnnpp_forward.30} parent=0
    _
  %s11 = ssub.s32 1, %s9
  %s12 = scalar_select 0, %s11, %s9
  // Predicated region
  $region2: #{pixelcnnpp_forward.30} parent=0 // pred_check
    _
  $region3: #{pixelcnnpp_forward.30} parent=0 // pred_check_branch
    %14 = sbr.rel (0) target = $region5
  $region4: #{pixelcnnpp_forward.30} parent=0 // pred_region
    _
  $region5: #{pixelcnnpp_forward.30} parent=0 // pred_fallthru
    _
  // Predicated region
  $region6: #{pixelcnnpp_forward.30} parent=0 // pred_check
    _
  $region7: #{pixelcnnpp_forward.30} parent=0 // pred_check_branch
    %16 = sbr.rel (0) target = $region9
  $region8: #{pixelcnnpp_forward.30} parent=0 // pred_region
    _
  $region9: #{pixelcnnpp_forward.30} parent=0 // pred_fallthru
    _
  // Predicated region
  $region10: #{pixelcnnpp_forward.30} parent=0 // pred_check
    _
  $region11: #{pixelcnnpp_forward.30} parent=0 // pred_check_branch
    %18 = sbr.rel (0) target = $region13
  $region12: #{pixelcnnpp_forward.30} parent=0 // pred_region
    _
  $region13: #{pixelcnnpp_forward.30} parent=0 // pred_fallthru
    _
  // Predicated region
  $region14: #{pixelcnnpp_forward.30} parent=0 // pred_check
    _
  $region15: #{pixelcnnpp_forward.30} parent=0 // pred_check_branch
    %20 = sbr.rel (0) target = $region17
  $region16: #{pixelcnnpp_forward.30} parent=0 // pred_region
    _
  $region17: #{pixelcnnpp_forward.30} parent=0 // pred_fallthru
    _
  // Predicated region
  $region18: #{pixelcnnpp_forward.30} parent=0 // pred_check
    _
  $region19: #{pixelcnnpp_forward.30} parent=0 // pred_check_branch
    %22 = sbr.rel (0) target = $region21
  $region20: #{pixelcnnpp_forward.30} parent=0 // pred_region
    _
  $region21: #{pixelcnnpp_forward.30} parent=0 // pred_fallthru
    _
  // Predicated region
  $region22: #{pixelcnnpp_forward.30} parent=0 // pred_check
    _
  $region23: #{pixelcnnpp_forward.30} parent=0 // pred_check_branch
    %24 = sbr.rel (0) target = $region25
  $region24: #{pixelcnnpp_forward.30} parent=0 // pred_region
    _
  $region25: #{pixelcnnpp_forward.30} parent=0 // pred_fallthru
    _
  // Predicated region
  $region26: #{pixelcnnpp_forward.30} parent=0 // pred_check
    _
  $region27: #{pixelcnnpp_forward.30} parent=0 // pred_check_branch
    %26 = sbr.rel (0) target = $region29
  $region28: #{pixelcnnpp_forward.30} parent=0 // pred_region
    _
  $region29: #{pixelcnnpp_forward.30} parent=0 // pred_fallthru
    _
  // Predicated region
  $region30: #{pixelcnnpp_forward.30} parent=0 // pred_check
    _
  $region31: #{pixelcnnpp_forward.30} parent=0 // pred_check_branch
    %28 = sbr.rel (0) target = $region33
  $region32: #{pixelcnnpp_forward.30} parent=0 // pred_region
    _
  $region33: #{pixelcnnpp_forward.30} parent=0 // pred_fallthru
    _
  %p30 = scmp.eq.s32.totalorder 0, 0
  // Predicated region
  $region34: #{pixelcnnpp_forward.30} parent=0 // pred_check
    %p31 = pneg %p30
  $region35: #{pixelcnnpp_forward.30} parent=0 // pred_check_branch
    %33 = sbr.rel (%p31) target = $region37
  $region36: #{pixelcnnpp_forward.30} parent=0 // pred_region
    %34 = vst [vmem:[#allocation2] sm:$0xff] 0.0
    %35 = vst [vmem:[#allocation2 + $0x8] sm:$0xff] 0.0
    %36 = vst [vmem:[#allocation2 + $0x10] sm:$0xff] 0.0
    %37 = vst [vmem:[#allocation2 + $0x18] sm:$0xff] 0.0
    %38 = vst [vmem:[#allocation3] sm:$0xff] 0.0
    %39 = vst [vmem:[#allocation3 + $0x8] sm:$0xff] 0.0
    %40 = vst [vmem:[#allocation3 + $0x10] sm:$0xff] 0.0
    %41 = vst [vmem:[#allocation3 + $0x18] sm:$0xff] 0.0
  $region37: #{pixelcnnpp_forward.30} parent=0 // pred_fallthru
    _
  %v42 = vld [vmem:[%s0] sm:$0xff]
  %v43 = vld [vmem:[%s0 + $0x8] sm:$0xff]
  %v44 = vld [vmem:[%s0 + $0x10] sm:$0xff]
  %v45 = vld [vmem:[%s0 + $0x18] sm:$0xff]
  %v46 = vunpack.c.l.bf16 %v42
  %v47 = vunpack.c.h.bf16 %v42
  %v48 = vunpack.c.l.bf16 %v43
  %v49 = vunpack.c.h.bf16 %v43
  %v50 = vunpack.c.l.bf16 %v44
  %v51 = vunpack.c.h.bf16 %v44
  %v52 = vunpack.c.l.bf16 %v45
  %v53 = vunpack.c.h.bf16 %v45
  %vm54 = vcmp.gt.f32.partialorder %v46, 0.0
  %vm55 = vcmp.gt.f32.partialorder %v47, 0.0
  %vm56 = vcmp.gt.f32.partialorder %v48, 0.0
  %vm57 = vcmp.gt.f32.partialorder %v49, 0.0
  %vm58 = vcmp.gt.f32.partialorder %v50, 0.0
  %vm59 = vcmp.gt.f32.partialorder %v51, 0.0
  %vm60 = vcmp.gt.f32.partialorder %v52, 0.0
  %vm61 = vcmp.gt.f32.partialorder %v53, 0.0
  %v62 = vmul.f32 %v46, 1.442695
  %v63 = vpow.pop %v62
  %v64 = vmul.f32 %v47, 1.442695
  %v65 = vpow.pop %v64
  %v66 = vmul.f32 %v48, 1.442695
  %v67 = vpow.pop %v66
  %v68 = vmul.f32 %v49, 1.442695
  %v69 = vpow.pop %v68
  %v70 = vmul.f32 %v50, 1.442695
  %v71 = vpow.pop %v70
  %v72 = vmul.f32 %v51, 1.442695
  %v73 = vpow.pop %v72
  %v74 = vmul.f32 %v52, 1.442695
  %v75 = vpow.pop %v74
  %v76 = vmul.f32 %v53, 1.442695
  %v77 = vpow.pop %v76
  %v78 = vsub.f32 %v63, 1.0
  %v79 = vsub.f32 %v65, 1.0
  %v80 = vsub.f32 %v67, 1.0
  %v81 = vsub.f32 %v69, 1.0
  %v82 = vsub.f32 %v71, 1.0
  %v83 = vsub.f32 %v73, 1.0
  %v84 = vsub.f32 %v75, 1.0
  %v85 = vsub.f32 %v77, 1.0
  %v86 = vsel %vm54, %v46, %v78
  %v87 = vsel %vm55, %v47, %v79
  %v88 = vsel %vm56, %v48, %v80
  %v89 = vsel %vm57, %v49, %v81
  %v90 = vsel %vm58, %v50, %v82
  %v91 = vsel %vm59, %v51, %v83
  %v92 = vsel %vm60, %v52, %v84
  %v93 = vsel %vm61, %v53, %v85
  %v94 = vpack.c.bf16 %v88, %v86
  %v95 = vpack.c.bf16 %v89, %v87
  %v96 = vpack.c.bf16 %v92, %v90
  %v97 = vpack.c.bf16 %v93, %v91
  %vm98 = vcmp.lt.f32.partialorder %v46, 0.0
  %vm99 = vcmp.lt.f32.partialorder %v47, 0.0
  %vm100 = vcmp.lt.f32.partialorder %v48, 0.0
  %vm101 = vcmp.lt.f32.partialorder %v49, 0.0
  %vm102 = vcmp.lt.f32.partialorder %v50, 0.0
  %vm103 = vcmp.lt.f32.partialorder %v51, 0.0
  %vm104 = vcmp.lt.f32.partialorder %v52, 0.0
  %vm105 = vcmp.lt.f32.partialorder %v53, 0.0
  %v106 = vsub.f32 0.0, %v46
  %v107 = vsub.f32 0.0, %v47
  %v108 = vsub.f32 0.0, %v48
  %v109 = vsub.f32 0.0, %v49
  %v110 = vsub.f32 0.0, %v50
  %v111 = vsub.f32 0.0, %v51
  %v112 = vsub.f32 0.0, %v52
  %v113 = vsub.f32 0.0, %v53
  %v114 = vmul.f32 %v106, 1.442695
  %v115 = vpow.pop %v114
  %v116 = vmul.f32 %v107, 1.442695
  %v117 = vpow.pop %v116
  %v118 = vmul.f32 %v108, 1.442695
  %v119 = vpow.pop %v118
  %v120 = vmul.f32 %v109, 1.442695
  %v121 = vpow.pop %v120
  %v122 = vmul.f32 %v110, 1.442695
  %v123 = vpow.pop %v122
  %v124 = vmul.f32 %v111, 1.442695
  %v125 = vpow.pop %v124
  %v126 = vmul.f32 %v112, 1.442695
  %v127 = vpow.pop %v126
  %v128 = vmul.f32 %v113, 1.442695
  %v129 = vpow.pop %v128
  %v130 = vsub.f32 %v115, 1.0
  %v131 = vsub.f32 %v117, 1.0
  %v132 = vsub.f32 %v119, 1.0
  %v133 = vsub.f32 %v121, 1.0
  %v134 = vsub.f32 %v123, 1.0
  %v135 = vsub.f32 %v125, 1.0
  %v136 = vsub.f32 %v127, 1.0
  %v137 = vsub.f32 %v129, 1.0
  %v138 = vsel %vm98, %v106, %v130
  %v139 = vsel %vm99, %v107, %v131
  %v140 = vsel %vm100, %v108, %v132
  %v141 = vsel %vm101, %v109, %v133
  %v142 = vsel %vm102, %v110, %v134
  %v143 = vsel %vm103, %v111, %v135
  %v144 = vsel %vm104, %v112, %v136
  %v145 = vsel %vm105, %v113, %v137
  %v146 = vpack.c.bf16 %v140, %v138
  %v147 = vpack.c.bf16 %v141, %v139
  %v148 = vpack.c.bf16 %v144, %v142
  %v149 = vpack.c.bf16 %v145, %v143
  %v150 = vld [vmem:[#allocation2] sm:$0xff]
  %v151 = vld [vmem:[#allocation2 + $0x8] sm:$0xff]
  %v152 = vld [vmem:[#allocation2 + $0x10] sm:$0xff]
  %v153 = vld [vmem:[#allocation2 + $0x18] sm:$0xff]
  %v154 = vld [vmem:[%s1] sm:$0xf]
  %v155 = vld [vmem:[%s1 + $0x4] sm:$0xf]
  %v156 = vld [vmem:[%s1 + $0x8] sm:$0xf]
  %v157 = vld [vmem:[%s1 + $0xc] sm:$0xf]
  %v158 = vld [vmem:[%s1 + $0x10] sm:$0xf]
  %v159 = vld [vmem:[%s1 + $0x14] sm:$0xf]
  %v160 = vld [vmem:[%s1 + $0x18] sm:$0xf]
  %v161 = vld [vmem:[%s1 + $0x1c] sm:$0xf]
  %v162 = vld [vmem:[%s1 + $0x20] sm:$0xf]
  %v163 = vld [vmem:[%s1 + $0x24] sm:$0xf]
  %v164 = vld [vmem:[%s1 + $0x28] sm:$0xf]
  %v165 = vld [vmem:[%s1 + $0x2c] sm:$0xf]
  %v166 = vld [vmem:[%s1 + $0x30] sm:$0xf]
  %v167 = vld [vmem:[%s1 + $0x34] sm:$0xf]
  %v168 = vld [vmem:[%s1 + $0x38] sm:$0xf]
  %v169 = vld [vmem:[%s1 + $0x3c] sm:$0xf]
  %v170 = vld [vmem:[%s1 + $0x40] sm:$0xf]
  %v171 = vld [vmem:[%s1 + $0x44] sm:$0xf]
  %v172 = vld [vmem:[%s1 + $0x48] sm:$0xf]
  %v173 = vld [vmem:[%s1 + $0x4c] sm:$0xf]
  %v174 = vld [vmem:[%s1 + $0x50] sm:$0xf]
  %v175 = vld [vmem:[%s1 + $0x54] sm:$0xf]
  %v176 = vld [vmem:[%s1 + $0x58] sm:$0xf]
  %v177 = vld [vmem:[%s1 + $0x5c] sm:$0xf]
  %v178 = vld [vmem:[%s1 + $0x60] sm:$0xf]
  %v179 = vld [vmem:[%s1 + $0x64] sm:$0xf]
  %v180 = vld [vmem:[%s1 + $0x68] sm:$0xf]
  %v181 = vld [vmem:[%s1 + $0x6c] sm:$0xf]
  %v182 = vld [vmem:[%s1 + $0x70] sm:$0xf]
  %v183 = vld [vmem:[%s1 + $0x74] sm:$0xf]
  %v184 = vld [vmem:[%s1 + $0x78] sm:$0xf]
  %v185 = vld [vmem:[%s1 + $0x7c] sm:$0xf]
  %v218 = vunpack.c.l.b16 %v154
  %v219 = vunpack.c.l.b16 %v155
  %v220 = vunpack.c.l.b16 %v156
  %v221 = vunpack.c.l.b16 %v157
  %v222 = vunpack.c.l.b16 %v158
  %v223 = vunpack.c.l.b16 %v159
  %v224 = vunpack.c.l.b16 %v160
  %v225 = vunpack.c.l.b16 %v161
  %v226 = vunpack.c.l.b16 %v162
  %v227 = vunpack.c.l.b16 %v163
  %v228 = vunpack.c.l.b16 %v164
  %v229 = vunpack.c.l.b16 %v165
  %v230 = vunpack.c.l.b16 %v166
  %v231 = vunpack.c.l.b16 %v167
  %v232 = vunpack.c.l.b16 %v168
  %v233 = vunpack.c.l.b16 %v169
  %v234 = vunpack.c.l.b16 %v170
  %v235 = vunpack.c.l.b16 %v171
  %v236 = vunpack.c.l.b16 %v172
  %v237 = vunpack.c.l.b16 %v173
  %v238 = vunpack.c.l.b16 %v174
  %v239 = vunpack.c.l.b16 %v175
  %v240 = vunpack.c.l.b16 %v176
  %v241 = vunpack.c.l.b16 %v177
  %v242 = vunpack.c.l.b16 %v178
  %v243 = vunpack.c.l.b16 %v179
  %v244 = vunpack.c.l.b16 %v180
  %v245 = vunpack.c.l.b16 %v181
  %v246 = vunpack.c.l.b16 %v182
  %v247 = vunpack.c.l.b16 %v183
  %v248 = vunpack.c.l.b16 %v184
  %v249 = vunpack.c.l.b16 %v185
  %v250 = vpack.c.b16 %v219, %v218
  %v251 = vpack.c.b16 %v221, %v220
  %v252 = vpack.c.b16 %v223, %v222
  %v253 = vpack.c.b16 %v225, %v224
  %v254 = vpack.c.b16 %v227, %v226
  %v255 = vpack.c.b16 %v229, %v228
  %v256 = vpack.c.b16 %v231, %v230
  %v257 = vpack.c.b16 %v233, %v232
  %v258 = vpack.c.b16 %v235, %v234
  %v259 = vpack.c.b16 %v237, %v236
  %v260 = vpack.c.b16 %v239, %v238
  %v261 = vpack.c.b16 %v241, %v240
  %v262 = vpack.c.b16 %v243, %v242
  %v263 = vpack.c.b16 %v245, %v244
  %v264 = vpack.c.b16 %v247, %v246
  %v265 = vpack.c.b16 %v249, %v248
  %282 = vmatprep.subr.bf16.mxu0 0
  %283 = vmatpush1.bf16.msra.mxu0 %v257
  %284 = vmatprep.subr.bf16.mxu0 0
  %285 = vmatpush1.bf16.msra.mxu0 %v256
  %286 = vmatprep.subr.bf16.mxu0 0
  %287 = vmatpush1.bf16.msra.mxu0 %v255
  %288 = vmatprep.subr.bf16.mxu0 0
  %289 = vmatpush1.bf16.msra.mxu0 %v254
  %290 = vmatprep.subr.bf16.mxu0 0
  %291 = vmatpush1.bf16.msra.mxu0 %v253
  %292 = vmatprep.subr.bf16.mxu0 0
  %293 = vmatpush1.bf16.msra.mxu0 %v252
  %294 = vmatprep.subr.bf16.mxu0 0
  %295 = vmatpush1.bf16.msra.mxu0 %v251
  %296 = vmatprep.subr.bf16.mxu0 0
  %297 = vmatpush1.bf16.msra.mxu0 %v250
  %298 = vmatprep.subr.bf16.mxu0 0
  %299 = vmatpush2.bf16.msra.mxu0 %v265
  %300 = vmatprep.subr.bf16.mxu0 0
  %301 = vmatpush2.bf16.msra.mxu0 %v264
  %302 = vmatprep.subr.bf16.mxu0 0
  %303 = vmatpush2.bf16.msra.mxu0 %v263
  %304 = vmatprep.subr.bf16.mxu0 0
  %305 = vmatpush2.bf16.msra.mxu0 %v262
  %306 = vmatprep.subr.bf16.mxu0 0
  %307 = vmatpush2.bf16.msra.mxu0 %v261
  %308 = vmatprep.subr.bf16.mxu0 0
  %309 = vmatpush2.bf16.msra.mxu0 %v260
  %310 = vmatprep.subr.bf16.mxu0 0
  %311 = vmatpush2.bf16.msra.mxu0 %v259
  %312 = vmatprep.subr.bf16.mxu0 0
  %313 = vmatpush2.bf16.msra.mxu0 %v258
  %314 = vmatprep.mubr.bf16.mxu0 %v95
  %315 = vmatmul.mubr.bf16.gmra.mxu0 %v94
  %v316 = vpop.f32.mrf.mxu0
  %v317 = vadd.f32 0.0, %v316
  %v318 = vpop.f32.mrf.mxu0
  %v319 = vpop.f32.mrf.mxu0
  %v320 = vadd.f32 0.0, %v319
  %v321 = vpop.f32.mrf.mxu0
  %322 = vmatprep.mubr.bf16.mxu0 %v97
  %323 = vmatmul.mubr.bf16.gmra.mxu0 %v96
  %v324 = vpop.f32.mrf.mxu0
  %v325 = vadd.f32 0.0, %v324
  %v326 = vpop.f32.mrf.mxu0
  %v327 = vpop.f32.mrf.mxu0
  %v328 = vadd.f32 0.0, %v327
  %v329 = vpop.f32.mrf.mxu0
  %330 = vdwg.mxu0
  %v331 = vadd.f32 %v150, %v317
  %v332 = vadd.f32 %v151, %v320
  %v333 = vadd.f32 %v152, %v325
  %v334 = vadd.f32 %v153, %v328
  %335 = vst [vmem:[#allocation2] sm:$0xff] %v331
  %336 = vst [vmem:[#allocation2 + $0x8] sm:$0xff] %v332
  %337 = vst [vmem:[#allocation2 + $0x10] sm:$0xff] %v333
  %338 = vst [vmem:[#allocation2 + $0x18] sm:$0xff] %v334
  %v339 = vld [vmem:[#allocation3] sm:$0xff]
  %v340 = vld [vmem:[#allocation3 + $0x8] sm:$0xff]
  %v341 = vld [vmem:[#allocation3 + $0x10] sm:$0xff]
  %v342 = vld [vmem:[#allocation3 + $0x18] sm:$0xff]
  %v343 = vld [vmem:[%s3] sm:$0xf]
  %v344 = vld [vmem:[%s3 + $0x4] sm:$0xf]
  %v345 = vld [vmem:[%s3 + $0x8] sm:$0xf]
  %v346 = vld [vmem:[%s3 + $0xc] sm:$0xf]
  %v347 = vld [vmem:[%s3 + $0x10] sm:$0xf]
  %v348 = vld [vmem:[%s3 + $0x14] sm:$0xf]
  %v349 = vld [vmem:[%s3 + $0x18] sm:$0xf]
  %v350 = vld [vmem:[%s3 + $0x1c] sm:$0xf]
  %v351 = vld [vmem:[%s3 + $0x20] sm:$0xf]
  %v352 = vld [vmem:[%s3 + $0x24] sm:$0xf]
  %v353 = vld [vmem:[%s3 + $0x28] sm:$0xf]
  %v354 = vld [vmem:[%s3 + $0x2c] sm:$0xf]
  %v355 = vld [vmem:[%s3 + $0x30] sm:$0xf]
  %v356 = vld [vmem:[%s3 + $0x34] sm:$0xf]
  %v357 = vld [vmem:[%s3 + $0x38] sm:$0xf]
  %v358 = vld [vmem:[%s3 + $0x3c] sm:$0xf]
  %v359 = vld [vmem:[%s3 + $0x40] sm:$0xf]
  %v360 = vld [vmem:[%s3 + $0x44] sm:$0xf]
  %v361 = vld [vmem:[%s3 + $0x48] sm:$0xf]
  %v362 = vld [vmem:[%s3 + $0x4c] sm:$0xf]
  %v363 = vld [vmem:[%s3 + $0x50] sm:$0xf]
  %v364 = vld [vmem:[%s3 + $0x54] sm:$0xf]
  %v365 = vld [vmem:[%s3 + $0x58] sm:$0xf]
  %v366 = vld [vmem:[%s3 + $0x5c] sm:$0xf]
  %v367 = vld [vmem:[%s3 + $0x60] sm:$0xf]
  %v368 = vld [vmem:[%s3 + $0x64] sm:$0xf]
  %v369 = vld [vmem:[%s3 + $0x68] sm:$0xf]
  %v370 = vld [vmem:[%s3 + $0x6c] sm:$0xf]
  %v371 = vld [vmem:[%s3 + $0x70] sm:$0xf]
  %v372 = vld [vmem:[%s3 + $0x74] sm:$0xf]
  %v373 = vld [vmem:[%s3 + $0x78] sm:$0xf]
  %v374 = vld [vmem:[%s3 + $0x7c] sm:$0xf]
  %v407 = vunpack.c.l.b16 %v343
  %v408 = vunpack.c.l.b16 %v344
  %v409 = vunpack.c.l.b16 %v345
  %v410 = vunpack.c.l.b16 %v346
  %v411 = vunpack.c.l.b16 %v347
  %v412 = vunpack.c.l.b16 %v348
  %v413 = vunpack.c.l.b16 %v349
  %v414 = vunpack.c.l.b16 %v350
  %v415 = vunpack.c.l.b16 %v351
  %v416 = vunpack.c.l.b16 %v352
  %v417 = vunpack.c.l.b16 %v353
  %v418 = vunpack.c.l.b16 %v354
  %v419 = vunpack.c.l.b16 %v355
  %v420 = vunpack.c.l.b16 %v356
  %v421 = vunpack.c.l.b16 %v357
  %v422 = vunpack.c.l.b16 %v358
  %v423 = vunpack.c.l.b16 %v359
  %v424 = vunpack.c.l.b16 %v360
  %v425 = vunpack.c.l.b16 %v361
  %v426 = vunpack.c.l.b16 %v362
  %v427 = vunpack.c.l.b16 %v363
  %v428 = vunpack.c.l.b16 %v364
  %v429 = vunpack.c.l.b16 %v365
  %v430 = vunpack.c.l.b16 %v366
  %v431 = vunpack.c.l.b16 %v367
  %v432 = vunpack.c.l.b16 %v368
  %v433 = vunpack.c.l.b16 %v369
  %v434 = vunpack.c.l.b16 %v370
  %v435 = vunpack.c.l.b16 %v371
  %v436 = vunpack.c.l.b16 %v372
  %v437 = vunpack.c.l.b16 %v373
  %v438 = vunpack.c.l.b16 %v374
  %v439 = vpack.c.b16 %v408, %v407
  %v440 = vpack.c.b16 %v410, %v409
  %v441 = vpack.c.b16 %v412, %v411
  %v442 = vpack.c.b16 %v414, %v413
  %v443 = vpack.c.b16 %v416, %v415
  %v444 = vpack.c.b16 %v418, %v417
  %v445 = vpack.c.b16 %v420, %v419
  %v446 = vpack.c.b16 %v422, %v421
  %v447 = vpack.c.b16 %v424, %v423
  %v448 = vpack.c.b16 %v426, %v425
  %v449 = vpack.c.b16 %v428, %v427
  %v450 = vpack.c.b16 %v430, %v429
  %v451 = vpack.c.b16 %v432, %v431
  %v452 = vpack.c.b16 %v434, %v433
  %v453 = vpack.c.b16 %v436, %v435
  %v454 = vpack.c.b16 %v438, %v437
  %471 = vmatprep.subr.bf16.mxu0 0
  %472 = vmatpush1.bf16.msra.mxu0 %v446
  %473 = vmatprep.subr.bf16.mxu0 0
  %474 = vmatpush1.bf16.msra.mxu0 %v445
  %475 = vmatprep.subr.bf16.mxu0 0
  %476 = vmatpush1.bf16.msra.mxu0 %v444
  %477 = vmatprep.subr.bf16.mxu0 0
  %478 = vmatpush1.bf16.msra.mxu0 %v443
  %479 = vmatprep.subr.bf16.mxu0 0
  %480 = vmatpush1.bf16.msra.mxu0 %v442
  %481 = vmatprep.subr.bf16.mxu0 0
  %482 = vmatpush1.bf16.msra.mxu0 %v441
  %483 = vmatprep.subr.bf16.mxu0 0
  %484 = vmatpush1.bf16.msra.mxu0 %v440
  %485 = vmatprep.subr.bf16.mxu0 0
  %486 = vmatpush1.bf16.msra.mxu0 %v439
  %487 = vmatprep.subr.bf16.mxu0 0
  %488 = vmatpush2.bf16.msra.mxu0 %v454
  %489 = vmatprep.subr.bf16.mxu0 0
  %490 = vmatpush2.bf16.msra.mxu0 %v453
  %491 = vmatprep.subr.bf16.mxu0 0
  %492 = vmatpush2.bf16.msra.mxu0 %v452
  %493 = vmatprep.subr.bf16.mxu0 0
  %494 = vmatpush2.bf16.msra.mxu0 %v451
  %495 = vmatprep.subr.bf16.mxu0 0
  %496 = vmatpush2.bf16.msra.mxu0 %v450
  %497 = vmatprep.subr.bf16.mxu0 0
  %498 = vmatpush2.bf16.msra.mxu0 %v449
  %499 = vmatprep.subr.bf16.mxu0 0
  %500 = vmatpush2.bf16.msra.mxu0 %v448
  %501 = vmatprep.subr.bf16.mxu0 0
  %502 = vmatpush2.bf16.msra.mxu0 %v447
  %503 = vmatprep.mubr.bf16.mxu0 %v95
  %504 = vmatmul.mubr.bf16.gmra.mxu0 %v94
  %v505 = vpop.f32.mrf.mxu0
  %v506 = vadd.f32 0.0, %v505
  %v507 = vpop.f32.mrf.mxu0
  %v508 = vpop.f32.mrf.mxu0
  %v509 = vadd.f32 0.0, %v508
  %v510 = vpop.f32.mrf.mxu0
  %511 = vmatprep.mubr.bf16.mxu0 %v97
  %512 = vmatmul.mubr.bf16.gmra.mxu0 %v96
  %v513 = vpop.f32.mrf.mxu0
  %v514 = vadd.f32 0.0, %v513
  %v515 = vpop.f32.mrf.mxu0
  %v516 = vpop.f32.mrf.mxu0
  %v517 = vadd.f32 0.0, %v516
  %v518 = vpop.f32.mrf.mxu0
  %519 = vdwg.mxu0
  %v520 = vadd.f32 %v339, %v506
  %v521 = vadd.f32 %v340, %v509
  %v522 = vadd.f32 %v341, %v514
  %v523 = vadd.f32 %v342, %v517
  %524 = vst [vmem:[#allocation3] sm:$0xff] %v520
  %525 = vst [vmem:[#allocation3 + $0x8] sm:$0xff] %v521
  %526 = vst [vmem:[#allocation3 + $0x10] sm:$0xff] %v522
  %527 = vst [vmem:[#allocation3 + $0x18] sm:$0xff] %v523
  %v528 = vld [vmem:[#allocation2] sm:$0xff]
  %v529 = vld [vmem:[#allocation2 + $0x8] sm:$0xff]
  %v530 = vld [vmem:[#allocation2 + $0x10] sm:$0xff]
  %v531 = vld [vmem:[#allocation2 + $0x18] sm:$0xff]
  %v532 = vld [vmem:[%s2] sm:$0xf]
  %v533 = vld [vmem:[%s2 + $0x4] sm:$0xf]
  %v534 = vld [vmem:[%s2 + $0x8] sm:$0xf]
  %v535 = vld [vmem:[%s2 + $0xc] sm:$0xf]
  %v536 = vld [vmem:[%s2 + $0x10] sm:$0xf]
  %v537 = vld [vmem:[%s2 + $0x14] sm:$0xf]
  %v538 = vld [vmem:[%s2 + $0x18] sm:$0xf]
  %v539 = vld [vmem:[%s2 + $0x1c] sm:$0xf]
  %v540 = vld [vmem:[%s2 + $0x20] sm:$0xf]
  %v541 = vld [vmem:[%s2 + $0x24] sm:$0xf]
  %v542 = vld [vmem:[%s2 + $0x28] sm:$0xf]
  %v543 = vld [vmem:[%s2 + $0x2c] sm:$0xf]
  %v544 = vld [vmem:[%s2 + $0x30] sm:$0xf]
  %v545 = vld [vmem:[%s2 + $0x34] sm:$0xf]
  %v546 = vld [vmem:[%s2 + $0x38] sm:$0xf]
  %v547 = vld [vmem:[%s2 + $0x3c] sm:$0xf]
  %v548 = vld [vmem:[%s2 + $0x40] sm:$0xf]
  %v549 = vld [vmem:[%s2 + $0x44] sm:$0xf]
  %v550 = vld [vmem:[%s2 + $0x48] sm:$0xf]
  %v551 = vld [vmem:[%s2 + $0x4c] sm:$0xf]
  %v552 = vld [vmem:[%s2 + $0x50] sm:$0xf]
  %v553 = vld [vmem:[%s2 + $0x54] sm:$0xf]
  %v554 = vld [vmem:[%s2 + $0x58] sm:$0xf]
  %v555 = vld [vmem:[%s2 + $0x5c] sm:$0xf]
  %v556 = vld [vmem:[%s2 + $0x60] sm:$0xf]
  %v557 = vld [vmem:[%s2 + $0x64] sm:$0xf]
  %v558 = vld [vmem:[%s2 + $0x68] sm:$0xf]
  %v559 = vld [vmem:[%s2 + $0x6c] sm:$0xf]
  %v560 = vld [vmem:[%s2 + $0x70] sm:$0xf]
  %v561 = vld [vmem:[%s2 + $0x74] sm:$0xf]
  %v562 = vld [vmem:[%s2 + $0x78] sm:$0xf]
  %v563 = vld [vmem:[%s2 + $0x7c] sm:$0xf]
  %v596 = vunpack.c.l.b16 %v532
  %v597 = vunpack.c.l.b16 %v533
  %v598 = vunpack.c.l.b16 %v534
  %v599 = vunpack.c.l.b16 %v535
  %v600 = vunpack.c.l.b16 %v536
  %v601 = vunpack.c.l.b16 %v537
  %v602 = vunpack.c.l.b16 %v538
  %v603 = vunpack.c.l.b16 %v539
  %v604 = vunpack.c.l.b16 %v540
  %v605 = vunpack.c.l.b16 %v541
  %v606 = vunpack.c.l.b16 %v542
  %v607 = vunpack.c.l.b16 %v543
  %v608 = vunpack.c.l.b16 %v544
  %v609 = vunpack.c.l.b16 %v545
  %v610 = vunpack.c.l.b16 %v546
  %v611 = vunpack.c.l.b16 %v547
  %v612 = vunpack.c.l.b16 %v548
  %v613 = vunpack.c.l.b16 %v549
  %v614 = vunpack.c.l.b16 %v550
  %v615 = vunpack.c.l.b16 %v551
  %v616 = vunpack.c.l.b16 %v552
  %v617 = vunpack.c.l.b16 %v553
  %v618 = vunpack.c.l.b16 %v554
  %v619 = vunpack.c.l.b16 %v555
  %v620 = vunpack.c.l.b16 %v556
  %v621 = vunpack.c.l.b16 %v557
  %v622 = vunpack.c.l.b16 %v558
  %v623 = vunpack.c.l.b16 %v559
  %v624 = vunpack.c.l.b16 %v560
  %v625 = vunpack.c.l.b16 %v561
  %v626 = vunpack.c.l.b16 %v562
  %v627 = vunpack.c.l.b16 %v563
  %v628 = vpack.c.b16 %v597, %v596
  %v629 = vpack.c.b16 %v599, %v598
  %v630 = vpack.c.b16 %v601, %v600
  %v631 = vpack.c.b16 %v603, %v602
  %v632 = vpack.c.b16 %v605, %v604
  %v633 = vpack.c.b16 %v607, %v606
  %v634 = vpack.c.b16 %v609, %v608
  %v635 = vpack.c.b16 %v611, %v610
  %v636 = vpack.c.b16 %v613, %v612
  %v637 = vpack.c.b16 %v615, %v614
  %v638 = vpack.c.b16 %v617, %v616
  %v639 = vpack.c.b16 %v619, %v618
  %v640 = vpack.c.b16 %v621, %v620
  %v641 = vpack.c.b16 %v623, %v622
  %v642 = vpack.c.b16 %v625, %v624
  %v643 = vpack.c.b16 %v627, %v626
  %660 = vmatprep.subr.bf16.mxu0 0
  %661 = vmatpush1.bf16.msra.mxu0 %v635
  %662 = vmatprep.subr.bf16.mxu0 0
  %663 = vmatpush1.bf16.msra.mxu0 %v634
  %664 = vmatprep.subr.bf16.mxu0 0
  %665 = vmatpush1.bf16.msra.mxu0 %v633
  %666 = vmatprep.subr.bf16.mxu0 0
  %667 = vmatpush1.bf16.msra.mxu0 %v632
  %668 = vmatprep.subr.bf16.mxu0 0
  %669 = vmatpush1.bf16.msra.mxu0 %v631
  %670 = vmatprep.subr.bf16.mxu0 0
  %671 = vmatpush1.bf16.msra.mxu0 %v630
  %672 = vmatprep.subr.bf16.mxu0 0
  %673 = vmatpush1.bf16.msra.mxu0 %v629
  %674 = vmatprep.subr.bf16.mxu0 0
  %675 = vmatpush1.bf16.msra.mxu0 %v628
  %676 = vmatprep.subr.bf16.mxu0 0
  %677 = vmatpush2.bf16.msra.mxu0 %v643
  %678 = vmatprep.subr.bf16.mxu0 0
  %679 = vmatpush2.bf16.msra.mxu0 %v642
  %680 = vmatprep.subr.bf16.mxu0 0
  %681 = vmatpush2.bf16.msra.mxu0 %v641
  %682 = vmatprep.subr.bf16.mxu0 0
  %683 = vmatpush2.bf16.msra.mxu0 %v640
  %684 = vmatprep.subr.bf16.mxu0 0
  %685 = vmatpush2.bf16.msra.mxu0 %v639
  %686 = vmatprep.subr.bf16.mxu0 0
  %687 = vmatpush2.bf16.msra.mxu0 %v638
  %688 = vmatprep.subr.bf16.mxu0 0
  %689 = vmatpush2.bf16.msra.mxu0 %v637
  %690 = vmatprep.subr.bf16.mxu0 0
  %691 = vmatpush2.bf16.msra.mxu0 %v636
  %692 = vmatprep.mubr.bf16.mxu0 %v147
  %693 = vmatmul.mubr.bf16.gmra.mxu0 %v146
  %v694 = vpop.f32.mrf.mxu0
  %v695 = vadd.f32 0.0, %v694
  %v696 = vpop.f32.mrf.mxu0
  %v697 = vpop.f32.mrf.mxu0
  %v698 = vadd.f32 0.0, %v697
  %v699 = vpop.f32.mrf.mxu0
  %700 = vmatprep.mubr.bf16.mxu0 %v149
  %701 = vmatmul.mubr.bf16.gmra.mxu0 %v148
  %v702 = vpop.f32.mrf.mxu0
  %v703 = vadd.f32 0.0, %v702
  %v704 = vpop.f32.mrf.mxu0
  %v705 = vpop.f32.mrf.mxu0
  %v706 = vadd.f32 0.0, %v705
  %v707 = vpop.f32.mrf.mxu0
  %708 = vdwg.mxu0
  %v709 = vadd.f32 %v528, %v695
  %v710 = vadd.f32 %v529, %v698
  %v711 = vadd.f32 %v530, %v703
  %v712 = vadd.f32 %v531, %v706
  %713 = vst [vmem:[#allocation2] sm:$0xff] %v709
  %714 = vst [vmem:[#allocation2 + $0x8] sm:$0xff] %v710
  %715 = vst [vmem:[#allocation2 + $0x10] sm:$0xff] %v711
  %716 = vst [vmem:[#allocation2 + $0x18] sm:$0xff] %v712
  %v717 = vld [vmem:[#allocation3] sm:$0xff]
  %v718 = vld [vmem:[#allocation3 + $0x8] sm:$0xff]
  %v719 = vld [vmem:[#allocation3 + $0x10] sm:$0xff]
  %v720 = vld [vmem:[#allocation3 + $0x18] sm:$0xff]
  %v721 = vld [vmem:[%s4] sm:$0xf]
  %v722 = vld [vmem:[%s4 + $0x4] sm:$0xf]
  %v723 = vld [vmem:[%s4 + $0x8] sm:$0xf]
  %v724 = vld [vmem:[%s4 + $0xc] sm:$0xf]
  %v725 = vld [vmem:[%s4 + $0x10] sm:$0xf]
  %v726 = vld [vmem:[%s4 + $0x14] sm:$0xf]
  %v727 = vld [vmem:[%s4 + $0x18] sm:$0xf]
  %v728 = vld [vmem:[%s4 + $0x1c] sm:$0xf]
  %v729 = vld [vmem:[%s4 + $0x20] sm:$0xf]
  %v730 = vld [vmem:[%s4 + $0x24] sm:$0xf]
  %v731 = vld [vmem:[%s4 + $0x28] sm:$0xf]
  %v732 = vld [vmem:[%s4 + $0x2c] sm:$0xf]
  %v733 = vld [vmem:[%s4 + $0x30] sm:$0xf]
  %v734 = vld [vmem:[%s4 + $0x34] sm:$0xf]
  %v735 = vld [vmem:[%s4 + $0x38] sm:$0xf]
  %v736 = vld [vmem:[%s4 + $0x3c] sm:$0xf]
  %v737 = vld [vmem:[%s4 + $0x40] sm:$0xf]
  %v738 = vld [vmem:[%s4 + $0x44] sm:$0xf]
  %v739 = vld [vmem:[%s4 + $0x48] sm:$0xf]
  %v740 = vld [vmem:[%s4 + $0x4c] sm:$0xf]
  %v741 = vld [vmem:[%s4 + $0x50] sm:$0xf]
  %v742 = vld [vmem:[%s4 + $0x54] sm:$0xf]
  %v743 = vld [vmem:[%s4 + $0x58] sm:$0xf]
  %v744 = vld [vmem:[%s4 + $0x5c] sm:$0xf]
  %v745 = vld [vmem:[%s4 + $0x60] sm:$0xf]
  %v746 = vld [vmem:[%s4 + $0x64] sm:$0xf]
  %v747 = vld [vmem:[%s4 + $0x68] sm:$0xf]
  %v748 = vld [vmem:[%s4 + $0x6c] sm:$0xf]
  %v749 = vld [vmem:[%s4 + $0x70] sm:$0xf]
  %v750 = vld [vmem:[%s4 + $0x74] sm:$0xf]
  %v751 = vld [vmem:[%s4 + $0x78] sm:$0xf]
  %v752 = vld [vmem:[%s4 + $0x7c] sm:$0xf]
  %v785 = vunpack.c.l.b16 %v721
  %v786 = vunpack.c.l.b16 %v722
  %v787 = vunpack.c.l.b16 %v723
  %v788 = vunpack.c.l.b16 %v724
  %v789 = vunpack.c.l.b16 %v725
  %v790 = vunpack.c.l.b16 %v726
  %v791 = vunpack.c.l.b16 %v727
  %v792 = vunpack.c.l.b16 %v728
  %v793 = vunpack.c.l.b16 %v729
  %v794 = vunpack.c.l.b16 %v730
  %v795 = vunpack.c.l.b16 %v731
  %v796 = vunpack.c.l.b16 %v732
  %v797 = vunpack.c.l.b16 %v733
  %v798 = vunpack.c.l.b16 %v734
  %v799 = vunpack.c.l.b16 %v735
  %v800 = vunpack.c.l.b16 %v736
  %v801 = vunpack.c.l.b16 %v737
  %v802 = vunpack.c.l.b16 %v738
  %v803 = vunpack.c.l.b16 %v739
  %v804 = vunpack.c.l.b16 %v740
  %v805 = vunpack.c.l.b16 %v741
  %v806 = vunpack.c.l.b16 %v742
  %v807 = vunpack.c.l.b16 %v743
  %v808 = vunpack.c.l.b16 %v744
  %v809 = vunpack.c.l.b16 %v745
  %v810 = vunpack.c.l.b16 %v746
  %v811 = vunpack.c.l.b16 %v747
  %v812 = vunpack.c.l.b16 %v748
  %v813 = vunpack.c.l.b16 %v749
  %v814 = vunpack.c.l.b16 %v750
  %v815 = vunpack.c.l.b16 %v751
  %v816 = vunpack.c.l.b16 %v752
  %v817 = vpack.c.b16 %v786, %v785
  %v818 = vpack.c.b16 %v788, %v787
  %v819 = vpack.c.b16 %v790, %v789
  %v820 = vpack.c.b16 %v792, %v791
  %v821 = vpack.c.b16 %v794, %v793
  %v822 = vpack.c.b16 %v796, %v795
  %v823 = vpack.c.b16 %v798, %v797
  %v824 = vpack.c.b16 %v800, %v799
  %v825 = vpack.c.b16 %v802, %v801
  %v826 = vpack.c.b16 %v804, %v803
  %v827 = vpack.c.b16 %v806, %v805
  %v828 = vpack.c.b16 %v808, %v807
  %v829 = vpack.c.b16 %v810, %v809
  %v830 = vpack.c.b16 %v812, %v811
  %v831 = vpack.c.b16 %v814, %v813
  %v832 = vpack.c.b16 %v816, %v815
  %849 = vmatprep.subr.bf16.mxu0 0
  %850 = vmatpush1.bf16.msra.mxu0 %v824
  %851 = vmatprep.subr.bf16.mxu0 0
  %852 = vmatpush1.bf16.msra.mxu0 %v823
  %853 = vmatprep.subr.bf16.mxu0 0
  %854 = vmatpush1.bf16.msra.mxu0 %v822
  %855 = vmatprep.subr.bf16.mxu0 0
  %856 = vmatpush1.bf16.msra.mxu0 %v821
  %857 = vmatprep.subr.bf16.mxu0 0
  %858 = vmatpush1.bf16.msra.mxu0 %v820
  %859 = vmatprep.subr.bf16.mxu0 0
  %860 = vmatpush1.bf16.msra.mxu0 %v819
  %861 = vmatprep.subr.bf16.mxu0 0
  %862 = vmatpush1.bf16.msra.mxu0 %v818
  %863 = vmatprep.subr.bf16.mxu0 0
  %864 = vmatpush1.bf16.msra.mxu0 %v817
  %865 = vmatprep.subr.bf16.mxu0 0
  %866 = vmatpush2.bf16.msra.mxu0 %v832
  %867 = vmatprep.subr.bf16.mxu0 0
  %868 = vmatpush2.bf16.msra.mxu0 %v831
  %869 = vmatprep.subr.bf16.mxu0 0
  %870 = vmatpush2.bf16.msra.mxu0 %v830
  %871 = vmatprep.subr.bf16.mxu0 0
  %872 = vmatpush2.bf16.msra.mxu0 %v829
  %873 = vmatprep.subr.bf16.mxu0 0
  %874 = vmatpush2.bf16.msra.mxu0 %v828
  %875 = vmatprep.subr.bf16.mxu0 0
  %876 = vmatpush2.bf16.msra.mxu0 %v827
  %877 = vmatprep.subr.bf16.mxu0 0
  %878 = vmatpush2.bf16.msra.mxu0 %v826
  %879 = vmatprep.subr.bf16.mxu0 0
  %880 = vmatpush2.bf16.msra.mxu0 %v825
  %881 = vmatprep.mubr.bf16.mxu0 %v147
  %882 = vmatmul.mubr.bf16.gmra.mxu0 %v146
  %v883 = vpop.f32.mrf.mxu0
  %v884 = vadd.f32 0.0, %v883
  %v885 = vpop.f32.mrf.mxu0
  %v886 = vpop.f32.mrf.mxu0
  %v887 = vadd.f32 0.0, %v886
  %v888 = vpop.f32.mrf.mxu0
  %889 = vmatprep.mubr.bf16.mxu0 %v149
  %890 = vmatmul.mubr.bf16.gmra.mxu0 %v148
  %v891 = vpop.f32.mrf.mxu0
  %v892 = vadd.f32 0.0, %v891
  %v893 = vpop.f32.mrf.mxu0
  %v894 = vpop.f32.mrf.mxu0
  %v895 = vadd.f32 0.0, %v894
  %v896 = vpop.f32.mrf.mxu0
  %897 = vdwg.mxu0
  %v898 = vadd.f32 %v717, %v884
  %v899 = vadd.f32 %v718, %v887
  %v900 = vadd.f32 %v719, %v892
  %v901 = vadd.f32 %v720, %v895
  %902 = vst [vmem:[#allocation3] sm:$0xff] %v898
  %903 = vst [vmem:[#allocation3 + $0x8] sm:$0xff] %v899
  %904 = vst [vmem:[#allocation3 + $0x10] sm:$0xff] %v900
  %905 = vst [vmem:[#allocation3 + $0x18] sm:$0xff] %v901
  // Predicated region
  $region38: #{pixelcnnpp_forward.30} parent=0 // pred_check
    %p906 = pneg %p30
  $region39: #{pixelcnnpp_forward.30} parent=0 // pred_check_branch
    %908 = sbr.rel (%p906) target = $region41
  $region40: #{pixelcnnpp_forward.30} parent=0 // pred_region
    %v909 = vld [vmem:[#allocation2] sm:$0xff]
    %v910 = vld [vmem:[#allocation2 + $0x8] sm:$0xff]
    %v911 = vld [vmem:[#allocation2 + $0x10] sm:$0xff]
    %v912 = vld [vmem:[#allocation2 + $0x18] sm:$0xff]
    %v913 = vld [vmem:[%s5] sm:$0x1]
    %v915 = vlaneseq
    %v916 = vshrl.u32 %v915, 7
    %v917 = vsub.s32 0, %v916
    %v918 = vrot.slane %v913, %v917
    %v920 = vadd.f32 %v909, %v918
    %v921 = vadd.f32 %v910, %v918
    %v922 = vadd.f32 %v911, %v918
    %v923 = vadd.f32 %v912, %v918
    %v924 = vld [vmem:[#allocation3] sm:$0xff]
    %v925 = vld [vmem:[#allocation3 + $0x8] sm:$0xff]
    %v926 = vld [vmem:[#allocation3 + $0x10] sm:$0xff]
    %v927 = vld [vmem:[#allocation3 + $0x18] sm:$0xff]
    %v928 = vld [vmem:[%s6] sm:$0x1]
    %v930 = vlaneseq
    %v931 = vshrl.u32 %v930, 7
    %v932 = vsub.s32 0, %v931
    %v933 = vrot.slane %v928, %v932
    %v935 = vadd.f32 %v924, %v933
    %v936 = vadd.f32 %v925, %v933
    %v937 = vadd.f32 %v926, %v933
    %v938 = vadd.f32 %v927, %v933
    %v939 = vsub.f32 0.0, %v935
    %v940 = vsub.f32 0.0, %v936
    %v941 = vsub.f32 0.0, %v937
    %v942 = vsub.f32 0.0, %v938
    %v943 = vmul.f32 %v939, 1.442695
    %v944 = vpow.pop %v943
    %v945 = vmul.f32 %v940, 1.442695
    %v946 = vpow.pop %v945
    %v947 = vmul.f32 %v941, 1.442695
    %v948 = vpow.pop %v947
    %v949 = vmul.f32 %v942, 1.442695
    %v950 = vpow.pop %v949
    %v951 = vadd.f32 %v944, 1.0
    %v952 = vadd.f32 %v946, 1.0
    %v953 = vadd.f32 %v948, 1.0
    %v954 = vadd.f32 %v950, 1.0
    %v955 = vrcp.pop %v951
    %v956 = vrcp.pop %v952
    %v957 = vrcp.pop %v953
    %v958 = vrcp.pop %v954
    %v959 = vld [vmem:[%s7] sm:$0xff]
    %v960 = vld [vmem:[%s7 + $0x8] sm:$0xff]
    %v961 = vld [vmem:[%s7 + $0x10] sm:$0xff]
    %v962 = vld [vmem:[%s7 + $0x18] sm:$0xff]
    %v963 = vmul.f32 %v920, %v955
    %v964 = vmul.f32 %v921, %v956
    %v965 = vmul.f32 %v922, %v957
    %v966 = vmul.f32 %v923, %v958
    %v967 = vadd.f32 %v959, %v963
    %v968 = vadd.f32 %v960, %v964
    %v969 = vadd.f32 %v961, %v965
    %v970 = vadd.f32 %v962, %v966
    %971 = vst [vmem:[%s8] sm:$0xff] %v967
    %972 = vst [vmem:[%s8 + $0x8] sm:$0xff] %v968
    %973 = vst [vmem:[%s8 + $0x10] sm:$0xff] %v969
    %974 = vst [vmem:[%s8 + $0x18] sm:$0xff] %v970
  $region41: #{pixelcnnpp_forward.30} parent=0 // pred_fallthru
    _
  // Predicated region
  $region42: #{pixelcnnpp_forward.30} parent=0 // pred_check
    _
  $region43: #{pixelcnnpp_forward.30} parent=0 // pred_check_branch
    %976 = sbr.rel (0) target = $region45
  $region44: #{pixelcnnpp_forward.30} parent=0 // pred_region
    _
  $region45: #{pixelcnnpp_forward.30} parent=0 // pred_fallthru
    _
  // Predicated region
  $region46: #{pixelcnnpp_forward.30} parent=0 // pred_check
    _
  $region47: #{pixelcnnpp_forward.30} parent=0 // pred_check_branch
    %978 = sbr.rel (0) target = $region49
  $region48: #{pixelcnnpp_forward.30} parent=0 // pred_region
    _
  $region49: #{pixelcnnpp_forward.30} parent=0 // pred_fallthru
    _

// kernel: pixelcnnpp_forward.33
$region0: #{pixelcnnpp_forward.33}
  #allocation0 [shape = 'u32[]', space=smem, size = 0x4, offset = 0x4, fixed_abs, tag = 'smem constant byte address 0x4 - core index']
  #allocation1 [shape = 'u32[144,128]{1,0:T(1,128)}', space=vmem, size = 0x12000, scoped, tag = 'internal scratch']
  #allocation2 [shape = 'f32[16,128]{1,0:T(8,128)}', space=vmem, size = 0x2000, scoped, tag = 'scratch operand']
  %s0 = inlined_call_operand.vmem [shape: bf16[16,256], index: 0, kind: input, shape index: {}]
  %s1 = inlined_call_operand.vmem [shape: bf16[256,128], index: 1, kind: input, shape index: {}]
  %s2 = inlined_call_operand.vmem [shape: f32[1,128], index: 2, kind: input, shape index: {}]
  %s3 = inlined_call_operand.vmem [shape: f32[16,128], index: 3, kind: output, shape index: {}]
  %s4 = sld [smem:[#allocation0]]
  $region30: #{pixelcnnpp_forward.33} parent=0
    _
  %s6 = ssub.s32 1, %s4
  %s7 = scalar_select 0, %s6, %s4
  // Predicated region
  $region2: #{pixelcnnpp_forward.33} parent=0 // pred_check
    _
  $region3: #{pixelcnnpp_forward.33} parent=0 // pred_check_branch
    %9 = sbr.rel (0) target = $region5
  $region4: #{pixelcnnpp_forward.33} parent=0 // pred_region
    _
  $region5: #{pixelcnnpp_forward.33} parent=0 // pred_fallthru
    _
  // Predicated region
  $region6: #{pixelcnnpp_forward.33} parent=0 // pred_check
    _
  $region7: #{pixelcnnpp_forward.33} parent=0 // pred_check_branch
    %11 = sbr.rel (0) target = $region9
  $region8: #{pixelcnnpp_forward.33} parent=0 // pred_region
    _
  $region9: #{pixelcnnpp_forward.33} parent=0 // pred_fallthru
    _
  // Predicated region
  $region10: #{pixelcnnpp_forward.33} parent=0 // pred_check
    _
  $region11: #{pixelcnnpp_forward.33} parent=0 // pred_check_branch
    %13 = sbr.rel (0) target = $region13
  $region12: #{pixelcnnpp_forward.33} parent=0 // pred_region
    _
  $region13: #{pixelcnnpp_forward.33} parent=0 // pred_fallthru
    _
  %p15 = scmp.eq.s32.totalorder 0, 0
  // Predicated region
  $region14: #{pixelcnnpp_forward.33} parent=0 // pred_check
    %p16 = pneg %p15
  $region15: #{pixelcnnpp_forward.33} parent=0 // pred_check_branch
    %18 = sbr.rel (%p16) target = $region17
  $region16: #{pixelcnnpp_forward.33} parent=0 // pred_region
    %19 = vst [vmem:[#allocation2] sm:$0xff] 0.0
    %20 = vst [vmem:[#allocation2 + $0x8] sm:$0xff] 0.0
  $region17: #{pixelcnnpp_forward.33} parent=0 // pred_fallthru
    _
  %v21 = vld [vmem:[%s0] sm:$0xff]
  %v22 = vld [vmem:[%s0 + $0x8] sm:$0xff]
  %v23 = vld [vmem:[#allocation2] sm:$0xff]
  %v24 = vld [vmem:[#allocation2 + $0x8] sm:$0xff]
  %v25 = vld [vmem:[%s1] sm:$0xf]
  %v26 = vld [vmem:[%s1 + $0x4] sm:$0xf]
  %v27 = vld [vmem:[%s1 + $0x8] sm:$0xf]
  %v28 = vld [vmem:[%s1 + $0xc] sm:$0xf]
  %v29 = vld [vmem:[%s1 + $0x10] sm:$0xf]
  %v30 = vld [vmem:[%s1 + $0x14] sm:$0xf]
  %v31 = vld [vmem:[%s1 + $0x18] sm:$0xf]
  %v32 = vld [vmem:[%s1 + $0x1c] sm:$0xf]
  %v33 = vld [vmem:[%s1 + $0x20] sm:$0xf]
  %v34 = vld [vmem:[%s1 + $0x24] sm:$0xf]
  %v35 = vld [vmem:[%s1 + $0x28] sm:$0xf]
  %v36 = vld [vmem:[%s1 + $0x2c] sm:$0xf]
  %v37 = vld [vmem:[%s1 + $0x30] sm:$0xf]
  %v38 = vld [vmem:[%s1 + $0x34] sm:$0xf]
  %v39 = vld [vmem:[%s1 + $0x38] sm:$0xf]
  %v40 = vld [vmem:[%s1 + $0x3c] sm:$0xf]
  %v41 = vld [vmem:[%s1 + $0x40] sm:$0xf]
  %v42 = vld [vmem:[%s1 + $0x44] sm:$0xf]
  %v43 = vld [vmem:[%s1 + $0x48] sm:$0xf]
  %v44 = vld [vmem:[%s1 + $0x4c] sm:$0xf]
  %v45 = vld [vmem:[%s1 + $0x50] sm:$0xf]
  %v46 = vld [vmem:[%s1 + $0x54] sm:$0xf]
  %v47 = vld [vmem:[%s1 + $0x58] sm:$0xf]
  %v48 = vld [vmem:[%s1 + $0x5c] sm:$0xf]
  %v49 = vld [vmem:[%s1 + $0x60] sm:$0xf]
  %v50 = vld [vmem:[%s1 + $0x64] sm:$0xf]
  %v51 = vld [vmem:[%s1 + $0x68] sm:$0xf]
  %v52 = vld [vmem:[%s1 + $0x6c] sm:$0xf]
  %v53 = vld [vmem:[%s1 + $0x70] sm:$0xf]
  %v54 = vld [vmem:[%s1 + $0x74] sm:$0xf]
  %v55 = vld [vmem:[%s1 + $0x78] sm:$0xf]
  %v56 = vld [vmem:[%s1 + $0x7c] sm:$0xf]
  %v59 = vunpack.c.l.b16 %v21
  %v60 = vunpack.c.h.b16 %v21
  %v61 = vunpack.c.l.b16 %v22
  %v62 = vunpack.c.h.b16 %v22
  %v63 = vpack.c.b16 %v61, %v59
  %v64 = vpack.c.b16 %v62, %v60
  %v99 = vunpack.c.l.b16 %v25
  %v100 = vunpack.c.l.b16 %v26
  %v101 = vunpack.c.l.b16 %v27
  %v102 = vunpack.c.l.b16 %v28
  %v103 = vunpack.c.l.b16 %v29
  %v104 = vunpack.c.l.b16 %v30
  %v105 = vunpack.c.l.b16 %v31
  %v106 = vunpack.c.l.b16 %v32
  %v107 = vunpack.c.l.b16 %v33
  %v108 = vunpack.c.l.b16 %v34
  %v109 = vunpack.c.l.b16 %v35
  %v110 = vunpack.c.l.b16 %v36
  %v111 = vunpack.c.l.b16 %v37
  %v112 = vunpack.c.l.b16 %v38
  %v113 = vunpack.c.l.b16 %v39
  %v114 = vunpack.c.l.b16 %v40
  %v115 = vunpack.c.l.b16 %v41
  %v116 = vunpack.c.l.b16 %v42
  %v117 = vunpack.c.l.b16 %v43
  %v118 = vunpack.c.l.b16 %v44
  %v119 = vunpack.c.l.b16 %v45
  %v120 = vunpack.c.l.b16 %v46
  %v121 = vunpack.c.l.b16 %v47
  %v122 = vunpack.c.l.b16 %v48
  %v123 = vunpack.c.l.b16 %v49
  %v124 = vunpack.c.l.b16 %v50
  %v125 = vunpack.c.l.b16 %v51
  %v126 = vunpack.c.l.b16 %v52
  %v127 = vunpack.c.l.b16 %v53
  %v128 = vunpack.c.l.b16 %v54
  %v129 = vunpack.c.l.b16 %v55
  %v130 = vunpack.c.l.b16 %v56
  %v131 = vpack.c.b16 %v100, %v99
  %v132 = vpack.c.b16 %v102, %v101
  %v133 = vpack.c.b16 %v104, %v103
  %v134 = vpack.c.b16 %v106, %v105
  %v135 = vpack.c.b16 %v108, %v107
  %v136 = vpack.c.b16 %v110, %v109
  %v137 = vpack.c.b16 %v112, %v111
  %v138 = vpack.c.b16 %v114, %v113
  %v139 = vpack.c.b16 %v116, %v115
  %v140 = vpack.c.b16 %v118, %v117
  %v141 = vpack.c.b16 %v120, %v119
  %v142 = vpack.c.b16 %v122, %v121
  %v143 = vpack.c.b16 %v124, %v123
  %v144 = vpack.c.b16 %v126, %v125
  %v145 = vpack.c.b16 %v128, %v127
  %v146 = vpack.c.b16 %v130, %v129
  %163 = vmatprep.subr.bf16.mxu0 0
  %164 = vmatpush1.bf16.msra.mxu0 %v138
  %165 = vmatprep.subr.bf16.mxu0 0
  %166 = vmatpush1.bf16.msra.mxu0 %v137
  %167 = vmatprep.subr.bf16.mxu0 0
  %168 = vmatpush1.bf16.msra.mxu0 %v136
  %169 = vmatprep.subr.bf16.mxu0 0
  %170 = vmatpush1.bf16.msra.mxu0 %v135
  %171 = vmatprep.subr.bf16.mxu0 0
  %172 = vmatpush1.bf16.msra.mxu0 %v134
  %173 = vmatprep.subr.bf16.mxu0 0
  %174 = vmatpush1.bf16.msra.mxu0 %v133
  %175 = vmatprep.subr.bf16.mxu0 0
  %176 = vmatpush1.bf16.msra.mxu0 %v132
  %177 = vmatprep.subr.bf16.mxu0 0
  %178 = vmatpush1.bf16.msra.mxu0 %v131
  %179 = vmatprep.subr.bf16.mxu0 0
  %180 = vmatpush2.bf16.msra.mxu0 %v146
  %181 = vmatprep.subr.bf16.mxu0 0
  %182 = vmatpush2.bf16.msra.mxu0 %v145
  %183 = vmatprep.subr.bf16.mxu0 0
  %184 = vmatpush2.bf16.msra.mxu0 %v144
  %185 = vmatprep.subr.bf16.mxu0 0
  %186 = vmatpush2.bf16.msra.mxu0 %v143
  %187 = vmatprep.subr.bf16.mxu0 0
  %188 = vmatpush2.bf16.msra.mxu0 %v142
  %189 = vmatprep.subr.bf16.mxu0 0
  %190 = vmatpush2.bf16.msra.mxu0 %v141
  %191 = vmatprep.subr.bf16.mxu0 0
  %192 = vmatpush2.bf16.msra.mxu0 %v140
  %193 = vmatprep.subr.bf16.mxu0 0
  %194 = vmatpush2.bf16.msra.mxu0 %v139
  %195 = vmatprep.mubr.bf16.mxu0 %v64
  %196 = vmatmul.mubr.bf16.gmra.mxu0 %v63
  %v197 = vpop.f32.mrf.mxu0
  %v198 = vadd.f32 0.0, %v197
  %v199 = vpop.f32.mrf.mxu0
  %v200 = vpop.f32.mrf.mxu0
  %v201 = vadd.f32 0.0, %v200
  %v202 = vpop.f32.mrf.mxu0
  %203 = vdwg.mxu0
  %v204 = vadd.f32 %v23, %v198
  %v205 = vadd.f32 %v24, %v201
  %206 = vst [vmem:[#allocation2] sm:$0xff] %v204
  %207 = vst [vmem:[#allocation2 + $0x8] sm:$0xff] %v205
  // Predicated region
  $region18: #{pixelcnnpp_forward.33} parent=0 // pred_check
    %p208 = pneg %p15
  $region19: #{pixelcnnpp_forward.33} parent=0 // pred_check_branch
    %210 = sbr.rel (%p208) target = $region21
  $region20: #{pixelcnnpp_forward.33} parent=0 // pred_region
    %v211 = vld [vmem:[#allocation2] sm:$0xff]
    %v212 = vld [vmem:[#allocation2 + $0x8] sm:$0xff]
    %v213 = vld [vmem:[%s2] sm:$0x1]
    %v215 = vlaneseq
    %v216 = vshrl.u32 %v215, 7
    %v217 = vsub.s32 0, %v216
    %v218 = vrot.slane %v213, %v217
    %v220 = vadd.f32 %v211, %v218
    %v221 = vadd.f32 %v212, %v218
    %222 = vst [vmem:[%s3] sm:$0xff] %v220
    %223 = vst [vmem:[%s3 + $0x8] sm:$0xff] %v221
  $region21: #{pixelcnnpp_forward.33} parent=0 // pred_fallthru
    _
  // Predicated region
  $region22: #{pixelcnnpp_forward.33} parent=0 // pred_check
    _
  $region23: #{pixelcnnpp_forward.33} parent=0 // pred_check_branch
    %225 = sbr.rel (0) target = $region25
  $region24: #{pixelcnnpp_forward.33} parent=0 // pred_region
    _
  $region25: #{pixelcnnpp_forward.33} parent=0 // pred_fallthru
    _
  // Predicated region
  $region26: #{pixelcnnpp_forward.33} parent=0 // pred_check
    _
  $region27: #{pixelcnnpp_forward.33} parent=0 // pred_check_branch
    %227 = sbr.rel (0) target = $region29
  $region28: #{pixelcnnpp_forward.33} parent=0 // pred_region
    _
  $region29: #{pixelcnnpp_forward.33} parent=0 // pred_fallthru
    _

// kernel: pixelcnnpp_forward.34
$region0: #{pixelcnnpp_forward.34}
  #allocation0 [shape = 'u32[]', space=smem, size = 0x4, offset = 0x4, fixed_abs, tag = 'smem constant byte address 0x4 - core index']
  #allocation1 [shape = 'u32[144,128]{1,0:T(1,128)}', space=vmem, size = 0x12000, scoped, tag = 'internal scratch']
  #allocation2 [shape = 'f32[16,128]{1,0:T(8,128)}', space=vmem, size = 0x2000, scoped, tag = 'scratch operand']
  %s0 = inlined_call_operand.vmem [shape: bf16[16,256], index: 0, kind: input, shape index: {}]
  %s1 = inlined_call_operand.vmem [shape: bf16[256,128], index: 1, kind: input, shape index: {}]
  %s2 = inlined_call_operand.vmem [shape: bf16[256,128], index: 2, kind: input, shape index: {}]
  %s3 = inlined_call_operand.vmem [shape: f32[1,128], index: 3, kind: input, shape index: {}]
  %s4 = inlined_call_operand.vmem [shape: f32[16,128], index: 4, kind: output, shape index: {}]
  %s5 = sld [smem:[#allocation0]]
  $region34: #{pixelcnnpp_forward.34} parent=0
    _
  %s7 = ssub.s32 1, %s5
  %s8 = scalar_select 0, %s7, %s5
  // Predicated region
  $region2: #{pixelcnnpp_forward.34} parent=0 // pred_check
    _
  $region3: #{pixelcnnpp_forward.34} parent=0 // pred_check_branch
    %10 = sbr.rel (0) target = $region5
  $region4: #{pixelcnnpp_forward.34} parent=0 // pred_region
    _
  $region5: #{pixelcnnpp_forward.34} parent=0 // pred_fallthru
    _
  // Predicated region
  $region6: #{pixelcnnpp_forward.34} parent=0 // pred_check
    _
  $region7: #{pixelcnnpp_forward.34} parent=0 // pred_check_branch
    %12 = sbr.rel (0) target = $region9
  $region8: #{pixelcnnpp_forward.34} parent=0 // pred_region
    _
  $region9: #{pixelcnnpp_forward.34} parent=0 // pred_fallthru
    _
  // Predicated region
  $region10: #{pixelcnnpp_forward.34} parent=0 // pred_check
    _
  $region11: #{pixelcnnpp_forward.34} parent=0 // pred_check_branch
    %14 = sbr.rel (0) target = $region13
  $region12: #{pixelcnnpp_forward.34} parent=0 // pred_region
    _
  $region13: #{pixelcnnpp_forward.34} parent=0 // pred_fallthru
    _
  // Predicated region
  $region14: #{pixelcnnpp_forward.34} parent=0 // pred_check
    _
  $region15: #{pixelcnnpp_forward.34} parent=0 // pred_check_branch
    %16 = sbr.rel (0) target = $region17
  $region16: #{pixelcnnpp_forward.34} parent=0 // pred_region
    _
  $region17: #{pixelcnnpp_forward.34} parent=0 // pred_fallthru
    _
  %p18 = scmp.eq.s32.totalorder 0, 0
  // Predicated region
  $region18: #{pixelcnnpp_forward.34} parent=0 // pred_check
    %p19 = pneg %p18
  $region19: #{pixelcnnpp_forward.34} parent=0 // pred_check_branch
    %21 = sbr.rel (%p19) target = $region21
  $region20: #{pixelcnnpp_forward.34} parent=0 // pred_region
    %22 = vst [vmem:[#allocation2] sm:$0xff] 0.0
    %23 = vst [vmem:[#allocation2 + $0x8] sm:$0xff] 0.0
  $region21: #{pixelcnnpp_forward.34} parent=0 // pred_fallthru
    _
  %v24 = vld [vmem:[%s0] sm:$0xff]
  %v25 = vld [vmem:[%s0 + $0x8] sm:$0xff]
  %v26 = vunpack.c.l.bf16 %v24
  %v27 = vunpack.c.h.bf16 %v24
  %v28 = vunpack.c.l.bf16 %v25
  %v29 = vunpack.c.h.bf16 %v25
  %vm30 = vcmp.gt.f32.partialorder %v26, 0.0
  %vm31 = vcmp.gt.f32.partialorder %v27, 0.0
  %vm32 = vcmp.gt.f32.partialorder %v28, 0.0
  %vm33 = vcmp.gt.f32.partialorder %v29, 0.0
  %v34 = vmul.f32 %v26, 1.442695
  %v35 = vpow.pop %v34
  %v36 = vmul.f32 %v27, 1.442695
  %v37 = vpow.pop %v36
  %v38 = vmul.f32 %v28, 1.442695
  %v39 = vpow.pop %v38
  %v40 = vmul.f32 %v29, 1.442695
  %v41 = vpow.pop %v40
  %v42 = vsub.f32 %v35, 1.0
  %v43 = vsub.f32 %v37, 1.0
  %v44 = vsub.f32 %v39, 1.0
  %v45 = vsub.f32 %v41, 1.0
  %v46 = vsel %vm30, %v26, %v42
  %v47 = vsel %vm31, %v27, %v43
  %v48 = vsel %vm32, %v28, %v44
  %v49 = vsel %vm33, %v29, %v45
  %v50 = vpack.c.bf16 %v48, %v46
  %v51 = vpack.c.bf16 %v49, %v47
  %vm52 = vcmp.lt.f32.partialorder %v26, 0.0
  %vm53 = vcmp.lt.f32.partialorder %v27, 0.0
  %vm54 = vcmp.lt.f32.partialorder %v28, 0.0
  %vm55 = vcmp.lt.f32.partialorder %v29, 0.0
  %v56 = vsub.f32 0.0, %v26
  %v57 = vsub.f32 0.0, %v27
  %v58 = vsub.f32 0.0, %v28
  %v59 = vsub.f32 0.0, %v29
  %v60 = vmul.f32 %v56, 1.442695
  %v61 = vpow.pop %v60
  %v62 = vmul.f32 %v57, 1.442695
  %v63 = vpow.pop %v62
  %v64 = vmul.f32 %v58, 1.442695
  %v65 = vpow.pop %v64
  %v66 = vmul.f32 %v59, 1.442695
  %v67 = vpow.pop %v66
  %v68 = vsub.f32 %v61, 1.0
  %v69 = vsub.f32 %v63, 1.0
  %v70 = vsub.f32 %v65, 1.0
  %v71 = vsub.f32 %v67, 1.0
  %v72 = vsel %vm52, %v56, %v68
  %v73 = vsel %vm53, %v57, %v69
  %v74 = vsel %vm54, %v58, %v70
  %v75 = vsel %vm55, %v59, %v71
  %v76 = vpack.c.bf16 %v74, %v72
  %v77 = vpack.c.bf16 %v75, %v73
  %v78 = vld [vmem:[#allocation2] sm:$0xff]
  %v79 = vld [vmem:[#allocation2 + $0x8] sm:$0xff]
  %v80 = vld [vmem:[%s1] sm:$0xf]
  %v81 = vld [vmem:[%s1 + $0x4] sm:$0xf]
  %v82 = vld [vmem:[%s1 + $0x8] sm:$0xf]
  %v83 = vld [vmem:[%s1 + $0xc] sm:$0xf]
  %v84 = vld [vmem:[%s1 + $0x10] sm:$0xf]
  %v85 = vld [vmem:[%s1 + $0x14] sm:$0xf]
  %v86 = vld [vmem:[%s1 + $0x18] sm:$0xf]
  %v87 = vld [vmem:[%s1 + $0x1c] sm:$0xf]
  %v88 = vld [vmem:[%s1 + $0x20] sm:$0xf]
  %v89 = vld [vmem:[%s1 + $0x24] sm:$0xf]
  %v90 = vld [vmem:[%s1 + $0x28] sm:$0xf]
  %v91 = vld [vmem:[%s1 + $0x2c] sm:$0xf]
  %v92 = vld [vmem:[%s1 + $0x30] sm:$0xf]
  %v93 = vld [vmem:[%s1 + $0x34] sm:$0xf]
  %v94 = vld [vmem:[%s1 + $0x38] sm:$0xf]
  %v95 = vld [vmem:[%s1 + $0x3c] sm:$0xf]
  %v96 = vld [vmem:[%s1 + $0x40] sm:$0xf]
  %v97 = vld [vmem:[%s1 + $0x44] sm:$0xf]
  %v98 = vld [vmem:[%s1 + $0x48] sm:$0xf]
  %v99 = vld [vmem:[%s1 + $0x4c] sm:$0xf]
  %v100 = vld [vmem:[%s1 + $0x50] sm:$0xf]
  %v101 = vld [vmem:[%s1 + $0x54] sm:$0xf]
  %v102 = vld [vmem:[%s1 + $0x58] sm:$0xf]
  %v103 = vld [vmem:[%s1 + $0x5c] sm:$0xf]
  %v104 = vld [vmem:[%s1 + $0x60] sm:$0xf]
  %v105 = vld [vmem:[%s1 + $0x64] sm:$0xf]
  %v106 = vld [vmem:[%s1 + $0x68] sm:$0xf]
  %v107 = vld [vmem:[%s1 + $0x6c] sm:$0xf]
  %v108 = vld [vmem:[%s1 + $0x70] sm:$0xf]
  %v109 = vld [vmem:[%s1 + $0x74] sm:$0xf]
  %v110 = vld [vmem:[%s1 + $0x78] sm:$0xf]
  %v111 = vld [vmem:[%s1 + $0x7c] sm:$0xf]
  %v144 = vunpack.c.l.b16 %v80
  %v145 = vunpack.c.l.b16 %v81
  %v146 = vunpack.c.l.b16 %v82
  %v147 = vunpack.c.l.b16 %v83
  %v148 = vunpack.c.l.b16 %v84
  %v149 = vunpack.c.l.b16 %v85
  %v150 = vunpack.c.l.b16 %v86
  %v151 = vunpack.c.l.b16 %v87
  %v152 = vunpack.c.l.b16 %v88
  %v153 = vunpack.c.l.b16 %v89
  %v154 = vunpack.c.l.b16 %v90
  %v155 = vunpack.c.l.b16 %v91
  %v156 = vunpack.c.l.b16 %v92
  %v157 = vunpack.c.l.b16 %v93
  %v158 = vunpack.c.l.b16 %v94
  %v159 = vunpack.c.l.b16 %v95
  %v160 = vunpack.c.l.b16 %v96
  %v161 = vunpack.c.l.b16 %v97
  %v162 = vunpack.c.l.b16 %v98
  %v163 = vunpack.c.l.b16 %v99
  %v164 = vunpack.c.l.b16 %v100
  %v165 = vunpack.c.l.b16 %v101
  %v166 = vunpack.c.l.b16 %v102
  %v167 = vunpack.c.l.b16 %v103
  %v168 = vunpack.c.l.b16 %v104
  %v169 = vunpack.c.l.b16 %v105
  %v170 = vunpack.c.l.b16 %v106
  %v171 = vunpack.c.l.b16 %v107
  %v172 = vunpack.c.l.b16 %v108
  %v173 = vunpack.c.l.b16 %v109
  %v174 = vunpack.c.l.b16 %v110
  %v175 = vunpack.c.l.b16 %v111
  %v176 = vpack.c.b16 %v145, %v144
  %v177 = vpack.c.b16 %v147, %v146
  %v178 = vpack.c.b16 %v149, %v148
  %v179 = vpack.c.b16 %v151, %v150
  %v180 = vpack.c.b16 %v153, %v152
  %v181 = vpack.c.b16 %v155, %v154
  %v182 = vpack.c.b16 %v157, %v156
  %v183 = vpack.c.b16 %v159, %v158
  %v184 = vpack.c.b16 %v161, %v160
  %v185 = vpack.c.b16 %v163, %v162
  %v186 = vpack.c.b16 %v165, %v164
  %v187 = vpack.c.b16 %v167, %v166
  %v188 = vpack.c.b16 %v169, %v168
  %v189 = vpack.c.b16 %v171, %v170
  %v190 = vpack.c.b16 %v173, %v172
  %v191 = vpack.c.b16 %v175, %v174
  %208 = vmatprep.subr.bf16.mxu0 0
  %209 = vmatpush1.bf16.msra.mxu0 %v183
  %210 = vmatprep.subr.bf16.mxu0 0
  %211 = vmatpush1.bf16.msra.mxu0 %v182
  %212 = vmatprep.subr.bf16.mxu0 0
  %213 = vmatpush1.bf16.msra.mxu0 %v181
  %214 = vmatprep.subr.bf16.mxu0 0
  %215 = vmatpush1.bf16.msra.mxu0 %v180
  %216 = vmatprep.subr.bf16.mxu0 0
  %217 = vmatpush1.bf16.msra.mxu0 %v179
  %218 = vmatprep.subr.bf16.mxu0 0
  %219 = vmatpush1.bf16.msra.mxu0 %v178
  %220 = vmatprep.subr.bf16.mxu0 0
  %221 = vmatpush1.bf16.msra.mxu0 %v177
  %222 = vmatprep.subr.bf16.mxu0 0
  %223 = vmatpush1.bf16.msra.mxu0 %v176
  %224 = vmatprep.subr.bf16.mxu0 0
  %225 = vmatpush2.bf16.msra.mxu0 %v191
  %226 = vmatprep.subr.bf16.mxu0 0
  %227 = vmatpush2.bf16.msra.mxu0 %v190
  %228 = vmatprep.subr.bf16.mxu0 0
  %229 = vmatpush2.bf16.msra.mxu0 %v189
  %230 = vmatprep.subr.bf16.mxu0 0
  %231 = vmatpush2.bf16.msra.mxu0 %v188
  %232 = vmatprep.subr.bf16.mxu0 0
  %233 = vmatpush2.bf16.msra.mxu0 %v187
  %234 = vmatprep.subr.bf16.mxu0 0
  %235 = vmatpush2.bf16.msra.mxu0 %v186
  %236 = vmatprep.subr.bf16.mxu0 0
  %237 = vmatpush2.bf16.msra.mxu0 %v185
  %238 = vmatprep.subr.bf16.mxu0 0
  %239 = vmatpush2.bf16.msra.mxu0 %v184
  %240 = vmatprep.mubr.bf16.mxu0 %v51
  %241 = vmatmul.mubr.bf16.gmra.mxu0 %v50
  %v242 = vpop.f32.mrf.mxu0
  %v243 = vadd.f32 0.0, %v242
  %v244 = vpop.f32.mrf.mxu0
  %v245 = vpop.f32.mrf.mxu0
  %v246 = vadd.f32 0.0, %v245
  %v247 = vpop.f32.mrf.mxu0
  %248 = vdwg.mxu0
  %v249 = vadd.f32 %v78, %v243
  %v250 = vadd.f32 %v79, %v246
  %251 = vst [vmem:[#allocation2] sm:$0xff] %v249
  %252 = vst [vmem:[#allocation2 + $0x8] sm:$0xff] %v250
  %v253 = vld [vmem:[#allocation2] sm:$0xff]
  %v254 = vld [vmem:[#allocation2 + $0x8] sm:$0xff]
  %v255 = vld [vmem:[%s2] sm:$0xf]
  %v256 = vld [vmem:[%s2 + $0x4] sm:$0xf]
  %v257 = vld [vmem:[%s2 + $0x8] sm:$0xf]
  %v258 = vld [vmem:[%s2 + $0xc] sm:$0xf]
  %v259 = vld [vmem:[%s2 + $0x10] sm:$0xf]
  %v260 = vld [vmem:[%s2 + $0x14] sm:$0xf]
  %v261 = vld [vmem:[%s2 + $0x18] sm:$0xf]
  %v262 = vld [vmem:[%s2 + $0x1c] sm:$0xf]
  %v263 = vld [vmem:[%s2 + $0x20] sm:$0xf]
  %v264 = vld [vmem:[%s2 + $0x24] sm:$0xf]
  %v265 = vld [vmem:[%s2 + $0x28] sm:$0xf]
  %v266 = vld [vmem:[%s2 + $0x2c] sm:$0xf]
  %v267 = vld [vmem:[%s2 + $0x30] sm:$0xf]
  %v268 = vld [vmem:[%s2 + $0x34] sm:$0xf]
  %v269 = vld [vmem:[%s2 + $0x38] sm:$0xf]
  %v270 = vld [vmem:[%s2 + $0x3c] sm:$0xf]
  %v271 = vld [vmem:[%s2 + $0x40] sm:$0xf]
  %v272 = vld [vmem:[%s2 + $0x44] sm:$0xf]
  %v273 = vld [vmem:[%s2 + $0x48] sm:$0xf]
  %v274 = vld [vmem:[%s2 + $0x4c] sm:$0xf]
  %v275 = vld [vmem:[%s2 + $0x50] sm:$0xf]
  %v276 = vld [vmem:[%s2 + $0x54] sm:$0xf]
  %v277 = vld [vmem:[%s2 + $0x58] sm:$0xf]
  %v278 = vld [vmem:[%s2 + $0x5c] sm:$0xf]
  %v279 = vld [vmem:[%s2 + $0x60] sm:$0xf]
  %v280 = vld [vmem:[%s2 + $0x64] sm:$0xf]
  %v281 = vld [vmem:[%s2 + $0x68] sm:$0xf]
  %v282 = vld [vmem:[%s2 + $0x6c] sm:$0xf]
  %v283 = vld [vmem:[%s2 + $0x70] sm:$0xf]
  %v284 = vld [vmem:[%s2 + $0x74] sm:$0xf]
  %v285 = vld [vmem:[%s2 + $0x78] sm:$0xf]
  %v286 = vld [vmem:[%s2 + $0x7c] sm:$0xf]
  %v319 = vunpack.c.l.b16 %v255
  %v320 = vunpack.c.l.b16 %v256
  %v321 = vunpack.c.l.b16 %v257
  %v322 = vunpack.c.l.b16 %v258
  %v323 = vunpack.c.l.b16 %v259
  %v324 = vunpack.c.l.b16 %v260
  %v325 = vunpack.c.l.b16 %v261
  %v326 = vunpack.c.l.b16 %v262
  %v327 = vunpack.c.l.b16 %v263
  %v328 = vunpack.c.l.b16 %v264
  %v329 = vunpack.c.l.b16 %v265
  %v330 = vunpack.c.l.b16 %v266
  %v331 = vunpack.c.l.b16 %v267
  %v332 = vunpack.c.l.b16 %v268
  %v333 = vunpack.c.l.b16 %v269
  %v334 = vunpack.c.l.b16 %v270
  %v335 = vunpack.c.l.b16 %v271
  %v336 = vunpack.c.l.b16 %v272
  %v337 = vunpack.c.l.b16 %v273
  %v338 = vunpack.c.l.b16 %v274
  %v339 = vunpack.c.l.b16 %v275
  %v340 = vunpack.c.l.b16 %v276
  %v341 = vunpack.c.l.b16 %v277
  %v342 = vunpack.c.l.b16 %v278
  %v343 = vunpack.c.l.b16 %v279
  %v344 = vunpack.c.l.b16 %v280
  %v345 = vunpack.c.l.b16 %v281
  %v346 = vunpack.c.l.b16 %v282
  %v347 = vunpack.c.l.b16 %v283
  %v348 = vunpack.c.l.b16 %v284
  %v349 = vunpack.c.l.b16 %v285
  %v350 = vunpack.c.l.b16 %v286
  %v351 = vpack.c.b16 %v320, %v319
  %v352 = vpack.c.b16 %v322, %v321
  %v353 = vpack.c.b16 %v324, %v323
  %v354 = vpack.c.b16 %v326, %v325
  %v355 = vpack.c.b16 %v328, %v327
  %v356 = vpack.c.b16 %v330, %v329
  %v357 = vpack.c.b16 %v332, %v331
  %v358 = vpack.c.b16 %v334, %v333
  %v359 = vpack.c.b16 %v336, %v335
  %v360 = vpack.c.b16 %v338, %v337
  %v361 = vpack.c.b16 %v340, %v339
  %v362 = vpack.c.b16 %v342, %v341
  %v363 = vpack.c.b16 %v344, %v343
  %v364 = vpack.c.b16 %v346, %v345
  %v365 = vpack.c.b16 %v348, %v347
  %v366 = vpack.c.b16 %v350, %v349
  %383 = vmatprep.subr.bf16.mxu0 0
  %384 = vmatpush1.bf16.msra.mxu0 %v358
  %385 = vmatprep.subr.bf16.mxu0 0
  %386 = vmatpush1.bf16.msra.mxu0 %v357
  %387 = vmatprep.subr.bf16.mxu0 0
  %388 = vmatpush1.bf16.msra.mxu0 %v356
  %389 = vmatprep.subr.bf16.mxu0 0
  %390 = vmatpush1.bf16.msra.mxu0 %v355
  %391 = vmatprep.subr.bf16.mxu0 0
  %392 = vmatpush1.bf16.msra.mxu0 %v354
  %393 = vmatprep.subr.bf16.mxu0 0
  %394 = vmatpush1.bf16.msra.mxu0 %v353
  %395 = vmatprep.subr.bf16.mxu0 0
  %396 = vmatpush1.bf16.msra.mxu0 %v352
  %397 = vmatprep.subr.bf16.mxu0 0
  %398 = vmatpush1.bf16.msra.mxu0 %v351
  %399 = vmatprep.subr.bf16.mxu0 0
  %400 = vmatpush2.bf16.msra.mxu0 %v366
  %401 = vmatprep.subr.bf16.mxu0 0
  %402 = vmatpush2.bf16.msra.mxu0 %v365
  %403 = vmatprep.subr.bf16.mxu0 0
  %404 = vmatpush2.bf16.msra.mxu0 %v364
  %405 = vmatprep.subr.bf16.mxu0 0
  %406 = vmatpush2.bf16.msra.mxu0 %v363
  %407 = vmatprep.subr.bf16.mxu0 0
  %408 = vmatpush2.bf16.msra.mxu0 %v362
  %409 = vmatprep.subr.bf16.mxu0 0
  %410 = vmatpush2.bf16.msra.mxu0 %v361
  %411 = vmatprep.subr.bf16.mxu0 0
  %412 = vmatpush2.bf16.msra.mxu0 %v360
  %413 = vmatprep.subr.bf16.mxu0 0
  %414 = vmatpush2.bf16.msra.mxu0 %v359
  %415 = vmatprep.mubr.bf16.mxu0 %v77
  %416 = vmatmul.mubr.bf16.gmra.mxu0 %v76
  %v417 = vpop.f32.mrf.mxu0
  %v418 = vadd.f32 0.0, %v417
  %v419 = vpop.f32.mrf.mxu0
  %v420 = vpop.f32.mrf.mxu0
  %v421 = vadd.f32 0.0, %v420
  %v422 = vpop.f32.mrf.mxu0
  %423 = vdwg.mxu0
  %v424 = vadd.f32 %v253, %v418
  %v425 = vadd.f32 %v254, %v421
  %426 = vst [vmem:[#allocation2] sm:$0xff] %v424
  %427 = vst [vmem:[#allocation2 + $0x8] sm:$0xff] %v425
  // Predicated region
  $region22: #{pixelcnnpp_forward.34} parent=0 // pred_check
    %p428 = pneg %p18
  $region23: #{pixelcnnpp_forward.34} parent=0 // pred_check_branch
    %430 = sbr.rel (%p428) target = $region25
  $region24: #{pixelcnnpp_forward.34} parent=0 // pred_region
    %v431 = vld [vmem:[#allocation2] sm:$0xff]
    %v432 = vld [vmem:[#allocation2 + $0x8] sm:$0xff]
    %v433 = vld [vmem:[%s3] sm:$0x1]
    %v435 = vlaneseq
    %v436 = vshrl.u32 %v435, 7
    %v437 = vsub.s32 0, %v436
    %v438 = vrot.slane %v433, %v437
    %v440 = vadd.f32 %v431, %v438
    %v441 = vadd.f32 %v432, %v438
    %442 = vst [vmem:[%s4] sm:$0xff] %v440
    %443 = vst [vmem:[%s4 + $0x8] sm:$0xff] %v441
  $region25: #{pixelcnnpp_forward.34} parent=0 // pred_fallthru
    _
  // Predicated region
  $region26: #{pixelcnnpp_forward.34} parent=0 // pred_check
    _
  $region27: #{pixelcnnpp_forward.34} parent=0 // pred_check_branch
    %445 = sbr.rel (0) target = $region29
  $region28: #{pixelcnnpp_forward.34} parent=0 // pred_region
    _
  $region29: #{pixelcnnpp_forward.34} parent=0 // pred_fallthru
    _
  // Predicated region
  $region30: #{pixelcnnpp_forward.34} parent=0 // pred_check
    _
  $region31: #{pixelcnnpp_forward.34} parent=0 // pred_check_branch
    %447 = sbr.rel (0) target = $region33
  $region32: #{pixelcnnpp_forward.34} parent=0 // pred_region
    _
  $region33: #{pixelcnnpp_forward.34} parent=0 // pred_fallthru
    _

// kernel: pixelcnnpp_forward.35
$region0: #{pixelcnnpp_forward.35}
  #allocation0 [shape = 'u32[]', space=smem, size = 0x4, offset = 0x4, fixed_abs, tag = 'smem constant byte address 0x4 - core index']
  #allocation1 [shape = 'u32[144,128]{1,0:T(1,128)}', space=vmem, size = 0x12000, scoped, tag = 'internal scratch']
  #allocation2 [shape = 'f32[16,128]{1,0:T(8,128)}', space=vmem, size = 0x2000, scoped, tag = 'scratch operand']
  #allocation3 [shape = 'f32[16,128]{1,0:T(8,128)}', space=vmem, size = 0x2000, scoped, tag = 'scratch operand']
  %s0 = inlined_call_operand.vmem [shape: bf16[16,256], index: 0, kind: input, shape index: {}]
  %s1 = inlined_call_operand.vmem [shape: bf16[256,128], index: 1, kind: input, shape index: {}]
  %s2 = inlined_call_operand.vmem [shape: bf16[256,128], index: 2, kind: input, shape index: {}]
  %s3 = inlined_call_operand.vmem [shape: bf16[256,128], index: 3, kind: input, shape index: {}]
  %s4 = inlined_call_operand.vmem [shape: bf16[256,128], index: 4, kind: input, shape index: {}]
  %s5 = inlined_call_operand.vmem [shape: f32[1,128], index: 5, kind: input, shape index: {}]
  %s6 = inlined_call_operand.vmem [shape: f32[1,128], index: 6, kind: input, shape index: {}]
  %s7 = inlined_call_operand.vmem [shape: f32[16,128], index: 7, kind: input, shape index: {}]
  %s8 = inlined_call_operand.vmem [shape: f32[16,128], index: 8, kind: output, shape index: {}]
  %s9 = sld [smem:[#allocation0]]
  $region50: #{pixelcnnpp_forward.35} parent=0
    _
  %s11 = ssub.s32 1, %s9
  %s12 = scalar_select 0, %s11, %s9
  // Predicated region
  $region2: #{pixelcnnpp_forward.35} parent=0 // pred_check
    _
  $region3: #{pixelcnnpp_forward.35} parent=0 // pred_check_branch
    %14 = sbr.rel (0) target = $region5
  $region4: #{pixelcnnpp_forward.35} parent=0 // pred_region
    _
  $region5: #{pixelcnnpp_forward.35} parent=0 // pred_fallthru
    _
  // Predicated region
  $region6: #{pixelcnnpp_forward.35} parent=0 // pred_check
    _
  $region7: #{pixelcnnpp_forward.35} parent=0 // pred_check_branch
    %16 = sbr.rel (0) target = $region9
  $region8: #{pixelcnnpp_forward.35} parent=0 // pred_region
    _
  $region9: #{pixelcnnpp_forward.35} parent=0 // pred_fallthru
    _
  // Predicated region
  $region10: #{pixelcnnpp_forward.35} parent=0 // pred_check
    _
  $region11: #{pixelcnnpp_forward.35} parent=0 // pred_check_branch
    %18 = sbr.rel (0) target = $region13
  $region12: #{pixelcnnpp_forward.35} parent=0 // pred_region
    _
  $region13: #{pixelcnnpp_forward.35} parent=0 // pred_fallthru
    _
  // Predicated region
  $region14: #{pixelcnnpp_forward.35} parent=0 // pred_check
    _
  $region15: #{pixelcnnpp_forward.35} parent=0 // pred_check_branch
    %20 = sbr.rel (0) target = $region17
  $region16: #{pixelcnnpp_forward.35} parent=0 // pred_region
    _
  $region17: #{pixelcnnpp_forward.35} parent=0 // pred_fallthru
    _
  // Predicated region
  $region18: #{pixelcnnpp_forward.35} parent=0 // pred_check
    _
  $region19: #{pixelcnnpp_forward.35} parent=0 // pred_check_branch
    %22 = sbr.rel (0) target = $region21
  $region20: #{pixelcnnpp_forward.35} parent=0 // pred_region
    _
  $region21: #{pixelcnnpp_forward.35} parent=0 // pred_fallthru
    _
  // Predicated region
  $region22: #{pixelcnnpp_forward.35} parent=0 // pred_check
    _
  $region23: #{pixelcnnpp_forward.35} parent=0 // pred_check_branch
    %24 = sbr.rel (0) target = $region25
  $region24: #{pixelcnnpp_forward.35} parent=0 // pred_region
    _
  $region25: #{pixelcnnpp_forward.35} parent=0 // pred_fallthru
    _
  // Predicated region
  $region26: #{pixelcnnpp_forward.35} parent=0 // pred_check
    _
  $region27: #{pixelcnnpp_forward.35} parent=0 // pred_check_branch
    %26 = sbr.rel (0) target = $region29
  $region28: #{pixelcnnpp_forward.35} parent=0 // pred_region
    _
  $region29: #{pixelcnnpp_forward.35} parent=0 // pred_fallthru
    _
  // Predicated region
  $region30: #{pixelcnnpp_forward.35} parent=0 // pred_check
    _
  $region31: #{pixelcnnpp_forward.35} parent=0 // pred_check_branch
    %28 = sbr.rel (0) target = $region33
  $region32: #{pixelcnnpp_forward.35} parent=0 // pred_region
    _
  $region33: #{pixelcnnpp_forward.35} parent=0 // pred_fallthru
    _
  %p30 = scmp.eq.s32.totalorder 0, 0
  // Predicated region
  $region34: #{pixelcnnpp_forward.35} parent=0 // pred_check
    %p31 = pneg %p30
  $region35: #{pixelcnnpp_forward.35} parent=0 // pred_check_branch
    %33 = sbr.rel (%p31) target = $region37
  $region36: #{pixelcnnpp_forward.35} parent=0 // pred_region
    %34 = vst [vmem:[#allocation2] sm:$0xff] 0.0
    %35 = vst [vmem:[#allocation2 + $0x8] sm:$0xff] 0.0
    %36 = vst [vmem:[#allocation3] sm:$0xff] 0.0
    %37 = vst [vmem:[#allocation3 + $0x8] sm:$0xff] 0.0
  $region37: #{pixelcnnpp_forward.35} parent=0 // pred_fallthru
    _
  %v38 = vld [vmem:[%s0] sm:$0xff]
  %v39 = vld [vmem:[%s0 + $0x8] sm:$0xff]
  %v40 = vunpack.c.l.bf16 %v38
  %v41 = vunpack.c.h.bf16 %v38
  %v42 = vunpack.c.l.bf16 %v39
  %v43 = vunpack.c.h.bf16 %v39
  %vm44 = vcmp.gt.f32.partialorder %v40, 0.0
  %vm45 = vcmp.gt.f32.partialorder %v41, 0.0
  %vm46 = vcmp.gt.f32.partialorder %v42, 0.0
  %vm47 = vcmp.gt.f32.partialorder %v43, 0.0
  %v48 = vmul.f32 %v40, 1.442695
  %v49 = vpow.pop %v48
  %v50 = vmul.f32 %v41, 1.442695
  %v51 = vpow.pop %v50
  %v52 = vmul.f32 %v42, 1.442695
  %v53 = vpow.pop %v52
  %v54 = vmul.f32 %v43, 1.442695
  %v55 = vpow.pop %v54
  %v56 = vsub.f32 %v49, 1.0
  %v57 = vsub.f32 %v51, 1.0
  %v58 = vsub.f32 %v53, 1.0
  %v59 = vsub.f32 %v55, 1.0
  %v60 = vsel %vm44, %v40, %v56
  %v61 = vsel %vm45, %v41, %v57
  %v62 = vsel %vm46, %v42, %v58
  %v63 = vsel %vm47, %v43, %v59
  %v64 = vpack.c.bf16 %v62, %v60
  %v65 = vpack.c.bf16 %v63, %v61
  %vm66 = vcmp.lt.f32.partialorder %v40, 0.0
  %vm67 = vcmp.lt.f32.partialorder %v41, 0.0
  %vm68 = vcmp.lt.f32.partialorder %v42, 0.0
  %vm69 = vcmp.lt.f32.partialorder %v43, 0.0
  %v70 = vsub.f32 0.0, %v40
  %v71 = vsub.f32 0.0, %v41
  %v72 = vsub.f32 0.0, %v42
  %v73 = vsub.f32 0.0, %v43
  %v74 = vmul.f32 %v70, 1.442695
  %v75 = vpow.pop %v74
  %v76 = vmul.f32 %v71, 1.442695
  %v77 = vpow.pop %v76
  %v78 = vmul.f32 %v72, 1.442695
  %v79 = vpow.pop %v78
  %v80 = vmul.f32 %v73, 1.442695
  %v81 = vpow.pop %v80
  %v82 = vsub.f32 %v75, 1.0
  %v83 = vsub.f32 %v77, 1.0
  %v84 = vsub.f32 %v79, 1.0
  %v85 = vsub.f32 %v81, 1.0
  %v86 = vsel %vm66, %v70, %v82
  %v87 = vsel %vm67, %v71, %v83
  %v88 = vsel %vm68, %v72, %v84
  %v89 = vsel %vm69, %v73, %v85
  %v90 = vpack.c.bf16 %v88, %v86
  %v91 = vpack.c.bf16 %v89, %v87
  %v92 = vld [vmem:[#allocation2] sm:$0xff]
  %v93 = vld [vmem:[#allocation2 + $0x8] sm:$0xff]
  %v94 = vld [vmem:[%s1] sm:$0xf]
  %v95 = vld [vmem:[%s1 + $0x4] sm:$0xf]
  %v96 = vld [vmem:[%s1 + $0x8] sm:$0xf]
  %v97 = vld [vmem:[%s1 + $0xc] sm:$0xf]
  %v98 = vld [vmem:[%s1 + $0x10] sm:$0xf]
  %v99 = vld [vmem:[%s1 + $0x14] sm:$0xf]
  %v100 = vld [vmem:[%s1 + $0x18] sm:$0xf]
  %v101 = vld [vmem:[%s1 + $0x1c] sm:$0xf]
  %v102 = vld [vmem:[%s1 + $0x20] sm:$0xf]
  %v103 = vld [vmem:[%s1 + $0x24] sm:$0xf]
  %v104 = vld [vmem:[%s1 + $0x28] sm:$0xf]
  %v105 = vld [vmem:[%s1 + $0x2c] sm:$0xf]
  %v106 = vld [vmem:[%s1 + $0x30] sm:$0xf]
  %v107 = vld [vmem:[%s1 + $0x34] sm:$0xf]
  %v108 = vld [vmem:[%s1 + $0x38] sm:$0xf]
  %v109 = vld [vmem:[%s1 + $0x3c] sm:$0xf]
  %v110 = vld [vmem:[%s1 + $0x40] sm:$0xf]
  %v111 = vld [vmem:[%s1 + $0x44] sm:$0xf]
  %v112 = vld [vmem:[%s1 + $0x48] sm:$0xf]
  %v113 = vld [vmem:[%s1 + $0x4c] sm:$0xf]
  %v114 = vld [vmem:[%s1 + $0x50] sm:$0xf]
  %v115 = vld [vmem:[%s1 + $0x54] sm:$0xf]
  %v116 = vld [vmem:[%s1 + $0x58] sm:$0xf]
  %v117 = vld [vmem:[%s1 + $0x5c] sm:$0xf]
  %v118 = vld [vmem:[%s1 + $0x60] sm:$0xf]
  %v119 = vld [vmem:[%s1 + $0x64] sm:$0xf]
  %v120 = vld [vmem:[%s1 + $0x68] sm:$0xf]
  %v121 = vld [vmem:[%s1 + $0x6c] sm:$0xf]
  %v122 = vld [vmem:[%s1 + $0x70] sm:$0xf]
  %v123 = vld [vmem:[%s1 + $0x74] sm:$0xf]
  %v124 = vld [vmem:[%s1 + $0x78] sm:$0xf]
  %v125 = vld [vmem:[%s1 + $0x7c] sm:$0xf]
  %v158 = vunpack.c.l.b16 %v94
  %v159 = vunpack.c.l.b16 %v95
  %v160 = vunpack.c.l.b16 %v96
  %v161 = vunpack.c.l.b16 %v97
  %v162 = vunpack.c.l.b16 %v98
  %v163 = vunpack.c.l.b16 %v99
  %v164 = vunpack.c.l.b16 %v100
  %v165 = vunpack.c.l.b16 %v101
  %v166 = vunpack.c.l.b16 %v102
  %v167 = vunpack.c.l.b16 %v103
  %v168 = vunpack.c.l.b16 %v104
  %v169 = vunpack.c.l.b16 %v105
  %v170 = vunpack.c.l.b16 %v106
  %v171 = vunpack.c.l.b16 %v107
  %v172 = vunpack.c.l.b16 %v108
  %v173 = vunpack.c.l.b16 %v109
  %v174 = vunpack.c.l.b16 %v110
  %v175 = vunpack.c.l.b16 %v111
  %v176 = vunpack.c.l.b16 %v112
  %v177 = vunpack.c.l.b16 %v113
  %v178 = vunpack.c.l.b16 %v114
  %v179 = vunpack.c.l.b16 %v115
  %v180 = vunpack.c.l.b16 %v116
  %v181 = vunpack.c.l.b16 %v117
  %v182 = vunpack.c.l.b16 %v118
  %v183 = vunpack.c.l.b16 %v119
  %v184 = vunpack.c.l.b16 %v120
  %v185 = vunpack.c.l.b16 %v121
  %v186 = vunpack.c.l.b16 %v122
  %v187 = vunpack.c.l.b16 %v123
  %v188 = vunpack.c.l.b16 %v124
  %v189 = vunpack.c.l.b16 %v125
  %v190 = vpack.c.b16 %v159, %v158
  %v191 = vpack.c.b16 %v161, %v160
  %v192 = vpack.c.b16 %v163, %v162
  %v193 = vpack.c.b16 %v165, %v164
  %v194 = vpack.c.b16 %v167, %v166
  %v195 = vpack.c.b16 %v169, %v168
  %v196 = vpack.c.b16 %v171, %v170
  %v197 = vpack.c.b16 %v173, %v172
  %v198 = vpack.c.b16 %v175, %v174
  %v199 = vpack.c.b16 %v177, %v176
  %v200 = vpack.c.b16 %v179, %v178
  %v201 = vpack.c.b16 %v181, %v180
  %v202 = vpack.c.b16 %v183, %v182
  %v203 = vpack.c.b16 %v185, %v184
  %v204 = vpack.c.b16 %v187, %v186
  %v205 = vpack.c.b16 %v189, %v188
  %222 = vmatprep.subr.bf16.mxu0 0
  %223 = vmatpush1.bf16.msra.mxu0 %v197
  %224 = vmatprep.subr.bf16.mxu0 0
  %225 = vmatpush1.bf16.msra.mxu0 %v196
  %226 = vmatprep.subr.bf16.mxu0 0
  %227 = vmatpush1.bf16.msra.mxu0 %v195
  %228 = vmatprep.subr.bf16.mxu0 0
  %229 = vmatpush1.bf16.msra.mxu0 %v194
  %230 = vmatprep.subr.bf16.mxu0 0
  %231 = vmatpush1.bf16.msra.mxu0 %v193
  %232 = vmatprep.subr.bf16.mxu0 0
  %233 = vmatpush1.bf16.msra.mxu0 %v192
  %234 = vmatprep.subr.bf16.mxu0 0
  %235 = vmatpush1.bf16.msra.mxu0 %v191
  %236 = vmatprep.subr.bf16.mxu0 0
  %237 = vmatpush1.bf16.msra.mxu0 %v190
  %238 = vmatprep.subr.bf16.mxu0 0
  %239 = vmatpush2.bf16.msra.mxu0 %v205
  %240 = vmatprep.subr.bf16.mxu0 0
  %241 = vmatpush2.bf16.msra.mxu0 %v204
  %242 = vmatprep.subr.bf16.mxu0 0
  %243 = vmatpush2.bf16.msra.mxu0 %v203
  %244 = vmatprep.subr.bf16.mxu0 0
  %245 = vmatpush2.bf16.msra.mxu0 %v202
  %246 = vmatprep.subr.bf16.mxu0 0
  %247 = vmatpush2.bf16.msra.mxu0 %v201
  %248 = vmatprep.subr.bf16.mxu0 0
  %249 = vmatpush2.bf16.msra.mxu0 %v200
  %250 = vmatprep.subr.bf16.mxu0 0
  %251 = vmatpush2.bf16.msra.mxu0 %v199
  %252 = vmatprep.subr.bf16.mxu0 0
  %253 = vmatpush2.bf16.msra.mxu0 %v198
  %254 = vmatprep.mubr.bf16.mxu0 %v65
  %255 = vmatmul.mubr.bf16.gmra.mxu0 %v64
  %v256 = vpop.f32.mrf.mxu0
  %v257 = vadd.f32 0.0, %v256
  %v258 = vpop.f32.mrf.mxu0
  %v259 = vpop.f32.mrf.mxu0
  %v260 = vadd.f32 0.0, %v259
  %v261 = vpop.f32.mrf.mxu0
  %262 = vdwg.mxu0
  %v263 = vadd.f32 %v92, %v257
  %v264 = vadd.f32 %v93, %v260
  %265 = vst [vmem:[#allocation2] sm:$0xff] %v263
  %266 = vst [vmem:[#allocation2 + $0x8] sm:$0xff] %v264
  %v267 = vld [vmem:[#allocation3] sm:$0xff]
  %v268 = vld [vmem:[#allocation3 + $0x8] sm:$0xff]
  %v269 = vld [vmem:[%s3] sm:$0xf]
  %v270 = vld [vmem:[%s3 + $0x4] sm:$0xf]
  %v271 = vld [vmem:[%s3 + $0x8] sm:$0xf]
  %v272 = vld [vmem:[%s3 + $0xc] sm:$0xf]
  %v273 = vld [vmem:[%s3 + $0x10] sm:$0xf]
  %v274 = vld [vmem:[%s3 + $0x14] sm:$0xf]
  %v275 = vld [vmem:[%s3 + $0x18] sm:$0xf]
  %v276 = vld [vmem:[%s3 + $0x1c] sm:$0xf]
  %v277 = vld [vmem:[%s3 + $0x20] sm:$0xf]
  %v278 = vld [vmem:[%s3 + $0x24] sm:$0xf]
  %v279 = vld [vmem:[%s3 + $0x28] sm:$0xf]
  %v280 = vld [vmem:[%s3 + $0x2c] sm:$0xf]
  %v281 = vld [vmem:[%s3 + $0x30] sm:$0xf]
  %v282 = vld [vmem:[%s3 + $0x34] sm:$0xf]
  %v283 = vld [vmem:[%s3 + $0x38] sm:$0xf]
  %v284 = vld [vmem:[%s3 + $0x3c] sm:$0xf]
  %v285 = vld [vmem:[%s3 + $0x40] sm:$0xf]
  %v286 = vld [vmem:[%s3 + $0x44] sm:$0xf]
  %v287 = vld [vmem:[%s3 + $0x48] sm:$0xf]
  %v288 = vld [vmem:[%s3 + $0x4c] sm:$0xf]
  %v289 = vld [vmem:[%s3 + $0x50] sm:$0xf]
  %v290 = vld [vmem:[%s3 + $0x54] sm:$0xf]
  %v291 = vld [vmem:[%s3 + $0x58] sm:$0xf]
  %v292 = vld [vmem:[%s3 + $0x5c] sm:$0xf]
  %v293 = vld [vmem:[%s3 + $0x60] sm:$0xf]
  %v294 = vld [vmem:[%s3 + $0x64] sm:$0xf]
  %v295 = vld [vmem:[%s3 + $0x68] sm:$0xf]
  %v296 = vld [vmem:[%s3 + $0x6c] sm:$0xf]
  %v297 = vld [vmem:[%s3 + $0x70] sm:$0xf]
  %v298 = vld [vmem:[%s3 + $0x74] sm:$0xf]
  %v299 = vld [vmem:[%s3 + $0x78] sm:$0xf]
  %v300 = vld [vmem:[%s3 + $0x7c] sm:$0xf]
  %v333 = vunpack.c.l.b16 %v269
  %v334 = vunpack.c.l.b16 %v270
  %v335 = vunpack.c.l.b16 %v271
  %v336 = vunpack.c.l.b16 %v272
  %v337 = vunpack.c.l.b16 %v273
  %v338 = vunpack.c.l.b16 %v274
  %v339 = vunpack.c.l.b16 %v275
  %v340 = vunpack.c.l.b16 %v276
  %v341 = vunpack.c.l.b16 %v277
  %v342 = vunpack.c.l.b16 %v278
  %v343 = vunpack.c.l.b16 %v279
  %v344 = vunpack.c.l.b16 %v280
  %v345 = vunpack.c.l.b16 %v281
  %v346 = vunpack.c.l.b16 %v282
  %v347 = vunpack.c.l.b16 %v283
  %v348 = vunpack.c.l.b16 %v284
  %v349 = vunpack.c.l.b16 %v285
  %v350 = vunpack.c.l.b16 %v286
  %v351 = vunpack.c.l.b16 %v287
  %v352 = vunpack.c.l.b16 %v288
  %v353 = vunpack.c.l.b16 %v289
  %v354 = vunpack.c.l.b16 %v290
  %v355 = vunpack.c.l.b16 %v291
  %v356 = vunpack.c.l.b16 %v292
  %v357 = vunpack.c.l.b16 %v293
  %v358 = vunpack.c.l.b16 %v294
  %v359 = vunpack.c.l.b16 %v295
  %v360 = vunpack.c.l.b16 %v296
  %v361 = vunpack.c.l.b16 %v297
  %v362 = vunpack.c.l.b16 %v298
  %v363 = vunpack.c.l.b16 %v299
  %v364 = vunpack.c.l.b16 %v300
  %v365 = vpack.c.b16 %v334, %v333
  %v366 = vpack.c.b16 %v336, %v335
  %v367 = vpack.c.b16 %v338, %v337
  %v368 = vpack.c.b16 %v340, %v339
  %v369 = vpack.c.b16 %v342, %v341
  %v370 = vpack.c.b16 %v344, %v343
  %v371 = vpack.c.b16 %v346, %v345
  %v372 = vpack.c.b16 %v348, %v347
  %v373 = vpack.c.b16 %v350, %v349
  %v374 = vpack.c.b16 %v352, %v351
  %v375 = vpack.c.b16 %v354, %v353
  %v376 = vpack.c.b16 %v356, %v355
  %v377 = vpack.c.b16 %v358, %v357
  %v378 = vpack.c.b16 %v360, %v359
  %v379 = vpack.c.b16 %v362, %v361
  %v380 = vpack.c.b16 %v364, %v363
  %397 = vmatprep.subr.bf16.mxu0 0
  %398 = vmatpush1.bf16.msra.mxu0 %v372
  %399 = vmatprep.subr.bf16.mxu0 0
  %400 = vmatpush1.bf16.msra.mxu0 %v371
  %401 = vmatprep.subr.bf16.mxu0 0
  %402 = vmatpush1.bf16.msra.mxu0 %v370
  %403 = vmatprep.subr.bf16.mxu0 0
  %404 = vmatpush1.bf16.msra.mxu0 %v369
  %405 = vmatprep.subr.bf16.mxu0 0
  %406 = vmatpush1.bf16.msra.mxu0 %v368
  %407 = vmatprep.subr.bf16.mxu0 0
  %408 = vmatpush1.bf16.msra.mxu0 %v367
  %409 = vmatprep.subr.bf16.mxu0 0
  %410 = vmatpush1.bf16.msra.mxu0 %v366
  %411 = vmatprep.subr.bf16.mxu0 0
  %412 = vmatpush1.bf16.msra.mxu0 %v365
  %413 = vmatprep.subr.bf16.mxu0 0
  %414 = vmatpush2.bf16.msra.mxu0 %v380
  %415 = vmatprep.subr.bf16.mxu0 0
  %416 = vmatpush2.bf16.msra.mxu0 %v379
  %417 = vmatprep.subr.bf16.mxu0 0
  %418 = vmatpush2.bf16.msra.mxu0 %v378
  %419 = vmatprep.subr.bf16.mxu0 0
  %420 = vmatpush2.bf16.msra.mxu0 %v377
  %421 = vmatprep.subr.bf16.mxu0 0
  %422 = vmatpush2.bf16.msra.mxu0 %v376
  %423 = vmatprep.subr.bf16.mxu0 0
  %424 = vmatpush2.bf16.msra.mxu0 %v375
  %425 = vmatprep.subr.bf16.mxu0 0
  %426 = vmatpush2.bf16.msra.mxu0 %v374
  %427 = vmatprep.subr.bf16.mxu0 0
  %428 = vmatpush2.bf16.msra.mxu0 %v373
  %429 = vmatprep.mubr.bf16.mxu0 %v65
  %430 = vmatmul.mubr.bf16.gmra.mxu0 %v64
  %v431 = vpop.f32.mrf.mxu0
  %v432 = vadd.f32 0.0, %v431
  %v433 = vpop.f32.mrf.mxu0
  %v434 = vpop.f32.mrf.mxu0
  %v435 = vadd.f32 0.0, %v434
  %v436 = vpop.f32.mrf.mxu0
  %437 = vdwg.mxu0
  %v438 = vadd.f32 %v267, %v432
  %v439 = vadd.f32 %v268, %v435
  %440 = vst [vmem:[#allocation3] sm:$0xff] %v438
  %441 = vst [vmem:[#allocation3 + $0x8] sm:$0xff] %v439
  %v442 = vld [vmem:[#allocation2] sm:$0xff]
  %v443 = vld [vmem:[#allocation2 + $0x8] sm:$0xff]
  %v444 = vld [vmem:[%s2] sm:$0xf]
  %v445 = vld [vmem:[%s2 + $0x4] sm:$0xf]
  %v446 = vld [vmem:[%s2 + $0x8] sm:$0xf]
  %v447 = vld [vmem:[%s2 + $0xc] sm:$0xf]
  %v448 = vld [vmem:[%s2 + $0x10] sm:$0xf]
  %v449 = vld [vmem:[%s2 + $0x14] sm:$0xf]
  %v450 = vld [vmem:[%s2 + $0x18] sm:$0xf]
  %v451 = vld [vmem:[%s2 + $0x1c] sm:$0xf]
  %v452 = vld [vmem:[%s2 + $0x20] sm:$0xf]
  %v453 = vld [vmem:[%s2 + $0x24] sm:$0xf]
  %v454 = vld [vmem:[%s2 + $0x28] sm:$0xf]
  %v455 = vld [vmem:[%s2 + $0x2c] sm:$0xf]
  %v456 = vld [vmem:[%s2 + $0x30] sm:$0xf]
  %v457 = vld [vmem:[%s2 + $0x34] sm:$0xf]
  %v458 = vld [vmem:[%s2 + $0x38] sm:$0xf]
  %v459 = vld [vmem:[%s2 + $0x3c] sm:$0xf]
  %v460 = vld [vmem:[%s2 + $0x40] sm:$0xf]
  %v461 = vld [vmem:[%s2 + $0x44] sm:$0xf]
  %v462 = vld [vmem:[%s2 + $0x48] sm:$0xf]
  %v463 = vld [vmem:[%s2 + $0x4c] sm:$0xf]
  %v464 = vld [vmem:[%s2 + $0x50] sm:$0xf]
  %v465 = vld [vmem:[%s2 + $0x54] sm:$0xf]
  %v466 = vld [vmem:[%s2 + $0x58] sm:$0xf]
  %v467 = vld [vmem:[%s2 + $0x5c] sm:$0xf]
  %v468 = vld [vmem:[%s2 + $0x60] sm:$0xf]
  %v469 = vld [vmem:[%s2 + $0x64] sm:$0xf]
  %v470 = vld [vmem:[%s2 + $0x68] sm:$0xf]
  %v471 = vld [vmem:[%s2 + $0x6c] sm:$0xf]
  %v472 = vld [vmem:[%s2 + $0x70] sm:$0xf]
  %v473 = vld [vmem:[%s2 + $0x74] sm:$0xf]
  %v474 = vld [vmem:[%s2 + $0x78] sm:$0xf]
  %v475 = vld [vmem:[%s2 + $0x7c] sm:$0xf]
  %v508 = vunpack.c.l.b16 %v444
  %v509 = vunpack.c.l.b16 %v445
  %v510 = vunpack.c.l.b16 %v446
  %v511 = vunpack.c.l.b16 %v447
  %v512 = vunpack.c.l.b16 %v448
  %v513 = vunpack.c.l.b16 %v449
  %v514 = vunpack.c.l.b16 %v450
  %v515 = vunpack.c.l.b16 %v451
  %v516 = vunpack.c.l.b16 %v452
  %v517 = vunpack.c.l.b16 %v453
  %v518 = vunpack.c.l.b16 %v454
  %v519 = vunpack.c.l.b16 %v455
  %v520 = vunpack.c.l.b16 %v456
  %v521 = vunpack.c.l.b16 %v457
  %v522 = vunpack.c.l.b16 %v458
  %v523 = vunpack.c.l.b16 %v459
  %v524 = vunpack.c.l.b16 %v460
  %v525 = vunpack.c.l.b16 %v461
  %v526 = vunpack.c.l.b16 %v462
  %v527 = vunpack.c.l.b16 %v463
  %v528 = vunpack.c.l.b16 %v464
  %v529 = vunpack.c.l.b16 %v465
  %v530 = vunpack.c.l.b16 %v466
  %v531 = vunpack.c.l.b16 %v467
  %v532 = vunpack.c.l.b16 %v468
  %v533 = vunpack.c.l.b16 %v469
  %v534 = vunpack.c.l.b16 %v470
  %v535 = vunpack.c.l.b16 %v471
  %v536 = vunpack.c.l.b16 %v472
  %v537 = vunpack.c.l.b16 %v473
  %v538 = vunpack.c.l.b16 %v474
  %v539 = vunpack.c.l.b16 %v475
  %v540 = vpack.c.b16 %v509, %v508
  %v541 = vpack.c.b16 %v511, %v510
  %v542 = vpack.c.b16 %v513, %v512
  %v543 = vpack.c.b16 %v515, %v514
  %v544 = vpack.c.b16 %v517, %v516
  %v545 = vpack.c.b16 %v519, %v518
  %v546 = vpack.c.b16 %v521, %v520
  %v547 = vpack.c.b16 %v523, %v522
  %v548 = vpack.c.b16 %v525, %v524
  %v549 = vpack.c.b16 %v527, %v526
  %v550 = vpack.c.b16 %v529, %v528
  %v551 = vpack.c.b16 %v531, %v530
  %v552 = vpack.c.b16 %v533, %v532
  %v553 = vpack.c.b16 %v535, %v534
  %v554 = vpack.c.b16 %v537, %v536
  %v555 = vpack.c.b16 %v539, %v538
  %572 = vmatprep.subr.bf16.mxu0 0
  %573 = vmatpush1.bf16.msra.mxu0 %v547
  %574 = vmatprep.subr.bf16.mxu0 0
  %575 = vmatpush1.bf16.msra.mxu0 %v546
  %576 = vmatprep.subr.bf16.mxu0 0
  %577 = vmatpush1.bf16.msra.mxu0 %v545
  %578 = vmatprep.subr.bf16.mxu0 0
  %579 = vmatpush1.bf16.msra.mxu0 %v544
  %580 = vmatprep.subr.bf16.mxu0 0
  %581 = vmatpush1.bf16.msra.mxu0 %v543
  %582 = vmatprep.subr.bf16.mxu0 0
  %583 = vmatpush1.bf16.msra.mxu0 %v542
  %584 = vmatprep.subr.bf16.mxu0 0
  %585 = vmatpush1.bf16.msra.mxu0 %v541
  %586 = vmatprep.subr.bf16.mxu0 0
  %587 = vmatpush1.bf16.msra.mxu0 %v540
  %588 = vmatprep.subr.bf16.mxu0 0
  %589 = vmatpush2.bf16.msra.mxu0 %v555
  %590 = vmatprep.subr.bf16.mxu0 0
  %591 = vmatpush2.bf16.msra.mxu0 %v554
  %592 = vmatprep.subr.bf16.mxu0 0
  %593 = vmatpush2.bf16.msra.mxu0 %v553
  %594 = vmatprep.subr.bf16.mxu0 0
  %595 = vmatpush2.bf16.msra.mxu0 %v552
  %596 = vmatprep.subr.bf16.mxu0 0
  %597 = vmatpush2.bf16.msra.mxu0 %v551
  %598 = vmatprep.subr.bf16.mxu0 0
  %599 = vmatpush2.bf16.msra.mxu0 %v550
  %600 = vmatprep.subr.bf16.mxu0 0
  %601 = vmatpush2.bf16.msra.mxu0 %v549
  %602 = vmatprep.subr.bf16.mxu0 0
  %603 = vmatpush2.bf16.msra.mxu0 %v548
  %604 = vmatprep.mubr.bf16.mxu0 %v91
  %605 = vmatmul.mubr.bf16.gmra.mxu0 %v90
  %v606 = vpop.f32.mrf.mxu0
  %v607 = vadd.f32 0.0, %v606
  %v608 = vpop.f32.mrf.mxu0
  %v609 = vpop.f32.mrf.mxu0
  %v610 = vadd.f32 0.0, %v609
  %v611 = vpop.f32.mrf.mxu0
  %612 = vdwg.mxu0
  %v613 = vadd.f32 %v442, %v607
  %v614 = vadd.f32 %v443, %v610
  %615 = vst [vmem:[#allocation2] sm:$0xff] %v613
  %616 = vst [vmem:[#allocation2 + $0x8] sm:$0xff] %v614
  %v617 = vld [vmem:[#allocation3] sm:$0xff]
  %v618 = vld [vmem:[#allocation3 + $0x8] sm:$0xff]
  %v619 = vld [vmem:[%s4] sm:$0xf]
  %v620 = vld [vmem:[%s4 + $0x4] sm:$0xf]
  %v621 = vld [vmem:[%s4 + $0x8] sm:$0xf]
  %v622 = vld [vmem:[%s4 + $0xc] sm:$0xf]
  %v623 = vld [vmem:[%s4 + $0x10] sm:$0xf]
  %v624 = vld [vmem:[%s4 + $0x14] sm:$0xf]
  %v625 = vld [vmem:[%s4 + $0x18] sm:$0xf]
  %v626 = vld [vmem:[%s4 + $0x1c] sm:$0xf]
  %v627 = vld [vmem:[%s4 + $0x20] sm:$0xf]
  %v628 = vld [vmem:[%s4 + $0x24] sm:$0xf]
  %v629 = vld [vmem:[%s4 + $0x28] sm:$0xf]
  %v630 = vld [vmem:[%s4 + $0x2c] sm:$0xf]
  %v631 = vld [vmem:[%s4 + $0x30] sm:$0xf]
  %v632 = vld [vmem:[%s4 + $0x34] sm:$0xf]
  %v633 = vld [vmem:[%s4 + $0x38] sm:$0xf]
  %v634 = vld [vmem:[%s4 + $0x3c] sm:$0xf]
  %v635 = vld [vmem:[%s4 + $0x40] sm:$0xf]
  %v636 = vld [vmem:[%s4 + $0x44] sm:$0xf]
  %v637 = vld [vmem:[%s4 + $0x48] sm:$0xf]
  %v638 = vld [vmem:[%s4 + $0x4c] sm:$0xf]
  %v639 = vld [vmem:[%s4 + $0x50] sm:$0xf]
  %v640 = vld [vmem:[%s4 + $0x54] sm:$0xf]
  %v641 = vld [vmem:[%s4 + $0x58] sm:$0xf]
  %v642 = vld [vmem:[%s4 + $0x5c] sm:$0xf]
  %v643 = vld [vmem:[%s4 + $0x60] sm:$0xf]
  %v644 = vld [vmem:[%s4 + $0x64] sm:$0xf]
  %v645 = vld [vmem:[%s4 + $0x68] sm:$0xf]
  %v646 = vld [vmem:[%s4 + $0x6c] sm:$0xf]
  %v647 = vld [vmem:[%s4 + $0x70] sm:$0xf]
  %v648 = vld [vmem:[%s4 + $0x74] sm:$0xf]
  %v649 = vld [vmem:[%s4 + $0x78] sm:$0xf]
  %v650 = vld [vmem:[%s4 + $0x7c] sm:$0xf]
  %v683 = vunpack.c.l.b16 %v619
  %v684 = vunpack.c.l.b16 %v620
  %v685 = vunpack.c.l.b16 %v621
  %v686 = vunpack.c.l.b16 %v622
  %v687 = vunpack.c.l.b16 %v623
  %v688 = vunpack.c.l.b16 %v624
  %v689 = vunpack.c.l.b16 %v625
  %v690 = vunpack.c.l.b16 %v626
  %v691 = vunpack.c.l.b16 %v627
  %v692 = vunpack.c.l.b16 %v628
  %v693 = vunpack.c.l.b16 %v629
  %v694 = vunpack.c.l.b16 %v630
  %v695 = vunpack.c.l.b16 %v631
  %v696 = vunpack.c.l.b16 %v632
  %v697 = vunpack.c.l.b16 %v633
  %v698 = vunpack.c.l.b16 %v634
  %v699 = vunpack.c.l.b16 %v635
  %v700 = vunpack.c.l.b16 %v636
  %v701 = vunpack.c.l.b16 %v637
  %v702 = vunpack.c.l.b16 %v638
  %v703 = vunpack.c.l.b16 %v639
  %v704 = vunpack.c.l.b16 %v640
  %v705 = vunpack.c.l.b16 %v641
  %v706 = vunpack.c.l.b16 %v642
  %v707 = vunpack.c.l.b16 %v643
  %v708 = vunpack.c.l.b16 %v644
  %v709 = vunpack.c.l.b16 %v645
  %v710 = vunpack.c.l.b16 %v646
  %v711 = vunpack.c.l.b16 %v647
  %v712 = vunpack.c.l.b16 %v648
  %v713 = vunpack.c.l.b16 %v649
  %v714 = vunpack.c.l.b16 %v650
  %v715 = vpack.c.b16 %v684, %v683
  %v716 = vpack.c.b16 %v686, %v685
  %v717 = vpack.c.b16 %v688, %v687
  %v718 = vpack.c.b16 %v690, %v689
  %v719 = vpack.c.b16 %v692, %v691
  %v720 = vpack.c.b16 %v694, %v693
  %v721 = vpack.c.b16 %v696, %v695
  %v722 = vpack.c.b16 %v698, %v697
  %v723 = vpack.c.b16 %v700, %v699
  %v724 = vpack.c.b16 %v702, %v701
  %v725 = vpack.c.b16 %v704, %v703
  %v726 = vpack.c.b16 %v706, %v705
  %v727 = vpack.c.b16 %v708, %v707
  %v728 = vpack.c.b16 %v710, %v709
  %v729 = vpack.c.b16 %v712, %v711
  %v730 = vpack.c.b16 %v714, %v713
  %747 = vmatprep.subr.bf16.mxu0 0
  %748 = vmatpush1.bf16.msra.mxu0 %v722
  %749 = vmatprep.subr.bf16.mxu0 0
  %750 = vmatpush1.bf16.msra.mxu0 %v721
  %751 = vmatprep.subr.bf16.mxu0 0
  %752 = vmatpush1.bf16.msra.mxu0 %v720
  %753 = vmatprep.subr.bf16.mxu0 0
  %754 = vmatpush1.bf16.msra.mxu0 %v719
  %755 = vmatprep.subr.bf16.mxu0 0
  %756 = vmatpush1.bf16.msra.mxu0 %v718
  %757 = vmatprep.subr.bf16.mxu0 0
  %758 = vmatpush1.bf16.msra.mxu0 %v717
  %759 = vmatprep.subr.bf16.mxu0 0
  %760 = vmatpush1.bf16.msra.mxu0 %v716
  %761 = vmatprep.subr.bf16.mxu0 0
  %762 = vmatpush1.bf16.msra.mxu0 %v715
  %763 = vmatprep.subr.bf16.mxu0 0
  %764 = vmatpush2.bf16.msra.mxu0 %v730
  %765 = vmatprep.subr.bf16.mxu0 0
  %766 = vmatpush2.bf16.msra.mxu0 %v729
  %767 = vmatprep.subr.bf16.mxu0 0
  %768 = vmatpush2.bf16.msra.mxu0 %v728
  %769 = vmatprep.subr.bf16.mxu0 0
  %770 = vmatpush2.bf16.msra.mxu0 %v727
  %771 = vmatprep.subr.bf16.mxu0 0
  %772 = vmatpush2.bf16.msra.mxu0 %v726
  %773 = vmatprep.subr.bf16.mxu0 0
  %774 = vmatpush2.bf16.msra.mxu0 %v725
  %775 = vmatprep.subr.bf16.mxu0 0
  %776 = vmatpush2.bf16.msra.mxu0 %v724
  %777 = vmatprep.subr.bf16.mxu0 0
  %778 = vmatpush2.bf16.msra.mxu0 %v723
  %779 = vmatprep.mubr.bf16.mxu0 %v91
  %780 = vmatmul.mubr.bf16.gmra.mxu0 %v90
  %v781 = vpop.f32.mrf.mxu0
  %v782 = vadd.f32 0.0, %v781
  %v783 = vpop.f32.mrf.mxu0
  %v784 = vpop.f32.mrf.mxu0
  %v785 = vadd.f32 0.0, %v784
  %v786 = vpop.f32.mrf.mxu0
  %787 = vdwg.mxu0
  %v788 = vadd.f32 %v617, %v782
  %v789 = vadd.f32 %v618, %v785
  %790 = vst [vmem:[#allocation3] sm:$0xff] %v788
  %791 = vst [vmem:[#allocation3 + $0x8] sm:$0xff] %v789
  // Predicated region
  $region38: #{pixelcnnpp_forward.35} parent=0 // pred_check
    %p792 = pneg %p30
  $region39: #{pixelcnnpp_forward.35} parent=0 // pred_check_branch
    %794 = sbr.rel (%p792) target = $region41
  $region40: #{pixelcnnpp_forward.35} parent=0 // pred_region
    %v795 = vld [vmem:[#allocation2] sm:$0xff]
    %v796 = vld [vmem:[#allocation2 + $0x8] sm:$0xff]
    %v797 = vld [vmem:[%s5] sm:$0x1]
    %v799 = vlaneseq
    %v800 = vshrl.u32 %v799, 7
    %v801 = vsub.s32 0, %v800
    %v802 = vrot.slane %v797, %v801
    %v804 = vadd.f32 %v795, %v802
    %v805 = vadd.f32 %v796, %v802
    %v806 = vld [vmem:[#allocation3] sm:$0xff]
    %v807 = vld [vmem:[#allocation3 + $0x8] sm:$0xff]
    %v808 = vld [vmem:[%s6] sm:$0x1]
    %v810 = vlaneseq
    %v811 = vshrl.u32 %v810, 7
    %v812 = vsub.s32 0, %v811
    %v813 = vrot.slane %v808, %v812
    %v815 = vadd.f32 %v806, %v813
    %v816 = vadd.f32 %v807, %v813
    %v817 = vsub.f32 0.0, %v815
    %v818 = vsub.f32 0.0, %v816
    %v819 = vmul.f32 %v817, 1.442695
    %v820 = vpow.pop %v819
    %v821 = vmul.f32 %v818, 1.442695
    %v822 = vpow.pop %v821
    %v823 = vadd.f32 %v820, 1.0
    %v824 = vadd.f32 %v822, 1.0
    %v825 = vrcp.pop %v823
    %v826 = vrcp.pop %v824
    %v827 = vld [vmem:[%s7] sm:$0xff]
    %v828 = vld [vmem:[%s7 + $0x8] sm:$0xff]
    %v829 = vmul.f32 %v804, %v825
    %v830 = vmul.f32 %v805, %v826
    %v831 = vadd.f32 %v827, %v829
    %v832 = vadd.f32 %v828, %v830
    %833 = vst [vmem:[%s8] sm:$0xff] %v831
    %834 = vst [vmem:[%s8 + $0x8] sm:$0xff] %v832
  $region41: #{pixelcnnpp_forward.35} parent=0 // pred_fallthru
    _
  // Predicated region
  $region42: #{pixelcnnpp_forward.35} parent=0 // pred_check
    _
  $region43: #{pixelcnnpp_forward.35} parent=0 // pred_check_branch
    %836 = sbr.rel (0) target = $region45
  $region44: #{pixelcnnpp_forward.35} parent=0 // pred_region
    _
  $region45: #{pixelcnnpp_forward.35} parent=0 // pred_fallthru
    _
  // Predicated region
  $region46: #{pixelcnnpp_forward.35} parent=0 // pred_check
    _
  $region47: #{pixelcnnpp_forward.35} parent=0 // pred_check_branch
    %838 = sbr.rel (0) target = $region49
  $region48: #{pixelcnnpp_forward.35} parent=0 // pred_region
    _
  $region49: #{pixelcnnpp_forward.35} parent=0 // pred_fallthru
    _

// kernel: pixelcnnpp_forward.42
$region0: #{pixelcnnpp_forward.42}
  #allocation0 [shape = 'u32[]', space=smem, size = 0x4, offset = 0x4, fixed_abs, tag = 'smem constant byte address 0x4 - core index']
  #allocation1 [shape = 'u32[144,128]{1,0:T(1,128)}', space=vmem, size = 0x12000, scoped, tag = 'internal scratch']
  #allocation2 [shape = 'f32[48,128]{1,0:T(8,128)}', space=vmem, size = 0x6000, scoped, tag = 'scratch operand']
  %s0 = inlined_call_operand.vmem [shape: bf16[48,256], index: 0, kind: input, shape index: {}]
  %s1 = inlined_call_operand.vmem [shape: bf16[256,128], index: 1, kind: input, shape index: {}]
  %s2 = inlined_call_operand.vmem [shape: f32[1,128], index: 2, kind: input, shape index: {}]
  %s3 = inlined_call_operand.vmem [shape: f32[48,128], index: 3, kind: output, shape index: {}]
  %s4 = sld [smem:[#allocation0]]
  $region30: #{pixelcnnpp_forward.42} parent=0
    _
  %s6 = ssub.s32 1, %s4
  %s7 = scalar_select 0, %s6, %s4
  // Predicated region
  $region2: #{pixelcnnpp_forward.42} parent=0 // pred_check
    _
  $region3: #{pixelcnnpp_forward.42} parent=0 // pred_check_branch
    %9 = sbr.rel (0) target = $region5
  $region4: #{pixelcnnpp_forward.42} parent=0 // pred_region
    _
  $region5: #{pixelcnnpp_forward.42} parent=0 // pred_fallthru
    _
  // Predicated region
  $region6: #{pixelcnnpp_forward.42} parent=0 // pred_check
    _
  $region7: #{pixelcnnpp_forward.42} parent=0 // pred_check_branch
    %11 = sbr.rel (0) target = $region9
  $region8: #{pixelcnnpp_forward.42} parent=0 // pred_region
    _
  $region9: #{pixelcnnpp_forward.42} parent=0 // pred_fallthru
    _
  // Predicated region
  $region10: #{pixelcnnpp_forward.42} parent=0 // pred_check
    _
  $region11: #{pixelcnnpp_forward.42} parent=0 // pred_check_branch
    %13 = sbr.rel (0) target = $region13
  $region12: #{pixelcnnpp_forward.42} parent=0 // pred_region
    _
  $region13: #{pixelcnnpp_forward.42} parent=0 // pred_fallthru
    _
  %p15 = scmp.eq.s32.totalorder 0, 0
  // Predicated region
  $region14: #{pixelcnnpp_forward.42} parent=0 // pred_check
    %p16 = pneg %p15
  $region15: #{pixelcnnpp_forward.42} parent=0 // pred_check_branch
    %18 = sbr.rel (%p16) target = $region17
  $region16: #{pixelcnnpp_forward.42} parent=0 // pred_region
    %19 = vst [vmem:[#allocation2] sm:$0xff] 0.0
    %20 = vst [vmem:[#allocation2 + $0x8] sm:$0xff] 0.0
    %21 = vst [vmem:[#allocation2 + $0x10] sm:$0xff] 0.0
    %22 = vst [vmem:[#allocation2 + $0x18] sm:$0xff] 0.0
    %23 = vst [vmem:[#allocation2 + $0x20] sm:$0xff] 0.0
    %24 = vst [vmem:[#allocation2 + $0x28] sm:$0xff] 0.0
  $region17: #{pixelcnnpp_forward.42} parent=0 // pred_fallthru
    _
  %v25 = vld [vmem:[%s0] sm:$0xff]
  %v26 = vld [vmem:[%s0 + $0x8] sm:$0xff]
  %v27 = vld [vmem:[%s0 + $0x10] sm:$0xff]
  %v28 = vld [vmem:[%s0 + $0x18] sm:$0xff]
  %v29 = vld [vmem:[%s0 + $0x20] sm:$0xff]
  %v30 = vld [vmem:[%s0 + $0x28] sm:$0xff]
  %v31 = vld [vmem:[#allocation2] sm:$0xff]
  %v32 = vld [vmem:[#allocation2 + $0x8] sm:$0xff]
  %v33 = vld [vmem:[#allocation2 + $0x10] sm:$0xff]
  %v34 = vld [vmem:[#allocation2 + $0x18] sm:$0xff]
  %v35 = vld [vmem:[#allocation2 + $0x20] sm:$0xff]
  %v36 = vld [vmem:[#allocation2 + $0x28] sm:$0xff]
  %v37 = vld [vmem:[%s1] sm:$0xf]
  %v38 = vld [vmem:[%s1 + $0x4] sm:$0xf]
  %v39 = vld [vmem:[%s1 + $0x8] sm:$0xf]
  %v40 = vld [vmem:[%s1 + $0xc] sm:$0xf]
  %v41 = vld [vmem:[%s1 + $0x10] sm:$0xf]
  %v42 = vld [vmem:[%s1 + $0x14] sm:$0xf]
  %v43 = vld [vmem:[%s1 + $0x18] sm:$0xf]
  %v44 = vld [vmem:[%s1 + $0x1c] sm:$0xf]
  %v45 = vld [vmem:[%s1 + $0x20] sm:$0xf]
  %v46 = vld [vmem:[%s1 + $0x24] sm:$0xf]
  %v47 = vld [vmem:[%s1 + $0x28] sm:$0xf]
  %v48 = vld [vmem:[%s1 + $0x2c] sm:$0xf]
  %v49 = vld [vmem:[%s1 + $0x30] sm:$0xf]
  %v50 = vld [vmem:[%s1 + $0x34] sm:$0xf]
  %v51 = vld [vmem:[%s1 + $0x38] sm:$0xf]
  %v52 = vld [vmem:[%s1 + $0x3c] sm:$0xf]
  %v53 = vld [vmem:[%s1 + $0x40] sm:$0xf]
  %v54 = vld [vmem:[%s1 + $0x44] sm:$0xf]
  %v55 = vld [vmem:[%s1 + $0x48] sm:$0xf]
  %v56 = vld [vmem:[%s1 + $0x4c] sm:$0xf]
  %v57 = vld [vmem:[%s1 + $0x50] sm:$0xf]
  %v58 = vld [vmem:[%s1 + $0x54] sm:$0xf]
  %v59 = vld [vmem:[%s1 + $0x58] sm:$0xf]
  %v60 = vld [vmem:[%s1 + $0x5c] sm:$0xf]
  %v61 = vld [vmem:[%s1 + $0x60] sm:$0xf]
  %v62 = vld [vmem:[%s1 + $0x64] sm:$0xf]
  %v63 = vld [vmem:[%s1 + $0x68] sm:$0xf]
  %v64 = vld [vmem:[%s1 + $0x6c] sm:$0xf]
  %v65 = vld [vmem:[%s1 + $0x70] sm:$0xf]
  %v66 = vld [vmem:[%s1 + $0x74] sm:$0xf]
  %v67 = vld [vmem:[%s1 + $0x78] sm:$0xf]
  %v68 = vld [vmem:[%s1 + $0x7c] sm:$0xf]
  %v75 = vunpack.c.l.b16 %v25
  %v76 = vunpack.c.h.b16 %v25
  %v77 = vunpack.c.l.b16 %v26
  %v78 = vunpack.c.h.b16 %v26
  %v79 = vunpack.c.l.b16 %v27
  %v80 = vunpack.c.h.b16 %v27
  %v81 = vunpack.c.l.b16 %v28
  %v82 = vunpack.c.h.b16 %v28
  %v83 = vunpack.c.l.b16 %v29
  %v84 = vunpack.c.h.b16 %v29
  %v85 = vunpack.c.l.b16 %v30
  %v86 = vunpack.c.h.b16 %v30
  %v87 = vpack.c.b16 %v77, %v75
  %v88 = vpack.c.b16 %v78, %v76
  %v89 = vpack.c.b16 %v81, %v79
  %v90 = vpack.c.b16 %v82, %v80
  %v91 = vpack.c.b16 %v85, %v83
  %v92 = vpack.c.b16 %v86, %v84
  %v131 = vunpack.c.l.b16 %v37
  %v132 = vunpack.c.l.b16 %v38
  %v133 = vunpack.c.l.b16 %v39
  %v134 = vunpack.c.l.b16 %v40
  %v135 = vunpack.c.l.b16 %v41
  %v136 = vunpack.c.l.b16 %v42
  %v137 = vunpack.c.l.b16 %v43
  %v138 = vunpack.c.l.b16 %v44
  %v139 = vunpack.c.l.b16 %v45
  %v140 = vunpack.c.l.b16 %v46
  %v141 = vunpack.c.l.b16 %v47
  %v142 = vunpack.c.l.b16 %v48
  %v143 = vunpack.c.l.b16 %v49
  %v144 = vunpack.c.l.b16 %v50
  %v145 = vunpack.c.l.b16 %v51
  %v146 = vunpack.c.l.b16 %v52
  %v147 = vunpack.c.l.b16 %v53
  %v148 = vunpack.c.l.b16 %v54
  %v149 = vunpack.c.l.b16 %v55
  %v150 = vunpack.c.l.b16 %v56
  %v151 = vunpack.c.l.b16 %v57
  %v152 = vunpack.c.l.b16 %v58
  %v153 = vunpack.c.l.b16 %v59
  %v154 = vunpack.c.l.b16 %v60
  %v155 = vunpack.c.l.b16 %v61
  %v156 = vunpack.c.l.b16 %v62
  %v157 = vunpack.c.l.b16 %v63
  %v158 = vunpack.c.l.b16 %v64
  %v159 = vunpack.c.l.b16 %v65
  %v160 = vunpack.c.l.b16 %v66
  %v161 = vunpack.c.l.b16 %v67
  %v162 = vunpack.c.l.b16 %v68
  %v163 = vpack.c.b16 %v132, %v131
  %v164 = vpack.c.b16 %v134, %v133
  %v165 = vpack.c.b16 %v136, %v135
  %v166 = vpack.c.b16 %v138, %v137
  %v167 = vpack.c.b16 %v140, %v139
  %v168 = vpack.c.b16 %v142, %v141
  %v169 = vpack.c.b16 %v144, %v143
  %v170 = vpack.c.b16 %v146, %v145
  %v171 = vpack.c.b16 %v148, %v147
  %v172 = vpack.c.b16 %v150, %v149
  %v173 = vpack.c.b16 %v152, %v151
  %v174 = vpack.c.b16 %v154, %v153
  %v175 = vpack.c.b16 %v156, %v155
  %v176 = vpack.c.b16 %v158, %v157
  %v177 = vpack.c.b16 %v160, %v159
  %v178 = vpack.c.b16 %v162, %v161
  %195 = vmatprep.subr.bf16.mxu0 0
  %196 = vmatpush1.bf16.msra.mxu0 %v170
  %197 = vmatprep.subr.bf16.mxu0 0
  %198 = vmatpush1.bf16.msra.mxu0 %v169
  %199 = vmatprep.subr.bf16.mxu0 0
  %200 = vmatpush1.bf16.msra.mxu0 %v168
  %201 = vmatprep.subr.bf16.mxu0 0
  %202 = vmatpush1.bf16.msra.mxu0 %v167
  %203 = vmatprep.subr.bf16.mxu0 0
  %204 = vmatpush1.bf16.msra.mxu0 %v166
  %205 = vmatprep.subr.bf16.mxu0 0
  %206 = vmatpush1.bf16.msra.mxu0 %v165
  %207 = vmatprep.subr.bf16.mxu0 0
  %208 = vmatpush1.bf16.msra.mxu0 %v164
  %209 = vmatprep.subr.bf16.mxu0 0
  %210 = vmatpush1.bf16.msra.mxu0 %v163
  %211 = vmatprep.subr.bf16.mxu0 0
  %212 = vmatpush2.bf16.msra.mxu0 %v178
  %213 = vmatprep.subr.bf16.mxu0 0
  %214 = vmatpush2.bf16.msra.mxu0 %v177
  %215 = vmatprep.subr.bf16.mxu0 0
  %216 = vmatpush2.bf16.msra.mxu0 %v176
  %217 = vmatprep.subr.bf16.mxu0 0
  %218 = vmatpush2.bf16.msra.mxu0 %v175
  %219 = vmatprep.subr.bf16.mxu0 0
  %220 = vmatpush2.bf16.msra.mxu0 %v174
  %221 = vmatprep.subr.bf16.mxu0 0
  %222 = vmatpush2.bf16.msra.mxu0 %v173
  %223 = vmatprep.subr.bf16.mxu0 0
  %224 = vmatpush2.bf16.msra.mxu0 %v172
  %225 = vmatprep.subr.bf16.mxu0 0
  %226 = vmatpush2.bf16.msra.mxu0 %v171
  %227 = vmatprep.mubr.bf16.mxu0 %v88
  %228 = vmatmul.mubr.bf16.gmra.mxu0 %v87
  %v229 = vpop.f32.mrf.mxu0
  %v230 = vadd.f32 0.0, %v229
  %v231 = vpop.f32.mrf.mxu0
  %v232 = vpop.f32.mrf.mxu0
  %v233 = vadd.f32 0.0, %v232
  %v234 = vpop.f32.mrf.mxu0
  %235 = vmatprep.mubr.bf16.mxu0 %v90
  %236 = vmatmul.mubr.bf16.gmra.mxu0 %v89
  %v237 = vpop.f32.mrf.mxu0
  %v238 = vadd.f32 0.0, %v237
  %v239 = vpop.f32.mrf.mxu0
  %v240 = vpop.f32.mrf.mxu0
  %v241 = vadd.f32 0.0, %v240
  %v242 = vpop.f32.mrf.mxu0
  %243 = vmatprep.mubr.bf16.mxu0 %v92
  %244 = vmatmul.mubr.bf16.gmra.mxu0 %v91
  %v245 = vpop.f32.mrf.mxu0
  %v246 = vadd.f32 0.0, %v245
  %v247 = vpop.f32.mrf.mxu0
  %v248 = vpop.f32.mrf.mxu0
  %v249 = vadd.f32 0.0, %v248
  %v250 = vpop.f32.mrf.mxu0
  %251 = vdwg.mxu0
  %v252 = vadd.f32 %v31, %v230
  %v253 = vadd.f32 %v32, %v233
  %v254 = vadd.f32 %v33, %v238
  %v255 = vadd.f32 %v34, %v241
  %v256 = vadd.f32 %v35, %v246
  %v257 = vadd.f32 %v36, %v249
  %258 = vst [vmem:[#allocation2] sm:$0xff] %v252
  %259 = vst [vmem:[#allocation2 + $0x8] sm:$0xff] %v253
  %260 = vst [vmem:[#allocation2 + $0x10] sm:$0xff] %v254
  %261 = vst [vmem:[#allocation2 + $0x18] sm:$0xff] %v255
  %262 = vst [vmem:[#allocation2 + $0x20] sm:$0xff] %v256
  %263 = vst [vmem:[#allocation2 + $0x28] sm:$0xff] %v257
  // Predicated region
  $region18: #{pixelcnnpp_forward.42} parent=0 // pred_check
    %p264 = pneg %p15
  $region19: #{pixelcnnpp_forward.42} parent=0 // pred_check_branch
    %266 = sbr.rel (%p264) target = $region21
  $region20: #{pixelcnnpp_forward.42} parent=0 // pred_region
    %v267 = vld [vmem:[#allocation2] sm:$0xff]
    %v268 = vld [vmem:[#allocation2 + $0x8] sm:$0xff]
    %v269 = vld [vmem:[#allocation2 + $0x10] sm:$0xff]
    %v270 = vld [vmem:[#allocation2 + $0x18] sm:$0xff]
    %v271 = vld [vmem:[#allocation2 + $0x20] sm:$0xff]
    %v272 = vld [vmem:[#allocation2 + $0x28] sm:$0xff]
    %v273 = vld [vmem:[%s2] sm:$0x1]
    %v275 = vlaneseq
    %v276 = vshrl.u32 %v275, 7
    %v277 = vsub.s32 0, %v276
    %v278 = vrot.slane %v273, %v277
    %v280 = vadd.f32 %v267, %v278
    %v281 = vadd.f32 %v268, %v278
    %v282 = vadd.f32 %v269, %v278
    %v283 = vadd.f32 %v270, %v278
    %v284 = vadd.f32 %v271, %v278
    %v285 = vadd.f32 %v272, %v278
    %286 = vst [vmem:[%s3] sm:$0xff] %v280
    %287 = vst [vmem:[%s3 + $0x8] sm:$0xff] %v281
    %288 = vst [vmem:[%s3 + $0x10] sm:$0xff] %v282
    %289 = vst [vmem:[%s3 + $0x18] sm:$0xff] %v283
    %290 = vst [vmem:[%s3 + $0x20] sm:$0xff] %v284
    %291 = vst [vmem:[%s3 + $0x28] sm:$0xff] %v285
  $region21: #{pixelcnnpp_forward.42} parent=0 // pred_fallthru
    _
  // Predicated region
  $region22: #{pixelcnnpp_forward.42} parent=0 // pred_check
    _
  $region23: #{pixelcnnpp_forward.42} parent=0 // pred_check_branch
    %293 = sbr.rel (0) target = $region25
  $region24: #{pixelcnnpp_forward.42} parent=0 // pred_region
    _
  $region25: #{pixelcnnpp_forward.42} parent=0 // pred_fallthru
    _
  // Predicated region
  $region26: #{pixelcnnpp_forward.42} parent=0 // pred_check
    _
  $region27: #{pixelcnnpp_forward.42} parent=0 // pred_check_branch
    %295 = sbr.rel (0) target = $region29
  $region28: #{pixelcnnpp_forward.42} parent=0 // pred_region
    _
  $region29: #{pixelcnnpp_forward.42} parent=0 // pred_fallthru
    _

// kernel: pixelcnnpp_forward.51
$region0: #{pixelcnnpp_forward.51}
  #allocation0 [shape = 'u32[]', space=smem, size = 0x4, offset = 0x4, fixed_abs, tag = 'smem constant byte address 0x4 - core index']
  #allocation1 [shape = 'u32[144,128]{1,0:T(1,128)}', space=vmem, size = 0x12000, scoped, tag = 'internal scratch']
  #allocation2 [shape = 'f32[32,128]{1,0:T(8,128)}', space=vmem, size = 0x4000, scoped, tag = 'scratch operand']
  %s0 = inlined_call_operand.vmem [shape: bf16[32,128], index: 0, kind: input, shape index: {}]
  %s1 = inlined_call_operand.vmem [shape: bf16[128,128], index: 1, kind: input, shape index: {}]
  %s2 = inlined_call_operand.vmem [shape: f32[1,128], index: 2, kind: input, shape index: {}]
  %s3 = inlined_call_operand.hbm [shape: f32[32,128], index: 3, kind: output, shape index: {}]
  %s4 = sld [smem:[#allocation0]]
  $region30: #{pixelcnnpp_forward.51} parent=0
    _
  %s6 = ssub.s32 1, %s4
  %s7 = scalar_select 0, %s6, %s4
  $region1: #{pixelcnnpp_forward.51} parent=0
    #allocation3 [shape = 'u8[16384]{0}', space=vmem, size = 0x4000, scoped, tag = 'output window, operand 0, single buffered']
    #allocation4 [shape = 's32[1]{0}', space=sflag, size = 0x4, scoped, tag = 'scoped memory for pixelcnnpp_forward.51']
    %8 = vsyncpa [#allocation4], 0
    // Predicated region
    $region2: #{pixelcnnpp_forward.51} parent=1 // pred_check
      _
    $region3: #{pixelcnnpp_forward.51} parent=1 // pred_check_branch
      %10 = sbr.rel (0) target = $region5
    $region4: #{pixelcnnpp_forward.51} parent=1 // pred_region
      _
    $region5: #{pixelcnnpp_forward.51} parent=1 // pred_fallthru
      _
    // Predicated region
    $region6: #{pixelcnnpp_forward.51} parent=1 // pred_check
      _
    $region7: #{pixelcnnpp_forward.51} parent=1 // pred_check_branch
      %12 = sbr.rel (0) target = $region9
    $region8: #{pixelcnnpp_forward.51} parent=1 // pred_region
      _
    $region9: #{pixelcnnpp_forward.51} parent=1 // pred_fallthru
      _
    // Predicated region
    $region10: #{pixelcnnpp_forward.51} parent=1 // pred_check
      _
    $region11: #{pixelcnnpp_forward.51} parent=1 // pred_check_branch
      %14 = sbr.rel (0) target = $region13
    $region12: #{pixelcnnpp_forward.51} parent=1 // pred_region
      _
    $region13: #{pixelcnnpp_forward.51} parent=1 // pred_fallthru
      _
    %p16 = scmp.eq.s32.totalorder 0, 0
    // Predicated region
    $region14: #{pixelcnnpp_forward.51} parent=1 // pred_check
      %p17 = pneg %p16
    $region15: #{pixelcnnpp_forward.51} parent=1 // pred_check_branch
      %19 = sbr.rel (%p17) target = $region17
    $region16: #{pixelcnnpp_forward.51} parent=1 // pred_region
      %20 = vst [vmem:[#allocation2] sm:$0xff] 0.0
      %21 = vst [vmem:[#allocation2 + $0x8] sm:$0xff] 0.0
      %22 = vst [vmem:[#allocation2 + $0x10] sm:$0xff] 0.0
      %23 = vst [vmem:[#allocation2 + $0x18] sm:$0xff] 0.0
    $region17: #{pixelcnnpp_forward.51} parent=1 // pred_fallthru
      _
    %v24 = vld [vmem:[%s0] sm:$0xf]
    %v25 = vld [vmem:[%s0 + $0x4] sm:$0xf]
    %v26 = vld [vmem:[%s0 + $0x8] sm:$0xf]
    %v27 = vld [vmem:[%s0 + $0xc] sm:$0xf]
    %v28 = vunpack.c.l.bf16 %v24
    %v29 = vunpack.c.l.bf16 %v25
    %v30 = vunpack.c.l.bf16 %v26
    %v31 = vunpack.c.l.bf16 %v27
    %vm32 = vcmp.gt.f32.partialorder %v28, 0.0
    %vm33 = vcmp.gt.f32.partialorder %v29, 0.0
    %vm34 = vcmp.gt.f32.partialorder %v30, 0.0
    %vm35 = vcmp.gt.f32.partialorder %v31, 0.0
    %v36 = vmul.f32 %v28, 1.442695
    %v37 = vpow.pop %v36
    %v38 = vmul.f32 %v29, 1.442695
    %v39 = vpow.pop %v38
    %v40 = vmul.f32 %v30, 1.442695
    %v41 = vpow.pop %v40
    %v42 = vmul.f32 %v31, 1.442695
    %v43 = vpow.pop %v42
    %v44 = vsub.f32 %v37, 1.0
    %v45 = vsub.f32 %v39, 1.0
    %v46 = vsub.f32 %v41, 1.0
    %v47 = vsub.f32 %v43, 1.0
    %v48 = vsel %vm32, %v28, %v44
    %v49 = vsel %vm33, %v29, %v45
    %v50 = vsel %vm34, %v30, %v46
    %v51 = vsel %vm35, %v31, %v47
    %v52 = vpack.c.bf16 %v49, %v48
    %v53 = vpack.c.bf16 %v51, %v50
    %v54 = vld [vmem:[#allocation2] sm:$0xff]
    %v55 = vld [vmem:[#allocation2 + $0x8] sm:$0xff]
    %v56 = vld [vmem:[#allocation2 + $0x10] sm:$0xff]
    %v57 = vld [vmem:[#allocation2 + $0x18] sm:$0xff]
    %v58 = vld [vmem:[%s1] sm:$0xf]
    %v59 = vld [vmem:[%s1 + $0x4] sm:$0xf]
    %v60 = vld [vmem:[%s1 + $0x8] sm:$0xf]
    %v61 = vld [vmem:[%s1 + $0xc] sm:$0xf]
    %v62 = vld [vmem:[%s1 + $0x10] sm:$0xf]
    %v63 = vld [vmem:[%s1 + $0x14] sm:$0xf]
    %v64 = vld [vmem:[%s1 + $0x18] sm:$0xf]
    %v65 = vld [vmem:[%s1 + $0x1c] sm:$0xf]
    %v66 = vld [vmem:[%s1 + $0x20] sm:$0xf]
    %v67 = vld [vmem:[%s1 + $0x24] sm:$0xf]
    %v68 = vld [vmem:[%s1 + $0x28] sm:$0xf]
    %v69 = vld [vmem:[%s1 + $0x2c] sm:$0xf]
    %v70 = vld [vmem:[%s1 + $0x30] sm:$0xf]
    %v71 = vld [vmem:[%s1 + $0x34] sm:$0xf]
    %v72 = vld [vmem:[%s1 + $0x38] sm:$0xf]
    %v73 = vld [vmem:[%s1 + $0x3c] sm:$0xf]
    %v90 = vunpack.c.l.b16 %v58
    %v91 = vunpack.c.l.b16 %v59
    %v92 = vunpack.c.l.b16 %v60
    %v93 = vunpack.c.l.b16 %v61
    %v94 = vunpack.c.l.b16 %v62
    %v95 = vunpack.c.l.b16 %v63
    %v96 = vunpack.c.l.b16 %v64
    %v97 = vunpack.c.l.b16 %v65
    %v98 = vunpack.c.l.b16 %v66
    %v99 = vunpack.c.l.b16 %v67
    %v100 = vunpack.c.l.b16 %v68
    %v101 = vunpack.c.l.b16 %v69
    %v102 = vunpack.c.l.b16 %v70
    %v103 = vunpack.c.l.b16 %v71
    %v104 = vunpack.c.l.b16 %v72
    %v105 = vunpack.c.l.b16 %v73
    %v106 = vpack.c.b16 %v91, %v90
    %v107 = vpack.c.b16 %v93, %v92
    %v108 = vpack.c.b16 %v95, %v94
    %v109 = vpack.c.b16 %v97, %v96
    %v110 = vpack.c.b16 %v99, %v98
    %v111 = vpack.c.b16 %v101, %v100
    %v112 = vpack.c.b16 %v103, %v102
    %v113 = vpack.c.b16 %v105, %v104
    %122 = vmatprep.subr.bf16.mxu0 0
    %123 = vmatpush1.bf16.msra.mxu0 %v113
    %124 = vmatprep.subr.bf16.mxu0 0
    %125 = vmatpush1.bf16.msra.mxu0 %v112
    %126 = vmatprep.subr.bf16.mxu0 0
    %127 = vmatpush1.bf16.msra.mxu0 %v111
    %128 = vmatprep.subr.bf16.mxu0 0
    %129 = vmatpush1.bf16.msra.mxu0 %v110
    %130 = vmatprep.subr.bf16.mxu0 0
    %131 = vmatpush1.bf16.msra.mxu0 %v109
    %132 = vmatprep.subr.bf16.mxu0 0
    %133 = vmatpush1.bf16.msra.mxu0 %v108
    %134 = vmatprep.subr.bf16.mxu0 0
    %135 = vmatpush1.bf16.msra.mxu0 %v107
    %136 = vmatprep.subr.bf16.mxu0 0
    %137 = vmatpush1.bf16.msra.mxu0 %v106
    %138 = vmatprep.subr.bf16.mxu0 0
    %139 = vmatpush2.bf16.msra.mxu0 0
    %140 = vmatprep.subr.bf16.mxu0 0
    %141 = vmatpush2.bf16.msra.mxu0 0
    %142 = vmatprep.subr.bf16.mxu0 0
    %143 = vmatpush2.bf16.msra.mxu0 0
    %144 = vmatprep.subr.bf16.mxu0 0
    %145 = vmatpush2.bf16.msra.mxu0 0
    %146 = vmatprep.subr.bf16.mxu0 0
    %147 = vmatpush2.bf16.msra.mxu0 0
    %148 = vmatprep.subr.bf16.mxu0 0
    %149 = vmatpush2.bf16.msra.mxu0 0
    %150 = vmatprep.subr.bf16.mxu0 0
    %151 = vmatpush2.bf16.msra.mxu0 0
    %152 = vmatprep.subr.bf16.mxu0 0
    %153 = vmatpush2.bf16.msra.mxu0 0
    %154 = vmatprep.mubr.bf16.mxu0 0
    %155 = vmatmul.mubr.bf16.gmra.mxu0 %v52
    %v156 = vpop.f32.mrf.mxu0
    %v157 = vadd.f32 0.0, %v156
    %v158 = vpop.f32.mrf.mxu0
    %v159 = vpop.f32.mrf.mxu0
    %v160 = vadd.f32 0.0, %v159
    %v161 = vpop.f32.mrf.mxu0
    %162 = vmatprep.mubr.bf16.mxu0 0
    %163 = vmatmul.mubr.bf16.gmra.mxu0 %v53
    %v164 = vpop.f32.mrf.mxu0
    %v165 = vadd.f32 0.0, %v164
    %v166 = vpop.f32.mrf.mxu0
    %v167 = vpop.f32.mrf.mxu0
    %v168 = vadd.f32 0.0, %v167
    %v169 = vpop.f32.mrf.mxu0
    %170 = vdwg.mxu0
    %v171 = vadd.f32 %v54, %v157
    %v172 = vadd.f32 %v55, %v160
    %v173 = vadd.f32 %v56, %v165
    %v174 = vadd.f32 %v57, %v168
    %175 = vst [vmem:[#allocation2] sm:$0xff] %v171
    %176 = vst [vmem:[#allocation2 + $0x8] sm:$0xff] %v172
    %177 = vst [vmem:[#allocation2 + $0x10] sm:$0xff] %v173
    %178 = vst [vmem:[#allocation2 + $0x18] sm:$0xff] %v174
    // Predicated region
    $region18: #{pixelcnnpp_forward.51} parent=1 // pred_check
      %p179 = pneg %p16
    $region19: #{pixelcnnpp_forward.51} parent=1 // pred_check_branch
      %181 = sbr.rel (%p179) target = $region21
    $region20: #{pixelcnnpp_forward.51} parent=1 // pred_region
      %v182 = vld [vmem:[#allocation2] sm:$0xff]
      %v183 = vld [vmem:[#allocation2 + $0x8] sm:$0xff]
      %v184 = vld [vmem:[#allocation2 + $0x10] sm:$0xff]
      %v185 = vld [vmem:[#allocation2 + $0x18] sm:$0xff]
      %v186 = vld [vmem:[%s2] sm:$0x1]
      %v188 = vlaneseq
      %v189 = vshrl.u32 %v188, 7
      %v190 = vsub.s32 0, %v189
      %v191 = vrot.slane %v186, %v190
      %v193 = vadd.f32 %v182, %v191
      %v194 = vadd.f32 %v183, %v191
      %v195 = vadd.f32 %v184, %v191
      %v196 = vadd.f32 %v185, %v191
      %197 = vst [vmem:[#allocation3] sm:$0xff] %v193
      %198 = vst [vmem:[#allocation3 + $0x8] sm:$0xff] %v194
      %199 = vst [vmem:[#allocation3 + $0x10] sm:$0xff] %v195
      %200 = vst [vmem:[#allocation3 + $0x18] sm:$0xff] %v196
    $region21: #{pixelcnnpp_forward.51} parent=1 // pred_fallthru
      _
    // Predicated region
    $region22: #{pixelcnnpp_forward.51} parent=1 // pred_check
      _
    $region23: #{pixelcnnpp_forward.51} parent=1 // pred_check_branch
      %202 = sbr.rel (0) target = $region25
    $region24: #{pixelcnnpp_forward.51} parent=1 // pred_region
      %s204 = ssub.s32 512, 512
      %205 = vsyncadd [#allocation4], %s204
      %s206 = sshll.u32 [#allocation3], 4
      %s207 = int_to_ptr.vmem [resolvable:$true] %s206
      %212 = dma.vmem_to_hbm [thread:$0]  %s207, 512, %s3, [#allocation4], 128, 128, 8
    $region25: #{pixelcnnpp_forward.51} parent=1 // pred_fallthru
      _
    // Predicated region
    $region26: #{pixelcnnpp_forward.51} parent=1 // pred_check
      _
    $region27: #{pixelcnnpp_forward.51} parent=1 // pred_check_branch
      %214 = sbr.rel (0) target = $region29
    $region28: #{pixelcnnpp_forward.51} parent=1 // pred_region
      %215 = dma.done [#allocation4], 512
    $region29: #{pixelcnnpp_forward.51} parent=1 // pred_fallthru
      _
    %216 = vsyncpa [#allocation4], 1

// kernel: pixelcnnpp_forward.50
$region0: #{pixelcnnpp_forward.50}
  #allocation0 [shape = 'u32[]', space=smem, size = 0x4, offset = 0x4, fixed_abs, tag = 'smem constant byte address 0x4 - core index']
  #allocation1 [shape = 'u32[144,128]{1,0:T(1,128)}', space=vmem, size = 0x12000, scoped, tag = 'internal scratch']
  #allocation2 [shape = 'f32[32,128]{1,0:T(8,128)}', space=vmem, size = 0x4000, scoped, tag = 'scratch operand']
  #allocation3 [shape = 'f32[32,128]{1,0:T(8,128)}', space=vmem, size = 0x4000, scoped, tag = 'scratch operand']
  %s0 = inlined_call_operand.vmem [shape: bf16[32,128], index: 0, kind: input, shape index: {}]
  %s1 = inlined_call_operand.vmem [shape: bf16[128,128], index: 1, kind: input, shape index: {}]
  %s2 = inlined_call_operand.vmem [shape: bf16[128,128], index: 2, kind: input, shape index: {}]
  %s3 = inlined_call_operand.vmem [shape: bf16[128,128], index: 3, kind: input, shape index: {}]
  %s4 = inlined_call_operand.vmem [shape: bf16[128,128], index: 4, kind: input, shape index: {}]
  %s5 = inlined_call_operand.vmem [shape: f32[1,128], index: 5, kind: input, shape index: {}]
  %s6 = inlined_call_operand.vmem [shape: f32[1,128], index: 6, kind: input, shape index: {}]
  %s7 = inlined_call_operand.vmem [shape: f32[32,128], index: 7, kind: input, shape index: {}]
  %s8 = inlined_call_operand.vmem [shape: f32[32,128], index: 8, kind: output, shape index: {}]
  %s9 = sld [smem:[#allocation0]]
  $region50: #{pixelcnnpp_forward.50} parent=0
    _
  %s11 = ssub.s32 1, %s9
  %s12 = scalar_select 0, %s11, %s9
  // Predicated region
  $region2: #{pixelcnnpp_forward.50} parent=0 // pred_check
    _
  $region3: #{pixelcnnpp_forward.50} parent=0 // pred_check_branch
    %14 = sbr.rel (0) target = $region5
  $region4: #{pixelcnnpp_forward.50} parent=0 // pred_region
    _
  $region5: #{pixelcnnpp_forward.50} parent=0 // pred_fallthru
    _
  // Predicated region
  $region6: #{pixelcnnpp_forward.50} parent=0 // pred_check
    _
  $region7: #{pixelcnnpp_forward.50} parent=0 // pred_check_branch
    %16 = sbr.rel (0) target = $region9
  $region8: #{pixelcnnpp_forward.50} parent=0 // pred_region
    _
  $region9: #{pixelcnnpp_forward.50} parent=0 // pred_fallthru
    _
  // Predicated region
  $region10: #{pixelcnnpp_forward.50} parent=0 // pred_check
    _
  $region11: #{pixelcnnpp_forward.50} parent=0 // pred_check_branch
    %18 = sbr.rel (0) target = $region13
  $region12: #{pixelcnnpp_forward.50} parent=0 // pred_region
    _
  $region13: #{pixelcnnpp_forward.50} parent=0 // pred_fallthru
    _
  // Predicated region
  $region14: #{pixelcnnpp_forward.50} parent=0 // pred_check
    _
  $region15: #{pixelcnnpp_forward.50} parent=0 // pred_check_branch
    %20 = sbr.rel (0) target = $region17
  $region16: #{pixelcnnpp_forward.50} parent=0 // pred_region
    _
  $region17: #{pixelcnnpp_forward.50} parent=0 // pred_fallthru
    _
  // Predicated region
  $region18: #{pixelcnnpp_forward.50} parent=0 // pred_check
    _
  $region19: #{pixelcnnpp_forward.50} parent=0 // pred_check_branch
    %22 = sbr.rel (0) target = $region21
  $region20: #{pixelcnnpp_forward.50} parent=0 // pred_region
    _
  $region21: #{pixelcnnpp_forward.50} parent=0 // pred_fallthru
    _
  // Predicated region
  $region22: #{pixelcnnpp_forward.50} parent=0 // pred_check
    _
  $region23: #{pixelcnnpp_forward.50} parent=0 // pred_check_branch
    %24 = sbr.rel (0) target = $region25
  $region24: #{pixelcnnpp_forward.50} parent=0 // pred_region
    _
  $region25: #{pixelcnnpp_forward.50} parent=0 // pred_fallthru
    _
  // Predicated region
  $region26: #{pixelcnnpp_forward.50} parent=0 // pred_check
    _
  $region27: #{pixelcnnpp_forward.50} parent=0 // pred_check_branch
    %26 = sbr.rel (0) target = $region29
  $region28: #{pixelcnnpp_forward.50} parent=0 // pred_region
    _
  $region29: #{pixelcnnpp_forward.50} parent=0 // pred_fallthru
    _
  // Predicated region
  $region30: #{pixelcnnpp_forward.50} parent=0 // pred_check
    _
  $region31: #{pixelcnnpp_forward.50} parent=0 // pred_check_branch
    %28 = sbr.rel (0) target = $region33
  $region32: #{pixelcnnpp_forward.50} parent=0 // pred_region
    _
  $region33: #{pixelcnnpp_forward.50} parent=0 // pred_fallthru
    _
  %p30 = scmp.eq.s32.totalorder 0, 0
  // Predicated region
  $region34: #{pixelcnnpp_forward.50} parent=0 // pred_check
    %p31 = pneg %p30
  $region35: #{pixelcnnpp_forward.50} parent=0 // pred_check_branch
    %33 = sbr.rel (%p31) target = $region37
  $region36: #{pixelcnnpp_forward.50} parent=0 // pred_region
    %34 = vst [vmem:[#allocation2] sm:$0xff] 0.0
    %35 = vst [vmem:[#allocation2 + $0x8] sm:$0xff] 0.0
    %36 = vst [vmem:[#allocation2 + $0x10] sm:$0xff] 0.0
    %37 = vst [vmem:[#allocation2 + $0x18] sm:$0xff] 0.0
    %38 = vst [vmem:[#allocation3] sm:$0xff] 0.0
    %39 = vst [vmem:[#allocation3 + $0x8] sm:$0xff] 0.0
    %40 = vst [vmem:[#allocation3 + $0x10] sm:$0xff] 0.0
    %41 = vst [vmem:[#allocation3 + $0x18] sm:$0xff] 0.0
  $region37: #{pixelcnnpp_forward.50} parent=0 // pred_fallthru
    _
  %v42 = vld [vmem:[%s0] sm:$0xf]
  %v43 = vld [vmem:[%s0 + $0x4] sm:$0xf]
  %v44 = vld [vmem:[%s0 + $0x8] sm:$0xf]
  %v45 = vld [vmem:[%s0 + $0xc] sm:$0xf]
  %v46 = vunpack.c.l.bf16 %v42
  %v47 = vunpack.c.l.bf16 %v43
  %v48 = vunpack.c.l.bf16 %v44
  %v49 = vunpack.c.l.bf16 %v45
  %vm50 = vcmp.gt.f32.partialorder %v46, 0.0
  %vm51 = vcmp.gt.f32.partialorder %v47, 0.0
  %vm52 = vcmp.gt.f32.partialorder %v48, 0.0
  %vm53 = vcmp.gt.f32.partialorder %v49, 0.0
  %v54 = vmul.f32 %v46, 1.442695
  %v55 = vpow.pop %v54
  %v56 = vmul.f32 %v47, 1.442695
  %v57 = vpow.pop %v56
  %v58 = vmul.f32 %v48, 1.442695
  %v59 = vpow.pop %v58
  %v60 = vmul.f32 %v49, 1.442695
  %v61 = vpow.pop %v60
  %v62 = vsub.f32 %v55, 1.0
  %v63 = vsub.f32 %v57, 1.0
  %v64 = vsub.f32 %v59, 1.0
  %v65 = vsub.f32 %v61, 1.0
  %v66 = vsel %vm50, %v46, %v62
  %v67 = vsel %vm51, %v47, %v63
  %v68 = vsel %vm52, %v48, %v64
  %v69 = vsel %vm53, %v49, %v65
  %v70 = vpack.c.bf16 %v67, %v66
  %v71 = vpack.c.bf16 %v69, %v68
  %vm72 = vcmp.lt.f32.partialorder %v46, 0.0
  %vm73 = vcmp.lt.f32.partialorder %v47, 0.0
  %vm74 = vcmp.lt.f32.partialorder %v48, 0.0
  %vm75 = vcmp.lt.f32.partialorder %v49, 0.0
  %v76 = vsub.f32 0.0, %v46
  %v77 = vsub.f32 0.0, %v47
  %v78 = vsub.f32 0.0, %v48
  %v79 = vsub.f32 0.0, %v49
  %v80 = vmul.f32 %v76, 1.442695
  %v81 = vpow.pop %v80
  %v82 = vmul.f32 %v77, 1.442695
  %v83 = vpow.pop %v82
  %v84 = vmul.f32 %v78, 1.442695
  %v85 = vpow.pop %v84
  %v86 = vmul.f32 %v79, 1.442695
  %v87 = vpow.pop %v86
  %v88 = vsub.f32 %v81, 1.0
  %v89 = vsub.f32 %v83, 1.0
  %v90 = vsub.f32 %v85, 1.0
  %v91 = vsub.f32 %v87, 1.0
  %v92 = vsel %vm72, %v76, %v88
  %v93 = vsel %vm73, %v77, %v89
  %v94 = vsel %vm74, %v78, %v90
  %v95 = vsel %vm75, %v79, %v91
  %v96 = vpack.c.bf16 %v93, %v92
  %v97 = vpack.c.bf16 %v95, %v94
  %v98 = vld [vmem:[#allocation2] sm:$0xff]
  %v99 = vld [vmem:[#allocation2 + $0x8] sm:$0xff]
  %v100 = vld [vmem:[#allocation2 + $0x10] sm:$0xff]
  %v101 = vld [vmem:[#allocation2 + $0x18] sm:$0xff]
  %v102 = vld [vmem:[%s1] sm:$0xf]
  %v103 = vld [vmem:[%s1 + $0x4] sm:$0xf]
  %v104 = vld [vmem:[%s1 + $0x8] sm:$0xf]
  %v105 = vld [vmem:[%s1 + $0xc] sm:$0xf]
  %v106 = vld [vmem:[%s1 + $0x10] sm:$0xf]
  %v107 = vld [vmem:[%s1 + $0x14] sm:$0xf]
  %v108 = vld [vmem:[%s1 + $0x18] sm:$0xf]
  %v109 = vld [vmem:[%s1 + $0x1c] sm:$0xf]
  %v110 = vld [vmem:[%s1 + $0x20] sm:$0xf]
  %v111 = vld [vmem:[%s1 + $0x24] sm:$0xf]
  %v112 = vld [vmem:[%s1 + $0x28] sm:$0xf]
  %v113 = vld [vmem:[%s1 + $0x2c] sm:$0xf]
  %v114 = vld [vmem:[%s1 + $0x30] sm:$0xf]
  %v115 = vld [vmem:[%s1 + $0x34] sm:$0xf]
  %v116 = vld [vmem:[%s1 + $0x38] sm:$0xf]
  %v117 = vld [vmem:[%s1 + $0x3c] sm:$0xf]
  %v134 = vunpack.c.l.b16 %v102
  %v135 = vunpack.c.l.b16 %v103
  %v136 = vunpack.c.l.b16 %v104
  %v137 = vunpack.c.l.b16 %v105
  %v138 = vunpack.c.l.b16 %v106
  %v139 = vunpack.c.l.b16 %v107
  %v140 = vunpack.c.l.b16 %v108
  %v141 = vunpack.c.l.b16 %v109
  %v142 = vunpack.c.l.b16 %v110
  %v143 = vunpack.c.l.b16 %v111
  %v144 = vunpack.c.l.b16 %v112
  %v145 = vunpack.c.l.b16 %v113
  %v146 = vunpack.c.l.b16 %v114
  %v147 = vunpack.c.l.b16 %v115
  %v148 = vunpack.c.l.b16 %v116
  %v149 = vunpack.c.l.b16 %v117
  %v150 = vpack.c.b16 %v135, %v134
  %v151 = vpack.c.b16 %v137, %v136
  %v152 = vpack.c.b16 %v139, %v138
  %v153 = vpack.c.b16 %v141, %v140
  %v154 = vpack.c.b16 %v143, %v142
  %v155 = vpack.c.b16 %v145, %v144
  %v156 = vpack.c.b16 %v147, %v146
  %v157 = vpack.c.b16 %v149, %v148
  %166 = vmatprep.subr.bf16.mxu0 0
  %167 = vmatpush1.bf16.msra.mxu0 %v157
  %168 = vmatprep.subr.bf16.mxu0 0
  %169 = vmatpush1.bf16.msra.mxu0 %v156
  %170 = vmatprep.subr.bf16.mxu0 0
  %171 = vmatpush1.bf16.msra.mxu0 %v155
  %172 = vmatprep.subr.bf16.mxu0 0
  %173 = vmatpush1.bf16.msra.mxu0 %v154
  %174 = vmatprep.subr.bf16.mxu0 0
  %175 = vmatpush1.bf16.msra.mxu0 %v153
  %176 = vmatprep.subr.bf16.mxu0 0
  %177 = vmatpush1.bf16.msra.mxu0 %v152
  %178 = vmatprep.subr.bf16.mxu0 0
  %179 = vmatpush1.bf16.msra.mxu0 %v151
  %180 = vmatprep.subr.bf16.mxu0 0
  %181 = vmatpush1.bf16.msra.mxu0 %v150
  %182 = vmatprep.subr.bf16.mxu0 0
  %183 = vmatpush2.bf16.msra.mxu0 0
  %184 = vmatprep.subr.bf16.mxu0 0
  %185 = vmatpush2.bf16.msra.mxu0 0
  %186 = vmatprep.subr.bf16.mxu0 0
  %187 = vmatpush2.bf16.msra.mxu0 0
  %188 = vmatprep.subr.bf16.mxu0 0
  %189 = vmatpush2.bf16.msra.mxu0 0
  %190 = vmatprep.subr.bf16.mxu0 0
  %191 = vmatpush2.bf16.msra.mxu0 0
  %192 = vmatprep.subr.bf16.mxu0 0
  %193 = vmatpush2.bf16.msra.mxu0 0
  %194 = vmatprep.subr.bf16.mxu0 0
  %195 = vmatpush2.bf16.msra.mxu0 0
  %196 = vmatprep.subr.bf16.mxu0 0
  %197 = vmatpush2.bf16.msra.mxu0 0
  %198 = vmatprep.mubr.bf16.mxu0 0
  %199 = vmatmul.mubr.bf16.gmra.mxu0 %v70
  %v200 = vpop.f32.mrf.mxu0
  %v201 = vadd.f32 0.0, %v200
  %v202 = vpop.f32.mrf.mxu0
  %v203 = vpop.f32.mrf.mxu0
  %v204 = vadd.f32 0.0, %v203
  %v205 = vpop.f32.mrf.mxu0
  %206 = vmatprep.mubr.bf16.mxu0 0
  %207 = vmatmul.mubr.bf16.gmra.mxu0 %v71
  %v208 = vpop.f32.mrf.mxu0
  %v209 = vadd.f32 0.0, %v208
  %v210 = vpop.f32.mrf.mxu0
  %v211 = vpop.f32.mrf.mxu0
  %v212 = vadd.f32 0.0, %v211
  %v213 = vpop.f32.mrf.mxu0
  %214 = vdwg.mxu0
  %v215 = vadd.f32 %v98, %v201
  %v216 = vadd.f32 %v99, %v204
  %v217 = vadd.f32 %v100, %v209
  %v218 = vadd.f32 %v101, %v212
  %219 = vst [vmem:[#allocation2] sm:$0xff] %v215
  %220 = vst [vmem:[#allocation2 + $0x8] sm:$0xff] %v216
  %221 = vst [vmem:[#allocation2 + $0x10] sm:$0xff] %v217
  %222 = vst [vmem:[#allocation2 + $0x18] sm:$0xff] %v218
  %v223 = vld [vmem:[#allocation3] sm:$0xff]
  %v224 = vld [vmem:[#allocation3 + $0x8] sm:$0xff]
  %v225 = vld [vmem:[#allocation3 + $0x10] sm:$0xff]
  %v226 = vld [vmem:[#allocation3 + $0x18] sm:$0xff]
  %v227 = vld [vmem:[%s3] sm:$0xf]
  %v228 = vld [vmem:[%s3 + $0x4] sm:$0xf]
  %v229 = vld [vmem:[%s3 + $0x8] sm:$0xf]
  %v230 = vld [vmem:[%s3 + $0xc] sm:$0xf]
  %v231 = vld [vmem:[%s3 + $0x10] sm:$0xf]
  %v232 = vld [vmem:[%s3 + $0x14] sm:$0xf]
  %v233 = vld [vmem:[%s3 + $0x18] sm:$0xf]
  %v234 = vld [vmem:[%s3 + $0x1c] sm:$0xf]
  %v235 = vld [vmem:[%s3 + $0x20] sm:$0xf]
  %v236 = vld [vmem:[%s3 + $0x24] sm:$0xf]
  %v237 = vld [vmem:[%s3 + $0x28] sm:$0xf]
  %v238 = vld [vmem:[%s3 + $0x2c] sm:$0xf]
  %v239 = vld [vmem:[%s3 + $0x30] sm:$0xf]
  %v240 = vld [vmem:[%s3 + $0x34] sm:$0xf]
  %v241 = vld [vmem:[%s3 + $0x38] sm:$0xf]
  %v242 = vld [vmem:[%s3 + $0x3c] sm:$0xf]
  %v259 = vunpack.c.l.b16 %v227
  %v260 = vunpack.c.l.b16 %v228
  %v261 = vunpack.c.l.b16 %v229
  %v262 = vunpack.c.l.b16 %v230
  %v263 = vunpack.c.l.b16 %v231
  %v264 = vunpack.c.l.b16 %v232
  %v265 = vunpack.c.l.b16 %v233
  %v266 = vunpack.c.l.b16 %v234
  %v267 = vunpack.c.l.b16 %v235
  %v268 = vunpack.c.l.b16 %v236
  %v269 = vunpack.c.l.b16 %v237
  %v270 = vunpack.c.l.b16 %v238
  %v271 = vunpack.c.l.b16 %v239
  %v272 = vunpack.c.l.b16 %v240
  %v273 = vunpack.c.l.b16 %v241
  %v274 = vunpack.c.l.b16 %v242
  %v275 = vpack.c.b16 %v260, %v259
  %v276 = vpack.c.b16 %v262, %v261
  %v277 = vpack.c.b16 %v264, %v263
  %v278 = vpack.c.b16 %v266, %v265
  %v279 = vpack.c.b16 %v268, %v267
  %v280 = vpack.c.b16 %v270, %v269
  %v281 = vpack.c.b16 %v272, %v271
  %v282 = vpack.c.b16 %v274, %v273
  %291 = vmatprep.subr.bf16.mxu0 0
  %292 = vmatpush1.bf16.msra.mxu0 %v282
  %293 = vmatprep.subr.bf16.mxu0 0
  %294 = vmatpush1.bf16.msra.mxu0 %v281
  %295 = vmatprep.subr.bf16.mxu0 0
  %296 = vmatpush1.bf16.msra.mxu0 %v280
  %297 = vmatprep.subr.bf16.mxu0 0
  %298 = vmatpush1.bf16.msra.mxu0 %v279
  %299 = vmatprep.subr.bf16.mxu0 0
  %300 = vmatpush1.bf16.msra.mxu0 %v278
  %301 = vmatprep.subr.bf16.mxu0 0
  %302 = vmatpush1.bf16.msra.mxu0 %v277
  %303 = vmatprep.subr.bf16.mxu0 0
  %304 = vmatpush1.bf16.msra.mxu0 %v276
  %305 = vmatprep.subr.bf16.mxu0 0
  %306 = vmatpush1.bf16.msra.mxu0 %v275
  %307 = vmatprep.subr.bf16.mxu0 0
  %308 = vmatpush2.bf16.msra.mxu0 0
  %309 = vmatprep.subr.bf16.mxu0 0
  %310 = vmatpush2.bf16.msra.mxu0 0
  %311 = vmatprep.subr.bf16.mxu0 0
  %312 = vmatpush2.bf16.msra.mxu0 0
  %313 = vmatprep.subr.bf16.mxu0 0
  %314 = vmatpush2.bf16.msra.mxu0 0
  %315 = vmatprep.subr.bf16.mxu0 0
  %316 = vmatpush2.bf16.msra.mxu0 0
  %317 = vmatprep.subr.bf16.mxu0 0
  %318 = vmatpush2.bf16.msra.mxu0 0
  %319 = vmatprep.subr.bf16.mxu0 0
  %320 = vmatpush2.bf16.msra.mxu0 0
  %321 = vmatprep.subr.bf16.mxu0 0
  %322 = vmatpush2.bf16.msra.mxu0 0
  %323 = vmatprep.mubr.bf16.mxu0 0
  %324 = vmatmul.mubr.bf16.gmra.mxu0 %v70
  %v325 = vpop.f32.mrf.mxu0
  %v326 = vadd.f32 0.0, %v325
  %v327 = vpop.f32.mrf.mxu0
  %v328 = vpop.f32.mrf.mxu0
  %v329 = vadd.f32 0.0, %v328
  %v330 = vpop.f32.mrf.mxu0
  %331 = vmatprep.mubr.bf16.mxu0 0
  %332 = vmatmul.mubr.bf16.gmra.mxu0 %v71
  %v333 = vpop.f32.mrf.mxu0
  %v334 = vadd.f32 0.0, %v333
  %v335 = vpop.f32.mrf.mxu0
  %v336 = vpop.f32.mrf.mxu0
  %v337 = vadd.f32 0.0, %v336
  %v338 = vpop.f32.mrf.mxu0
  %339 = vdwg.mxu0
  %v340 = vadd.f32 %v223, %v326
  %v341 = vadd.f32 %v224, %v329
  %v342 = vadd.f32 %v225, %v334
  %v343 = vadd.f32 %v226, %v337
  %344 = vst [vmem:[#allocation3] sm:$0xff] %v340
  %345 = vst [vmem:[#allocation3 + $0x8] sm:$0xff] %v341
  %346 = vst [vmem:[#allocation3 + $0x10] sm:$0xff] %v342
  %347 = vst [vmem:[#allocation3 + $0x18] sm:$0xff] %v343
  %v348 = vld [vmem:[#allocation2] sm:$0xff]
  %v349 = vld [vmem:[#allocation2 + $0x8] sm:$0xff]
  %v350 = vld [vmem:[#allocation2 + $0x10] sm:$0xff]
  %v351 = vld [vmem:[#allocation2 + $0x18] sm:$0xff]
  %v352 = vld [vmem:[%s2] sm:$0xf]
  %v353 = vld [vmem:[%s2 + $0x4] sm:$0xf]
  %v354 = vld [vmem:[%s2 + $0x8] sm:$0xf]
  %v355 = vld [vmem:[%s2 + $0xc] sm:$0xf]
  %v356 = vld [vmem:[%s2 + $0x10] sm:$0xf]
  %v357 = vld [vmem:[%s2 + $0x14] sm:$0xf]
  %v358 = vld [vmem:[%s2 + $0x18] sm:$0xf]
  %v359 = vld [vmem:[%s2 + $0x1c] sm:$0xf]
  %v360 = vld [vmem:[%s2 + $0x20] sm:$0xf]
  %v361 = vld [vmem:[%s2 + $0x24] sm:$0xf]
  %v362 = vld [vmem:[%s2 + $0x28] sm:$0xf]
  %v363 = vld [vmem:[%s2 + $0x2c] sm:$0xf]
  %v364 = vld [vmem:[%s2 + $0x30] sm:$0xf]
  %v365 = vld [vmem:[%s2 + $0x34] sm:$0xf]
  %v366 = vld [vmem:[%s2 + $0x38] sm:$0xf]
  %v367 = vld [vmem:[%s2 + $0x3c] sm:$0xf]
  %v384 = vunpack.c.l.b16 %v352
  %v385 = vunpack.c.l.b16 %v353
  %v386 = vunpack.c.l.b16 %v354
  %v387 = vunpack.c.l.b16 %v355
  %v388 = vunpack.c.l.b16 %v356
  %v389 = vunpack.c.l.b16 %v357
  %v390 = vunpack.c.l.b16 %v358
  %v391 = vunpack.c.l.b16 %v359
  %v392 = vunpack.c.l.b16 %v360
  %v393 = vunpack.c.l.b16 %v361
  %v394 = vunpack.c.l.b16 %v362
  %v395 = vunpack.c.l.b16 %v363
  %v396 = vunpack.c.l.b16 %v364
  %v397 = vunpack.c.l.b16 %v365
  %v398 = vunpack.c.l.b16 %v366
  %v399 = vunpack.c.l.b16 %v367
  %v400 = vpack.c.b16 %v385, %v384
  %v401 = vpack.c.b16 %v387, %v386
  %v402 = vpack.c.b16 %v389, %v388
  %v403 = vpack.c.b16 %v391, %v390
  %v404 = vpack.c.b16 %v393, %v392
  %v405 = vpack.c.b16 %v395, %v394
  %v406 = vpack.c.b16 %v397, %v396
  %v407 = vpack.c.b16 %v399, %v398
  %416 = vmatprep.subr.bf16.mxu0 0
  %417 = vmatpush1.bf16.msra.mxu0 %v407
  %418 = vmatprep.subr.bf16.mxu0 0
  %419 = vmatpush1.bf16.msra.mxu0 %v406
  %420 = vmatprep.subr.bf16.mxu0 0
  %421 = vmatpush1.bf16.msra.mxu0 %v405
  %422 = vmatprep.subr.bf16.mxu0 0
  %423 = vmatpush1.bf16.msra.mxu0 %v404
  %424 = vmatprep.subr.bf16.mxu0 0
  %425 = vmatpush1.bf16.msra.mxu0 %v403
  %426 = vmatprep.subr.bf16.mxu0 0
  %427 = vmatpush1.bf16.msra.mxu0 %v402
  %428 = vmatprep.subr.bf16.mxu0 0
  %429 = vmatpush1.bf16.msra.mxu0 %v401
  %430 = vmatprep.subr.bf16.mxu0 0
  %431 = vmatpush1.bf16.msra.mxu0 %v400
  %432 = vmatprep.subr.bf16.mxu0 0
  %433 = vmatpush2.bf16.msra.mxu0 0
  %434 = vmatprep.subr.bf16.mxu0 0
  %435 = vmatpush2.bf16.msra.mxu0 0
  %436 = vmatprep.subr.bf16.mxu0 0
  %437 = vmatpush2.bf16.msra.mxu0 0
  %438 = vmatprep.subr.bf16.mxu0 0
  %439 = vmatpush2.bf16.msra.mxu0 0
  %440 = vmatprep.subr.bf16.mxu0 0
  %441 = vmatpush2.bf16.msra.mxu0 0
  %442 = vmatprep.subr.bf16.mxu0 0
  %443 = vmatpush2.bf16.msra.mxu0 0
  %444 = vmatprep.subr.bf16.mxu0 0
  %445 = vmatpush2.bf16.msra.mxu0 0
  %446 = vmatprep.subr.bf16.mxu0 0
  %447 = vmatpush2.bf16.msra.mxu0 0
  %448 = vmatprep.mubr.bf16.mxu0 0
  %449 = vmatmul.mubr.bf16.gmra.mxu0 %v96
  %v450 = vpop.f32.mrf.mxu0
  %v451 = vadd.f32 0.0, %v450
  %v452 = vpop.f32.mrf.mxu0
  %v453 = vpop.f32.mrf.mxu0
  %v454 = vadd.f32 0.0, %v453
  %v455 = vpop.f32.mrf.mxu0
  %456 = vmatprep.mubr.bf16.mxu0 0
  %457 = vmatmul.mubr.bf16.gmra.mxu0 %v97
  %v458 = vpop.f32.mrf.mxu0
  %v459 = vadd.f32 0.0, %v458
  %v460 = vpop.f32.mrf.mxu0
  %v461 = vpop.f32.mrf.mxu0
  %v462 = vadd.f32 0.0, %v461
  %v463 = vpop.f32.mrf.mxu0
  %464 = vdwg.mxu0
  %v465 = vadd.f32 %v348, %v451
  %v466 = vadd.f32 %v349, %v454
  %v467 = vadd.f32 %v350, %v459
  %v468 = vadd.f32 %v351, %v462
  %469 = vst [vmem:[#allocation2] sm:$0xff] %v465
  %470 = vst [vmem:[#allocation2 + $0x8] sm:$0xff] %v466
  %471 = vst [vmem:[#allocation2 + $0x10] sm:$0xff] %v467
  %472 = vst [vmem:[#allocation2 + $0x18] sm:$0xff] %v468
  %v473 = vld [vmem:[#allocation3] sm:$0xff]
  %v474 = vld [vmem:[#allocation3 + $0x8] sm:$0xff]
  %v475 = vld [vmem:[#allocation3 + $0x10] sm:$0xff]
  %v476 = vld [vmem:[#allocation3 + $0x18] sm:$0xff]
  %v477 = vld [vmem:[%s4] sm:$0xf]
  %v478 = vld [vmem:[%s4 + $0x4] sm:$0xf]
  %v479 = vld [vmem:[%s4 + $0x8] sm:$0xf]
  %v480 = vld [vmem:[%s4 + $0xc] sm:$0xf]
  %v481 = vld [vmem:[%s4 + $0x10] sm:$0xf]
  %v482 = vld [vmem:[%s4 + $0x14] sm:$0xf]
  %v483 = vld [vmem:[%s4 + $0x18] sm:$0xf]
  %v484 = vld [vmem:[%s4 + $0x1c] sm:$0xf]
  %v485 = vld [vmem:[%s4 + $0x20] sm:$0xf]
  %v486 = vld [vmem:[%s4 + $0x24] sm:$0xf]
  %v487 = vld [vmem:[%s4 + $0x28] sm:$0xf]
  %v488 = vld [vmem:[%s4 + $0x2c] sm:$0xf]
  %v489 = vld [vmem:[%s4 + $0x30] sm:$0xf]
  %v490 = vld [vmem:[%s4 + $0x34] sm:$0xf]
  %v491 = vld [vmem:[%s4 + $0x38] sm:$0xf]
  %v492 = vld [vmem:[%s4 + $0x3c] sm:$0xf]
  %v509 = vunpack.c.l.b16 %v477
  %v510 = vunpack.c.l.b16 %v478
  %v511 = vunpack.c.l.b16 %v479
  %v512 = vunpack.c.l.b16 %v480
  %v513 = vunpack.c.l.b16 %v481
  %v514 = vunpack.c.l.b16 %v482
  %v515 = vunpack.c.l.b16 %v483
  %v516 = vunpack.c.l.b16 %v484
  %v517 = vunpack.c.l.b16 %v485
  %v518 = vunpack.c.l.b16 %v486
  %v519 = vunpack.c.l.b16 %v487
  %v520 = vunpack.c.l.b16 %v488
  %v521 = vunpack.c.l.b16 %v489
  %v522 = vunpack.c.l.b16 %v490
  %v523 = vunpack.c.l.b16 %v491
  %v524 = vunpack.c.l.b16 %v492
  %v525 = vpack.c.b16 %v510, %v509
  %v526 = vpack.c.b16 %v512, %v511
  %v527 = vpack.c.b16 %v514, %v513
  %v528 = vpack.c.b16 %v516, %v515
  %v529 = vpack.c.b16 %v518, %v517
  %v530 = vpack.c.b16 %v520, %v519
  %v531 = vpack.c.b16 %v522, %v521
  %v532 = vpack.c.b16 %v524, %v523
  %541 = vmatprep.subr.bf16.mxu0 0
  %542 = vmatpush1.bf16.msra.mxu0 %v532
  %543 = vmatprep.subr.bf16.mxu0 0
  %544 = vmatpush1.bf16.msra.mxu0 %v531
  %545 = vmatprep.subr.bf16.mxu0 0
  %546 = vmatpush1.bf16.msra.mxu0 %v530
  %547 = vmatprep.subr.bf16.mxu0 0
  %548 = vmatpush1.bf16.msra.mxu0 %v529
  %549 = vmatprep.subr.bf16.mxu0 0
  %550 = vmatpush1.bf16.msra.mxu0 %v528
  %551 = vmatprep.subr.bf16.mxu0 0
  %552 = vmatpush1.bf16.msra.mxu0 %v527
  %553 = vmatprep.subr.bf16.mxu0 0
  %554 = vmatpush1.bf16.msra.mxu0 %v526
  %555 = vmatprep.subr.bf16.mxu0 0
  %556 = vmatpush1.bf16.msra.mxu0 %v525
  %557 = vmatprep.subr.bf16.mxu0 0
  %558 = vmatpush2.bf16.msra.mxu0 0
  %559 = vmatprep.subr.bf16.mxu0 0
  %560 = vmatpush2.bf16.msra.mxu0 0
  %561 = vmatprep.subr.bf16.mxu0 0
  %562 = vmatpush2.bf16.msra.mxu0 0
  %563 = vmatprep.subr.bf16.mxu0 0
  %564 = vmatpush2.bf16.msra.mxu0 0
  %565 = vmatprep.subr.bf16.mxu0 0
  %566 = vmatpush2.bf16.msra.mxu0 0
  %567 = vmatprep.subr.bf16.mxu0 0
  %568 = vmatpush2.bf16.msra.mxu0 0
  %569 = vmatprep.subr.bf16.mxu0 0
  %570 = vmatpush2.bf16.msra.mxu0 0
  %571 = vmatprep.subr.bf16.mxu0 0
  %572 = vmatpush2.bf16.msra.mxu0 0
  %573 = vmatprep.mubr.bf16.mxu0 0
  %574 = vmatmul.mubr.bf16.gmra.mxu0 %v96
  %v575 = vpop.f32.mrf.mxu0
  %v576 = vadd.f32 0.0, %v575
  %v577 = vpop.f32.mrf.mxu0
  %v578 = vpop.f32.mrf.mxu0
  %v579 = vadd.f32 0.0, %v578
  %v580 = vpop.f32.mrf.mxu0
  %581 = vmatprep.mubr.bf16.mxu0 0
  %582 = vmatmul.mubr.bf16.gmra.mxu0 %v97
  %v583 = vpop.f32.mrf.mxu0
  %v584 = vadd.f32 0.0, %v583
  %v585 = vpop.f32.mrf.mxu0
  %v586 = vpop.f32.mrf.mxu0
  %v587 = vadd.f32 0.0, %v586
  %v588 = vpop.f32.mrf.mxu0
  %589 = vdwg.mxu0
  %v590 = vadd.f32 %v473, %v576
  %v591 = vadd.f32 %v474, %v579
  %v592 = vadd.f32 %v475, %v584
  %v593 = vadd.f32 %v476, %v587
  %594 = vst [vmem:[#allocation3] sm:$0xff] %v590
  %595 = vst [vmem:[#allocation3 + $0x8] sm:$0xff] %v591
  %596 = vst [vmem:[#allocation3 + $0x10] sm:$0xff] %v592
  %597 = vst [vmem:[#allocation3 + $0x18] sm:$0xff] %v593
  // Predicated region
  $region38: #{pixelcnnpp_forward.50} parent=0 // pred_check
    %p598 = pneg %p30
  $region39: #{pixelcnnpp_forward.50} parent=0 // pred_check_branch
    %600 = sbr.rel (%p598) target = $region41
  $region40: #{pixelcnnpp_forward.50} parent=0 // pred_region
    %v601 = vld [vmem:[#allocation2] sm:$0xff]
    %v602 = vld [vmem:[#allocation2 + $0x8] sm:$0xff]
    %v603 = vld [vmem:[#allocation2 + $0x10] sm:$0xff]
    %v604 = vld [vmem:[#allocation2 + $0x18] sm:$0xff]
    %v605 = vld [vmem:[%s5] sm:$0x1]
    %v607 = vlaneseq
    %v608 = vshrl.u32 %v607, 7
    %v609 = vsub.s32 0, %v608
    %v610 = vrot.slane %v605, %v609
    %v612 = vadd.f32 %v601, %v610
    %v613 = vadd.f32 %v602, %v610
    %v614 = vadd.f32 %v603, %v610
    %v615 = vadd.f32 %v604, %v610
    %v616 = vld [vmem:[#allocation3] sm:$0xff]
    %v617 = vld [vmem:[#allocation3 + $0x8] sm:$0xff]
    %v618 = vld [vmem:[#allocation3 + $0x10] sm:$0xff]
    %v619 = vld [vmem:[#allocation3 + $0x18] sm:$0xff]
    %v620 = vld [vmem:[%s6] sm:$0x1]
    %v622 = vlaneseq
    %v623 = vshrl.u32 %v622, 7
    %v624 = vsub.s32 0, %v623
    %v625 = vrot.slane %v620, %v624
    %v627 = vadd.f32 %v616, %v625
    %v628 = vadd.f32 %v617, %v625
    %v629 = vadd.f32 %v618, %v625
    %v630 = vadd.f32 %v619, %v625
    %v631 = vsub.f32 0.0, %v627
    %v632 = vsub.f32 0.0, %v628
    %v633 = vsub.f32 0.0, %v629
    %v634 = vsub.f32 0.0, %v630
    %v635 = vmul.f32 %v631, 1.442695
    %v636 = vpow.pop %v635
    %v637 = vmul.f32 %v632, 1.442695
    %v638 = vpow.pop %v637
    %v639 = vmul.f32 %v633, 1.442695
    %v640 = vpow.pop %v639
    %v641 = vmul.f32 %v634, 1.442695
    %v642 = vpow.pop %v641
    %v643 = vadd.f32 %v636, 1.0
    %v644 = vadd.f32 %v638, 1.0
    %v645 = vadd.f32 %v640, 1.0
    %v646 = vadd.f32 %v642, 1.0
    %v647 = vrcp.pop %v643
    %v648 = vrcp.pop %v644
    %v649 = vrcp.pop %v645
    %v650 = vrcp.pop %v646
    %v651 = vld [vmem:[%s7] sm:$0xff]
    %v652 = vld [vmem:[%s7 + $0x8] sm:$0xff]
    %v653 = vld [vmem:[%s7 + $0x10] sm:$0xff]
    %v654 = vld [vmem:[%s7 + $0x18] sm:$0xff]
    %v655 = vmul.f32 %v612, %v647
    %v656 = vmul.f32 %v613, %v648
    %v657 = vmul.f32 %v614, %v649
    %v658 = vmul.f32 %v615, %v650
    %v659 = vadd.f32 %v651, %v655
    %v660 = vadd.f32 %v652, %v656
    %v661 = vadd.f32 %v653, %v657
    %v662 = vadd.f32 %v654, %v658
    %663 = vst [vmem:[%s8] sm:$0xff] %v659
    %664 = vst [vmem:[%s8 + $0x8] sm:$0xff] %v660
    %665 = vst [vmem:[%s8 + $0x10] sm:$0xff] %v661
    %666 = vst [vmem:[%s8 + $0x18] sm:$0xff] %v662
  $region41: #{pixelcnnpp_forward.50} parent=0 // pred_fallthru
    _
  // Predicated region
  $region42: #{pixelcnnpp_forward.50} parent=0 // pred_check
    _
  $region43: #{pixelcnnpp_forward.50} parent=0 // pred_check_branch
    %668 = sbr.rel (0) target = $region45
  $region44: #{pixelcnnpp_forward.50} parent=0 // pred_region
    _
  $region45: #{pixelcnnpp_forward.50} parent=0 // pred_fallthru
    _
  // Predicated region
  $region46: #{pixelcnnpp_forward.50} parent=0 // pred_check
    _
  $region47: #{pixelcnnpp_forward.50} parent=0 // pred_check_branch
    %670 = sbr.rel (0) target = $region49
  $region48: #{pixelcnnpp_forward.50} parent=0 // pred_region
    _
  $region49: #{pixelcnnpp_forward.50} parent=0 // pred_fallthru
    _

</llo_original>
